<compile_context>
chip_gen: v6e
topology: v6e:2x2x1
jax: 0.10.0
libtpu: 0.0.40
codegen_flags: <defaults>
</compile_context>

<pallas_src>
import functools

import jax
import jax.numpy as jnp
from jax import lax
from jax.experimental import pallas as pl
from jax.experimental.pallas import tpu as pltpu

EPS = 1e-5


def _resblock_kernel(xext_ref, w_ref, bn_ref, o_ref, h1_ref, *,
                     wp, pp_p, lc_p, pp, hp_wp, h, w, halo, inv_cnt):
    """Lane layout: channels (padded to Cp=8k) on sublanes, flat padded pixels
    on lanes.

    xext_ref : (Cp, XL)        zero-extended flat padded input
                               (xext[:, q] = xflat[:, q - halo])
    w_ref    : (2, 9, Cp, Cp)  conv weights, [conv][tap=dy*3+dx][cout][cin]
    bn_ref   : (4, Cp, 1)      gamma1, beta1, gamma2, beta2 on sublanes
    o_ref    : (Cp, lc_p)      output; lane q <-> flat pixel q + halo
    h1_ref   : (Cp, pp_p)      VMEM scratch for the first activation
    """

    def interior_mask(length, base):
        # 0/1 mask of interior (non-halo, non-pad) pixels for lanes
        # [base, base+length) of flat padded pixel space.  Float div/mod with
        # a +0.5 guard so floor() is robust to non-correctly-rounded division.
        p = lax.broadcasted_iota(jnp.int32, (1, length), 1).astype(jnp.float32)
        p = p + float(base)
        n = jnp.floor((p + 0.5) / float(hp_wp))
        rem = p - n * float(hp_wp)
        y = jnp.floor((rem + 0.5) / float(wp))
        x = rem - y * float(wp)
        ok = ((p < float(pp)) & (y >= 1.0) & (y <= float(h))
              & (x >= 1.0) & (x <= float(w)))
        return jnp.where(ok, 1.0, 0.0)

    m1 = interior_mask(pp_p, 0)        # (1, pp_p) conv1-output-lane mask
    m2 = interior_mask(lc_p, halo)     # (1, lc_p) conv2-output-lane mask

    def conv9(conv_idx, src_ref, length):
        # 3x3 conv as 9 accumulated (Cp,Cp)@(Cp,length) MXU dots, f32 acc.
        acc = None
        for t in range(9):
            off = (t // 3) * wp + (t % 3)
            d = jnp.dot(w_ref[conv_idx, t], src_ref[:, off: off + length],
                        preferred_element_type=jnp.float32)
            acc = d if acc is None else acc + d
        return acc

    def bn_scale_shift(acc, mask, gamma, beta):
        # Training-mode batch norm over masked lanes; two-pass variance.
        mean = jnp.sum(acc * mask, axis=1, keepdims=True) * inv_cnt
        d = (acc - mean) * mask
        var = jnp.sum(d * d, axis=1, keepdims=True) * inv_cnt
        scale = gamma * lax.rsqrt(var + EPS)
        shift = beta - mean * scale
        return scale, shift

    g1, b1, g2, b2 = bn_ref[0], bn_ref[1], bn_ref[2], bn_ref[3]   # (Cp, 1)

    # ---- conv1 + bn1 + relu ---------------------------------------------------
    acc1 = conv9(0, xext_ref, pp_p)                               # (Cp, pp_p)
    s1, sh1 = bn_scale_shift(acc1, m1, g1, b1)
    # *m1 zeroes halo/pad lanes == the implicit zero padding conv2 needs
    h1_ref[...] = jnp.maximum(acc1 * s1 + sh1, 0.0) * m1

    # ---- conv2 + bn2 + residual add + relu -------------------------------------
    acc2 = conv9(1, h1_ref, lc_p)                                 # (Cp, lc_p)
    s2, sh2 = bn_scale_shift(acc2, m2, g2, b2)
    res = xext_ref[:, 2 * halo: 2 * halo + lc_p]                  # residual slab
    o_ref[...] = jnp.maximum(acc2 * s2 + sh2 + res, 0.0)


def residual_block(x_nchw, w1, g1, b1, w2, g2, b2):
    """x_nchw: (N, C, H, W) f32.  w*: (C, C, 3, 3) PyTorch OIHW.  g*/b*: (C,)."""
    N, C, H, W = x_nchw.shape
    Hp, Wp = H + 2, W + 2
    HALO = Wp + 1
    Cp = ((C + 7) // 8) * 8                     # channels -> full sublane tile
    PP = N * Hp * Wp                            # flattened padded pixel count
    Lc = PP - 2 * HALO                          # lanes actually needed by conv2
    Lc_p = ((Lc + 127) // 128) * 128            # output extent, 128-multiple
    PP_p = ((max(PP, 2 * HALO + Lc_p) + 127) // 128) * 128   # h1 extent
    XL = ((PP_p + 2 * HALO + 127) // 128) * 128              # xext extent
    f32 = jnp.float32

    # ---- glue: NCHW -> (Cp, flat padded pixels), zero-extended ----------------
    xc = jnp.transpose(x_nchw.astype(f32), (1, 0, 2, 3))          # (C, N, H, W)
    xc = jnp.pad(xc, ((0, Cp - C), (0, 0), (1, 1), (1, 1)))       # (Cp, N, Hp, Wp)
    xflat = xc.reshape(Cp, PP)
    xext = jnp.zeros((Cp, XL), f32).at[:, HALO: HALO + PP].set(xflat)

    def prep_w(wt):   # OIHW -> (9, Cp, Cp): tap t = dy*3+dx, then (cout, cin)
        wpad = jnp.zeros((Cp, Cp, 3, 3), f32).at[:C, :C].set(wt.astype(f32))
        return jnp.transpose(wpad, (2, 3, 0, 1)).reshape(9, Cp, Cp)

    def prep_v(v):    # per-channel BN params on the sublane axis
        return jnp.zeros((Cp, 1), f32).at[:C, 0].set(v.astype(f32))

    wslab = jnp.stack([prep_w(w1), prep_w(w2)], axis=0)           # (2, 9, Cp, Cp)
    bnslab = jnp.stack([prep_v(g1), prep_v(b1),
                        prep_v(g2), prep_v(b2)], axis=0)          # (4, Cp, 1)

    kernel = functools.partial(
        _resblock_kernel, wp=Wp, pp_p=PP_p, lc_p=Lc_p, pp=PP,
        hp_wp=Hp * Wp, h=H, w=W, halo=HALO, inv_cnt=1.0 / (N * H * W))

    out_flat = pl.pallas_call(
        kernel,
        out_shape=jax.ShapeDtypeStruct((Cp, Lc_p), f32),
        in_specs=[pl.BlockSpec(memory_space=pltpu.MemorySpace.VMEM)] * 3,
        out_specs=pl.BlockSpec(memory_space=pltpu.MemorySpace.VMEM),
        scratch_shapes=[pltpu.VMEM((Cp, PP_p), f32)],
    )(xext, wslab, bnslab)

    # ---- glue: realign output lanes with flat pixel space, crop interior ------
    L_use = min(Lc_p, PP - HALO)
    out_aligned = jnp.zeros((Cp, PP), f32).at[
        :, HALO: HALO + L_use].set(out_flat[:, :L_use])
    out_img = out_aligned.reshape(Cp, N, Hp, Wp)[:C, :, 1:H + 1, 1:W + 1]
    return jnp.transpose(out_img, (1, 0, 2, 3))


def residual_block_ref(x, w1, g1, b1, w2, g2, b2):
    """Pure-JAX reference (NCHW), mirrors PyTorch training-mode forward."""
    def conv(x, w):
        return lax.conv_general_dilated(
            x, w, window_strides=(1, 1), padding=((1, 1), (1, 1)),
            dimension_numbers=('NCHW', 'OIHW', 'NCHW'))

    def bn(x, g, b):
        mean = x.mean(axis=(0, 2, 3), keepdims=True)
        var = ((x - mean) ** 2).mean(axis=(0, 2, 3), keepdims=True)
        return ((x - mean) * lax.rsqrt(var + EPS)
                * g.reshape(1, -1, 1, 1) + b.reshape(1, -1, 1, 1))

    h = jnp.maximum(bn(conv(x, w1), g1, b1), 0.0)
    h = bn(conv(h, w2), g2, b2)
    return jnp.maximum(h + x, 0.0)


if __name__ == "__main__":
    key = jax.random.PRNGKey(0)
    k_x, k_w1, k_w2, k_g1, k_b1, k_g2, k_b2 = jax.random.split(key, 7)

    N, C, H, W = 2, 4, 16, 16
    x = jax.random.normal(k_x, (N, C, H, W), dtype=jnp.float32)

    # Deterministic synthetic parameters (shapes from nn.Conv2d / nn.BatchNorm2d).
    w1 = 0.1 * jax.random.normal(k_w1, (C, C, 3, 3), dtype=jnp.float32)
    w2 = 0.1 * jax.random.normal(k_w2, (C, C, 3, 3), dtype=jnp.float32)
    g1 = 1.0 + 0.1 * jax.random.normal(k_g1, (C,), dtype=jnp.float32)
    b1 = 0.1 * jax.random.normal(k_b1, (C,), dtype=jnp.float32)
    g2 = 1.0 + 0.1 * jax.random.normal(k_g2, (C,), dtype=jnp.float32)
    b2 = 0.1 * jax.random.normal(k_b2, (C,), dtype=jnp.float32)

    out = residual_block(x, w1, g1, b1, w2, g2, b2)
    out = jax.block_until_ready(out)

    ref = residual_block_ref(x, w1, g1, b1, w2, g2, b2)
    assert out.shape == (N, C, H, W)
    assert jnp.allclose(out, ref, atol=1e-3, rtol=1e-3), \
        f"max abs diff {jnp.max(jnp.abs(out - ref))}"

    print("KERNEL_OK")
</pallas_src>

<mosaic_0001>
module attributes {stable_mosaic.version = 11 : i64} {
  func.func @_resblock_kernel(%arg0: memref<8x896xf32, #tpu.memory_space<vmem>>, %arg1: memref<2x9x8x8xf32, #tpu.memory_space<vmem>>, %arg2: memref<4x8x1xf32, #tpu.memory_space<vmem>>, %arg3: memref<8x640xf32, #tpu.memory_space<vmem>>, %arg4: memref<8x768xf32, #tpu.memory_space<vmem>>) attributes {dimension_semantics = [], scalar_prefetch = 0 : i64, scratch_operands = 1 : i64, tpu.core_type = #tpu.core_type<tc>} {
    %0 = tpu.iota {dimensions = array<i32: 1>} : vector<1x768xi32>
    %1 = arith.sitofp %0 : vector<1x768xi32> to vector<1x768xf32>
    %cst = arith.constant 0.000000e+00 : f32
    %2 = vector.broadcast %cst : f32 to vector<1x768xf32>
    %3 = arith.addf %1, %2 : vector<1x768xf32>
    %cst_0 = arith.constant 5.000000e-01 : f32
    %4 = vector.broadcast %cst_0 : f32 to vector<1x768xf32>
    %5 = arith.addf %3, %4 : vector<1x768xf32>
    %cst_1 = arith.constant 3.240000e+02 : f32
    %6 = vector.broadcast %cst_1 : f32 to vector<1x768xf32>
    %7 = arith.divf %5, %6 : vector<1x768xf32>
    %8 = math.floor %7 : vector<1x768xf32>
    %cst_2 = arith.constant 3.240000e+02 : f32
    %9 = vector.broadcast %cst_2 : f32 to vector<1x768xf32>
    %10 = arith.mulf %8, %9 : vector<1x768xf32>
    %11 = arith.subf %3, %10 : vector<1x768xf32>
    %cst_3 = arith.constant 5.000000e-01 : f32
    %12 = vector.broadcast %cst_3 : f32 to vector<1x768xf32>
    %13 = arith.addf %11, %12 : vector<1x768xf32>
    %cst_4 = arith.constant 1.800000e+01 : f32
    %14 = vector.broadcast %cst_4 : f32 to vector<1x768xf32>
    %15 = arith.divf %13, %14 : vector<1x768xf32>
    %16 = math.floor %15 : vector<1x768xf32>
    %cst_5 = arith.constant 1.800000e+01 : f32
    %17 = vector.broadcast %cst_5 : f32 to vector<1x768xf32>
    %18 = arith.mulf %16, %17 : vector<1x768xf32>
    %19 = arith.subf %11, %18 : vector<1x768xf32>
    %cst_6 = arith.constant 6.480000e+02 : f32
    %20 = vector.broadcast %cst_6 : f32 to vector<1x768xf32>
    %21 = arith.cmpf olt, %3, %20 : vector<1x768xf32>
    %cst_7 = arith.constant 1.000000e+00 : f32
    %22 = vector.broadcast %cst_7 : f32 to vector<1x768xf32>
    %23 = arith.cmpf oge, %16, %22 : vector<1x768xf32>
    %24 = arith.andi %21, %23 : vector<1x768xi1>
    %cst_8 = arith.constant 1.600000e+01 : f32
    %25 = vector.broadcast %cst_8 : f32 to vector<1x768xf32>
    %26 = arith.cmpf ole, %16, %25 : vector<1x768xf32>
    %27 = arith.andi %24, %26 : vector<1x768xi1>
    %cst_9 = arith.constant 1.000000e+00 : f32
    %28 = vector.broadcast %cst_9 : f32 to vector<1x768xf32>
    %29 = arith.cmpf oge, %19, %28 : vector<1x768xf32>
    %30 = arith.andi %27, %29 : vector<1x768xi1>
    %cst_10 = arith.constant 1.600000e+01 : f32
    %31 = vector.broadcast %cst_10 : f32 to vector<1x768xf32>
    %32 = arith.cmpf ole, %19, %31 : vector<1x768xf32>
    %33 = arith.andi %30, %32 : vector<1x768xi1>
    %cst_11 = arith.constant 1.000000e+00 : f32
    %cst_12 = arith.constant 0.000000e+00 : f32
    %34 = vector.broadcast %cst_11 : f32 to vector<1x768xf32>
    %35 = vector.broadcast %cst_12 : f32 to vector<1x768xf32>
    %36 = arith.select %33, %34, %35 : vector<1x768xi1>, vector<1x768xf32>
    %37 = tpu.iota {dimensions = array<i32: 1>} : vector<1x640xi32>
    %38 = arith.sitofp %37 : vector<1x640xi32> to vector<1x640xf32>
    %cst_13 = arith.constant 1.900000e+01 : f32
    %39 = vector.broadcast %cst_13 : f32 to vector<1x640xf32>
    %40 = arith.addf %38, %39 : vector<1x640xf32>
    %cst_14 = arith.constant 5.000000e-01 : f32
    %41 = vector.broadcast %cst_14 : f32 to vector<1x640xf32>
    %42 = arith.addf %40, %41 : vector<1x640xf32>
    %cst_15 = arith.constant 3.240000e+02 : f32
    %43 = vector.broadcast %cst_15 : f32 to vector<1x640xf32>
    %44 = arith.divf %42, %43 : vector<1x640xf32>
    %45 = math.floor %44 : vector<1x640xf32>
    %cst_16 = arith.constant 3.240000e+02 : f32
    %46 = vector.broadcast %cst_16 : f32 to vector<1x640xf32>
    %47 = arith.mulf %45, %46 : vector<1x640xf32>
    %48 = arith.subf %40, %47 : vector<1x640xf32>
    %cst_17 = arith.constant 5.000000e-01 : f32
    %49 = vector.broadcast %cst_17 : f32 to vector<1x640xf32>
    %50 = arith.addf %48, %49 : vector<1x640xf32>
    %cst_18 = arith.constant 1.800000e+01 : f32
    %51 = vector.broadcast %cst_18 : f32 to vector<1x640xf32>
    %52 = arith.divf %50, %51 : vector<1x640xf32>
    %53 = math.floor %52 : vector<1x640xf32>
    %cst_19 = arith.constant 1.800000e+01 : f32
    %54 = vector.broadcast %cst_19 : f32 to vector<1x640xf32>
    %55 = arith.mulf %53, %54 : vector<1x640xf32>
    %56 = arith.subf %48, %55 : vector<1x640xf32>
    %cst_20 = arith.constant 6.480000e+02 : f32
    %57 = vector.broadcast %cst_20 : f32 to vector<1x640xf32>
    %58 = arith.cmpf olt, %40, %57 : vector<1x640xf32>
    %cst_21 = arith.constant 1.000000e+00 : f32
    %59 = vector.broadcast %cst_21 : f32 to vector<1x640xf32>
    %60 = arith.cmpf oge, %53, %59 : vector<1x640xf32>
    %61 = arith.andi %58, %60 : vector<1x640xi1>
    %cst_22 = arith.constant 1.600000e+01 : f32
    %62 = vector.broadcast %cst_22 : f32 to vector<1x640xf32>
    %63 = arith.cmpf ole, %53, %62 : vector<1x640xf32>
    %64 = arith.andi %61, %63 : vector<1x640xi1>
    %cst_23 = arith.constant 1.000000e+00 : f32
    %65 = vector.broadcast %cst_23 : f32 to vector<1x640xf32>
    %66 = arith.cmpf oge, %56, %65 : vector<1x640xf32>
    %67 = arith.andi %64, %66 : vector<1x640xi1>
    %cst_24 = arith.constant 1.600000e+01 : f32
    %68 = vector.broadcast %cst_24 : f32 to vector<1x640xf32>
    %69 = arith.cmpf ole, %56, %68 : vector<1x640xf32>
    %70 = arith.andi %67, %69 : vector<1x640xi1>
    %cst_25 = arith.constant 1.000000e+00 : f32
    %cst_26 = arith.constant 0.000000e+00 : f32
    %71 = vector.broadcast %cst_25 : f32 to vector<1x640xf32>
    %72 = vector.broadcast %cst_26 : f32 to vector<1x640xf32>
    %73 = arith.select %70, %71, %72 : vector<1x640xi1>, vector<1x640xf32>
    %c0 = arith.constant 0 : index
    %c0_27 = arith.constant 0 : index
    %c0_28 = arith.constant 0 : index
    %74 = vector.load %arg2[%c0, %c0_27, %c0_28] : memref<4x8x1xf32, #tpu.memory_space<vmem>>, vector<1x8x1xf32>
    %75 = vector.shape_cast %74 : vector<1x8x1xf32> to vector<8x1xf32>
    %c1 = arith.constant 1 : index
    %c0_29 = arith.constant 0 : index
    %c0_30 = arith.constant 0 : index
    %76 = vector.load %arg2[%c1, %c0_29, %c0_30] : memref<4x8x1xf32, #tpu.memory_space<vmem>>, vector<1x8x1xf32>
    %77 = vector.shape_cast %76 : vector<1x8x1xf32> to vector<8x1xf32>
    %c2 = arith.constant 2 : index
    %c0_31 = arith.constant 0 : index
    %c0_32 = arith.constant 0 : index
    %78 = vector.load %arg2[%c2, %c0_31, %c0_32] : memref<4x8x1xf32, #tpu.memory_space<vmem>>, vector<1x8x1xf32>
    %79 = vector.shape_cast %78 : vector<1x8x1xf32> to vector<8x1xf32>
    %c3 = arith.constant 3 : index
    %c0_33 = arith.constant 0 : index
    %c0_34 = arith.constant 0 : index
    %80 = vector.load %arg2[%c3, %c0_33, %c0_34] : memref<4x8x1xf32, #tpu.memory_space<vmem>>, vector<1x8x1xf32>
    %81 = vector.shape_cast %80 : vector<1x8x1xf32> to vector<8x1xf32>
    %c0_35 = arith.constant 0 : index
    %c0_36 = arith.constant 0 : index
    %c0_37 = arith.constant 0 : index
    %c0_38 = arith.constant 0 : index
    %82 = vector.load %arg1[%c0_35, %c0_36, %c0_37, %c0_38] : memref<2x9x8x8xf32, #tpu.memory_space<vmem>>, vector<1x1x8x8xf32>
    %83 = vector.shape_cast %82 : vector<1x1x8x8xf32> to vector<8x8xf32>
    %c0_39 = arith.constant 0 : index
    %c0_40 = arith.constant 0 : index
    %84 = vector.load %arg0[%c0_39, %c0_40] : memref<8x896xf32, #tpu.memory_space<vmem>>, vector<8x768xf32>
    %cst_41 = arith.constant dense<0.000000e+00> : vector<8x768xf32>
    %85 = tpu.matmul %83, %84, %cst_41 {dimension_numbers = #tpu.dot_dimension_numbers<[1], [0], [0], [1], [0, 0, 1, 1], [], []>} : vector<8x8xf32>, vector<8x768xf32>, vector<8x768xf32> -> vector<8x768xf32>
    %c0_42 = arith.constant 0 : index
    %c1_43 = arith.constant 1 : index
    %c0_44 = arith.constant 0 : index
    %c0_45 = arith.constant 0 : index
    %86 = vector.load %arg1[%c0_42, %c1_43, %c0_44, %c0_45] : memref<2x9x8x8xf32, #tpu.memory_space<vmem>>, vector<1x1x8x8xf32>
    %87 = vector.shape_cast %86 : vector<1x1x8x8xf32> to vector<8x8xf32>
    %c0_46 = arith.constant 0 : index
    %c1_47 = arith.constant 1 : index
    %88 = vector.load %arg0[%c0_46, %c1_47] : memref<8x896xf32, #tpu.memory_space<vmem>>, vector<8x768xf32>
    %cst_48 = arith.constant dense<0.000000e+00> : vector<8x768xf32>
    %89 = tpu.matmul %87, %88, %cst_48 {dimension_numbers = #tpu.dot_dimension_numbers<[1], [0], [0], [1], [0, 0, 1, 1], [], []>} : vector<8x8xf32>, vector<8x768xf32>, vector<8x768xf32> -> vector<8x768xf32>
    %90 = arith.addf %85, %89 : vector<8x768xf32>
    %c0_49 = arith.constant 0 : index
    %c2_50 = arith.constant 2 : index
    %c0_51 = arith.constant 0 : index
    %c0_52 = arith.constant 0 : index
    %91 = vector.load %arg1[%c0_49, %c2_50, %c0_51, %c0_52] : memref<2x9x8x8xf32, #tpu.memory_space<vmem>>, vector<1x1x8x8xf32>
    %92 = vector.shape_cast %91 : vector<1x1x8x8xf32> to vector<8x8xf32>
    %c0_53 = arith.constant 0 : index
    %c2_54 = arith.constant 2 : index
    %93 = vector.load %arg0[%c0_53, %c2_54] : memref<8x896xf32, #tpu.memory_space<vmem>>, vector<8x768xf32>
    %cst_55 = arith.constant dense<0.000000e+00> : vector<8x768xf32>
    %94 = tpu.matmul %92, %93, %cst_55 {dimension_numbers = #tpu.dot_dimension_numbers<[1], [0], [0], [1], [0, 0, 1, 1], [], []>} : vector<8x8xf32>, vector<8x768xf32>, vector<8x768xf32> -> vector<8x768xf32>
    %95 = arith.addf %90, %94 : vector<8x768xf32>
    %c0_56 = arith.constant 0 : index
    %c3_57 = arith.constant 3 : index
    %c0_58 = arith.constant 0 : index
    %c0_59 = arith.constant 0 : index
    %96 = vector.load %arg1[%c0_56, %c3_57, %c0_58, %c0_59] : memref<2x9x8x8xf32, #tpu.memory_space<vmem>>, vector<1x1x8x8xf32>
    %97 = vector.shape_cast %96 : vector<1x1x8x8xf32> to vector<8x8xf32>
    %c0_60 = arith.constant 0 : index
    %c18 = arith.constant 18 : index
    %98 = vector.load %arg0[%c0_60, %c18] : memref<8x896xf32, #tpu.memory_space<vmem>>, vector<8x768xf32>
    %cst_61 = arith.constant dense<0.000000e+00> : vector<8x768xf32>
    %99 = tpu.matmul %97, %98, %cst_61 {dimension_numbers = #tpu.dot_dimension_numbers<[1], [0], [0], [1], [0, 0, 1, 1], [], []>} : vector<8x8xf32>, vector<8x768xf32>, vector<8x768xf32> -> vector<8x768xf32>
    %100 = arith.addf %95, %99 : vector<8x768xf32>
    %c0_62 = arith.constant 0 : index
    %c4 = arith.constant 4 : index
    %c0_63 = arith.constant 0 : index
    %c0_64 = arith.constant 0 : index
    %101 = vector.load %arg1[%c0_62, %c4, %c0_63, %c0_64] : memref<2x9x8x8xf32, #tpu.memory_space<vmem>>, vector<1x1x8x8xf32>
    %102 = vector.shape_cast %101 : vector<1x1x8x8xf32> to vector<8x8xf32>
    %c0_65 = arith.constant 0 : index
    %c19 = arith.constant 19 : index
    %103 = vector.load %arg0[%c0_65, %c19] : memref<8x896xf32, #tpu.memory_space<vmem>>, vector<8x768xf32>
    %cst_66 = arith.constant dense<0.000000e+00> : vector<8x768xf32>
    %104 = tpu.matmul %102, %103, %cst_66 {dimension_numbers = #tpu.dot_dimension_numbers<[1], [0], [0], [1], [0, 0, 1, 1], [], []>} : vector<8x8xf32>, vector<8x768xf32>, vector<8x768xf32> -> vector<8x768xf32>
    %105 = arith.addf %100, %104 : vector<8x768xf32>
    %c0_67 = arith.constant 0 : index
    %c5 = arith.constant 5 : index
    %c0_68 = arith.constant 0 : index
    %c0_69 = arith.constant 0 : index
    %106 = vector.load %arg1[%c0_67, %c5, %c0_68, %c0_69] : memref<2x9x8x8xf32, #tpu.memory_space<vmem>>, vector<1x1x8x8xf32>
    %107 = vector.shape_cast %106 : vector<1x1x8x8xf32> to vector<8x8xf32>
    %c0_70 = arith.constant 0 : index
    %c20 = arith.constant 20 : index
    %108 = vector.load %arg0[%c0_70, %c20] : memref<8x896xf32, #tpu.memory_space<vmem>>, vector<8x768xf32>
    %cst_71 = arith.constant dense<0.000000e+00> : vector<8x768xf32>
    %109 = tpu.matmul %107, %108, %cst_71 {dimension_numbers = #tpu.dot_dimension_numbers<[1], [0], [0], [1], [0, 0, 1, 1], [], []>} : vector<8x8xf32>, vector<8x768xf32>, vector<8x768xf32> -> vector<8x768xf32>
    %110 = arith.addf %105, %109 : vector<8x768xf32>
    %c0_72 = arith.constant 0 : index
    %c6 = arith.constant 6 : index
    %c0_73 = arith.constant 0 : index
    %c0_74 = arith.constant 0 : index
    %111 = vector.load %arg1[%c0_72, %c6, %c0_73, %c0_74] : memref<2x9x8x8xf32, #tpu.memory_space<vmem>>, vector<1x1x8x8xf32>
    %112 = vector.shape_cast %111 : vector<1x1x8x8xf32> to vector<8x8xf32>
    %c0_75 = arith.constant 0 : index
    %c36 = arith.constant 36 : index
    %113 = vector.load %arg0[%c0_75, %c36] : memref<8x896xf32, #tpu.memory_space<vmem>>, vector<8x768xf32>
    %cst_76 = arith.constant dense<0.000000e+00> : vector<8x768xf32>
    %114 = tpu.matmul %112, %113, %cst_76 {dimension_numbers = #tpu.dot_dimension_numbers<[1], [0], [0], [1], [0, 0, 1, 1], [], []>} : vector<8x8xf32>, vector<8x768xf32>, vector<8x768xf32> -> vector<8x768xf32>
    %115 = arith.addf %110, %114 : vector<8x768xf32>
    %c0_77 = arith.constant 0 : index
    %c7 = arith.constant 7 : index
    %c0_78 = arith.constant 0 : index
    %c0_79 = arith.constant 0 : index
    %116 = vector.load %arg1[%c0_77, %c7, %c0_78, %c0_79] : memref<2x9x8x8xf32, #tpu.memory_space<vmem>>, vector<1x1x8x8xf32>
    %117 = vector.shape_cast %116 : vector<1x1x8x8xf32> to vector<8x8xf32>
    %c0_80 = arith.constant 0 : index
    %c37 = arith.constant 37 : index
    %118 = vector.load %arg0[%c0_80, %c37] : memref<8x896xf32, #tpu.memory_space<vmem>>, vector<8x768xf32>
    %cst_81 = arith.constant dense<0.000000e+00> : vector<8x768xf32>
    %119 = tpu.matmul %117, %118, %cst_81 {dimension_numbers = #tpu.dot_dimension_numbers<[1], [0], [0], [1], [0, 0, 1, 1], [], []>} : vector<8x8xf32>, vector<8x768xf32>, vector<8x768xf32> -> vector<8x768xf32>
    %120 = arith.addf %115, %119 : vector<8x768xf32>
    %c0_82 = arith.constant 0 : index
    %c8 = arith.constant 8 : index
    %c0_83 = arith.constant 0 : index
    %c0_84 = arith.constant 0 : index
    %121 = vector.load %arg1[%c0_82, %c8, %c0_83, %c0_84] : memref<2x9x8x8xf32, #tpu.memory_space<vmem>>, vector<1x1x8x8xf32>
    %122 = vector.shape_cast %121 : vector<1x1x8x8xf32> to vector<8x8xf32>
    %c0_85 = arith.constant 0 : index
    %c38 = arith.constant 38 : index
    %123 = vector.load %arg0[%c0_85, %c38] : memref<8x896xf32, #tpu.memory_space<vmem>>, vector<8x768xf32>
    %cst_86 = arith.constant dense<0.000000e+00> : vector<8x768xf32>
    %124 = tpu.matmul %122, %123, %cst_86 {dimension_numbers = #tpu.dot_dimension_numbers<[1], [0], [0], [1], [0, 0, 1, 1], [], []>} : vector<8x8xf32>, vector<8x768xf32>, vector<8x768xf32> -> vector<8x768xf32>
    %125 = arith.addf %120, %124 : vector<8x768xf32>
    %126 = vector.broadcast %36 : vector<1x768xf32> to vector<8x768xf32>
    %127 = arith.mulf %125, %126 : vector<8x768xf32>
    %cst_87 = arith.constant dense<0.000000e+00> : vector<8xf32>
    %128 = vector.multi_reduction <add>, %127, %cst_87 [1] : vector<8x768xf32> to vector<8xf32>
    %129 = vector.shape_cast %128 : vector<8xf32> to vector<8x1xf32>
    %cst_88 = arith.constant 0.001953125 : f32
    %130 = vector.broadcast %cst_88 : f32 to vector<8x1xf32>
    %131 = arith.mulf %129, %130 : vector<8x1xf32>
    %132 = vector.broadcast %131 : vector<8x1xf32> to vector<8x768xf32>
    %133 = arith.subf %125, %132 : vector<8x768xf32>
    %134 = vector.broadcast %36 : vector<1x768xf32> to vector<8x768xf32>
    %135 = arith.mulf %133, %134 : vector<8x768xf32>
    %136 = arith.mulf %135, %135 : vector<8x768xf32>
    %cst_89 = arith.constant dense<0.000000e+00> : vector<8xf32>
    %137 = vector.multi_reduction <add>, %136, %cst_89 [1] : vector<8x768xf32> to vector<8xf32>
    %138 = vector.shape_cast %137 : vector<8xf32> to vector<8x1xf32>
    %cst_90 = arith.constant 0.001953125 : f32
    %139 = vector.broadcast %cst_90 : f32 to vector<8x1xf32>
    %140 = arith.mulf %138, %139 : vector<8x1xf32>
    %cst_91 = arith.constant 9.99999974E-6 : f32
    %141 = vector.broadcast %cst_91 : f32 to vector<8x1xf32>
    %142 = arith.addf %140, %141 : vector<8x1xf32>
    %143 = math.rsqrt %142 : vector<8x1xf32>
    %144 = arith.mulf %75, %143 : vector<8x1xf32>
    %145 = arith.mulf %131, %144 : vector<8x1xf32>
    %146 = arith.subf %77, %145 : vector<8x1xf32>
    %147 = vector.broadcast %144 : vector<8x1xf32> to vector<8x768xf32>
    %148 = arith.mulf %125, %147 : vector<8x768xf32>
    %149 = vector.broadcast %146 : vector<8x1xf32> to vector<8x768xf32>
    %150 = arith.addf %148, %149 : vector<8x768xf32>
    %cst_92 = arith.constant 0.000000e+00 : f32
    %151 = vector.broadcast %cst_92 : f32 to vector<8x768xf32>
    %152 = arith.maximumf %150, %151 : vector<8x768xf32>
    %153 = vector.broadcast %36 : vector<1x768xf32> to vector<8x768xf32>
    %154 = arith.mulf %152, %153 : vector<8x768xf32>
    %c0_93 = arith.constant 0 : index
    %c0_94 = arith.constant 0 : index
    %155 = vector.load %arg4[%c0_93, %c0_94] : memref<8x768xf32, #tpu.memory_space<vmem>>, vector<8x768xf32>
    tpu.vector_store %arg4[%c0_93, %c0_94], %154 {strides = array<i32>} : memref<8x768xf32, #tpu.memory_space<vmem>>, vector<8x768xf32>,
    %c1_95 = arith.constant 1 : index
    %c0_96 = arith.constant 0 : index
    %c0_97 = arith.constant 0 : index
    %c0_98 = arith.constant 0 : index
    %156 = vector.load %arg1[%c1_95, %c0_96, %c0_97, %c0_98] : memref<2x9x8x8xf32, #tpu.memory_space<vmem>>, vector<1x1x8x8xf32>
    %157 = vector.shape_cast %156 : vector<1x1x8x8xf32> to vector<8x8xf32>
    %c0_99 = arith.constant 0 : index
    %c0_100 = arith.constant 0 : index
    %158 = vector.load %arg4[%c0_99, %c0_100] : memref<8x768xf32, #tpu.memory_space<vmem>>, vector<8x640xf32>
    %cst_101 = arith.constant dense<0.000000e+00> : vector<8x640xf32>
    %159 = tpu.matmul %157, %158, %cst_101 {dimension_numbers = #tpu.dot_dimension_numbers<[1], [0], [0], [1], [0, 0, 1, 1], [], []>} : vector<8x8xf32>, vector<8x640xf32>, vector<8x640xf32> -> vector<8x640xf32>
    %c1_102 = arith.constant 1 : index
    %c1_103 = arith.constant 1 : index
    %c0_104 = arith.constant 0 : index
    %c0_105 = arith.constant 0 : index
    %160 = vector.load %arg1[%c1_102, %c1_103, %c0_104, %c0_105] : memref<2x9x8x8xf32, #tpu.memory_space<vmem>>, vector<1x1x8x8xf32>
    %161 = vector.shape_cast %160 : vector<1x1x8x8xf32> to vector<8x8xf32>
    %c0_106 = arith.constant 0 : index
    %c1_107 = arith.constant 1 : index
    %162 = vector.load %arg4[%c0_106, %c1_107] : memref<8x768xf32, #tpu.memory_space<vmem>>, vector<8x640xf32>
    %cst_108 = arith.constant dense<0.000000e+00> : vector<8x640xf32>
    %163 = tpu.matmul %161, %162, %cst_108 {dimension_numbers = #tpu.dot_dimension_numbers<[1], [0], [0], [1], [0, 0, 1, 1], [], []>} : vector<8x8xf32>, vector<8x640xf32>, vector<8x640xf32> -> vector<8x640xf32>
    %164 = arith.addf %159, %163 : vector<8x640xf32>
    %c1_109 = arith.constant 1 : index
    %c2_110 = arith.constant 2 : index
    %c0_111 = arith.constant 0 : index
    %c0_112 = arith.constant 0 : index
    %165 = vector.load %arg1[%c1_109, %c2_110, %c0_111, %c0_112] : memref<2x9x8x8xf32, #tpu.memory_space<vmem>>, vector<1x1x8x8xf32>
    %166 = vector.shape_cast %165 : vector<1x1x8x8xf32> to vector<8x8xf32>
    %c0_113 = arith.constant 0 : index
    %c2_114 = arith.constant 2 : index
    %167 = vector.load %arg4[%c0_113, %c2_114] : memref<8x768xf32, #tpu.memory_space<vmem>>, vector<8x640xf32>
    %cst_115 = arith.constant dense<0.000000e+00> : vector<8x640xf32>
    %168 = tpu.matmul %166, %167, %cst_115 {dimension_numbers = #tpu.dot_dimension_numbers<[1], [0], [0], [1], [0, 0, 1, 1], [], []>} : vector<8x8xf32>, vector<8x640xf32>, vector<8x640xf32> -> vector<8x640xf32>
    %169 = arith.addf %164, %168 : vector<8x640xf32>
    %c1_116 = arith.constant 1 : index
    %c3_117 = arith.constant 3 : index
    %c0_118 = arith.constant 0 : index
    %c0_119 = arith.constant 0 : index
    %170 = vector.load %arg1[%c1_116, %c3_117, %c0_118, %c0_119] : memref<2x9x8x8xf32, #tpu.memory_space<vmem>>, vector<1x1x8x8xf32>
    %171 = vector.shape_cast %170 : vector<1x1x8x8xf32> to vector<8x8xf32>
    %c0_120 = arith.constant 0 : index
    %c18_121 = arith.constant 18 : index
    %172 = vector.load %arg4[%c0_120, %c18_121] : memref<8x768xf32, #tpu.memory_space<vmem>>, vector<8x640xf32>
    %cst_122 = arith.constant dense<0.000000e+00> : vector<8x640xf32>
    %173 = tpu.matmul %171, %172, %cst_122 {dimension_numbers = #tpu.dot_dimension_numbers<[1], [0], [0], [1], [0, 0, 1, 1], [], []>} : vector<8x8xf32>, vector<8x640xf32>, vector<8x640xf32> -> vector<8x640xf32>
    %174 = arith.addf %169, %173 : vector<8x640xf32>
    %c1_123 = arith.constant 1 : index
    %c4_124 = arith.constant 4 : index
    %c0_125 = arith.constant 0 : index
    %c0_126 = arith.constant 0 : index
    %175 = vector.load %arg1[%c1_123, %c4_124, %c0_125, %c0_126] : memref<2x9x8x8xf32, #tpu.memory_space<vmem>>, vector<1x1x8x8xf32>
    %176 = vector.shape_cast %175 : vector<1x1x8x8xf32> to vector<8x8xf32>
    %c0_127 = arith.constant 0 : index
    %c19_128 = arith.constant 19 : index
    %177 = vector.load %arg4[%c0_127, %c19_128] : memref<8x768xf32, #tpu.memory_space<vmem>>, vector<8x640xf32>
    %cst_129 = arith.constant dense<0.000000e+00> : vector<8x640xf32>
    %178 = tpu.matmul %176, %177, %cst_129 {dimension_numbers = #tpu.dot_dimension_numbers<[1], [0], [0], [1], [0, 0, 1, 1], [], []>} : vector<8x8xf32>, vector<8x640xf32>, vector<8x640xf32> -> vector<8x640xf32>
    %179 = arith.addf %174, %178 : vector<8x640xf32>
    %c1_130 = arith.constant 1 : index
    %c5_131 = arith.constant 5 : index
    %c0_132 = arith.constant 0 : index
    %c0_133 = arith.constant 0 : index
    %180 = vector.load %arg1[%c1_130, %c5_131, %c0_132, %c0_133] : memref<2x9x8x8xf32, #tpu.memory_space<vmem>>, vector<1x1x8x8xf32>
    %181 = vector.shape_cast %180 : vector<1x1x8x8xf32> to vector<8x8xf32>
    %c0_134 = arith.constant 0 : index
    %c20_135 = arith.constant 20 : index
    %182 = vector.load %arg4[%c0_134, %c20_135] : memref<8x768xf32, #tpu.memory_space<vmem>>, vector<8x640xf32>
    %cst_136 = arith.constant dense<0.000000e+00> : vector<8x640xf32>
    %183 = tpu.matmul %181, %182, %cst_136 {dimension_numbers = #tpu.dot_dimension_numbers<[1], [0], [0], [1], [0, 0, 1, 1], [], []>} : vector<8x8xf32>, vector<8x640xf32>, vector<8x640xf32> -> vector<8x640xf32>
    %184 = arith.addf %179, %183 : vector<8x640xf32>
    %c1_137 = arith.constant 1 : index
    %c6_138 = arith.constant 6 : index
    %c0_139 = arith.constant 0 : index
    %c0_140 = arith.constant 0 : index
    %185 = vector.load %arg1[%c1_137, %c6_138, %c0_139, %c0_140] : memref<2x9x8x8xf32, #tpu.memory_space<vmem>>, vector<1x1x8x8xf32>
    %186 = vector.shape_cast %185 : vector<1x1x8x8xf32> to vector<8x8xf32>
    %c0_141 = arith.constant 0 : index
    %c36_142 = arith.constant 36 : index
    %187 = vector.load %arg4[%c0_141, %c36_142] : memref<8x768xf32, #tpu.memory_space<vmem>>, vector<8x640xf32>
    %cst_143 = arith.constant dense<0.000000e+00> : vector<8x640xf32>
    %188 = tpu.matmul %186, %187, %cst_143 {dimension_numbers = #tpu.dot_dimension_numbers<[1], [0], [0], [1], [0, 0, 1, 1], [], []>} : vector<8x8xf32>, vector<8x640xf32>, vector<8x640xf32> -> vector<8x640xf32>
    %189 = arith.addf %184, %188 : vector<8x640xf32>
    %c1_144 = arith.constant 1 : index
    %c7_145 = arith.constant 7 : index
    %c0_146 = arith.constant 0 : index
    %c0_147 = arith.constant 0 : index
    %190 = vector.load %arg1[%c1_144, %c7_145, %c0_146, %c0_147] : memref<2x9x8x8xf32, #tpu.memory_space<vmem>>, vector<1x1x8x8xf32>
    %191 = vector.shape_cast %190 : vector<1x1x8x8xf32> to vector<8x8xf32>
    %c0_148 = arith.constant 0 : index
    %c37_149 = arith.constant 37 : index
    %192 = vector.load %arg4[%c0_148, %c37_149] : memref<8x768xf32, #tpu.memory_space<vmem>>, vector<8x640xf32>
    %cst_150 = arith.constant dense<0.000000e+00> : vector<8x640xf32>
    %193 = tpu.matmul %191, %192, %cst_150 {dimension_numbers = #tpu.dot_dimension_numbers<[1], [0], [0], [1], [0, 0, 1, 1], [], []>} : vector<8x8xf32>, vector<8x640xf32>, vector<8x640xf32> -> vector<8x640xf32>
    %194 = arith.addf %189, %193 : vector<8x640xf32>
    %c1_151 = arith.constant 1 : index
    %c8_152 = arith.constant 8 : index
    %c0_153 = arith.constant 0 : index
    %c0_154 = arith.constant 0 : index
    %195 = vector.load %arg1[%c1_151, %c8_152, %c0_153, %c0_154] : memref<2x9x8x8xf32, #tpu.memory_space<vmem>>, vector<1x1x8x8xf32>
    %196 = vector.shape_cast %195 : vector<1x1x8x8xf32> to vector<8x8xf32>
    %c0_155 = arith.constant 0 : index
    %c38_156 = arith.constant 38 : index
    %197 = vector.load %arg4[%c0_155, %c38_156] : memref<8x768xf32, #tpu.memory_space<vmem>>, vector<8x640xf32>
    %cst_157 = arith.constant dense<0.000000e+00> : vector<8x640xf32>
    %198 = tpu.matmul %196, %197, %cst_157 {dimension_numbers = #tpu.dot_dimension_numbers<[1], [0], [0], [1], [0, 0, 1, 1], [], []>} : vector<8x8xf32>, vector<8x640xf32>, vector<8x640xf32> -> vector<8x640xf32>
    %199 = arith.addf %194, %198 : vector<8x640xf32>
    %200 = vector.broadcast %73 : vector<1x640xf32> to vector<8x640xf32>
    %201 = arith.mulf %199, %200 : vector<8x640xf32>
    %cst_158 = arith.constant dense<0.000000e+00> : vector<8xf32>
    %202 = vector.multi_reduction <add>, %201, %cst_158 [1] : vector<8x640xf32> to vector<8xf32>
    %203 = vector.shape_cast %202 : vector<8xf32> to vector<8x1xf32>
    %cst_159 = arith.constant 0.001953125 : f32
    %204 = vector.broadcast %cst_159 : f32 to vector<8x1xf32>
    %205 = arith.mulf %203, %204 : vector<8x1xf32>
    %206 = vector.broadcast %205 : vector<8x1xf32> to vector<8x640xf32>
    %207 = arith.subf %199, %206 : vector<8x640xf32>
    %208 = vector.broadcast %73 : vector<1x640xf32> to vector<8x640xf32>
    %209 = arith.mulf %207, %208 : vector<8x640xf32>
    %210 = arith.mulf %209, %209 : vector<8x640xf32>
    %cst_160 = arith.constant dense<0.000000e+00> : vector<8xf32>
    %211 = vector.multi_reduction <add>, %210, %cst_160 [1] : vector<8x640xf32> to vector<8xf32>
    %212 = vector.shape_cast %211 : vector<8xf32> to vector<8x1xf32>
    %cst_161 = arith.constant 0.001953125 : f32
    %213 = vector.broadcast %cst_161 : f32 to vector<8x1xf32>
    %214 = arith.mulf %212, %213 : vector<8x1xf32>
    %cst_162 = arith.constant 9.99999974E-6 : f32
    %215 = vector.broadcast %cst_162 : f32 to vector<8x1xf32>
    %216 = arith.addf %214, %215 : vector<8x1xf32>
    %217 = math.rsqrt %216 : vector<8x1xf32>
    %218 = arith.mulf %79, %217 : vector<8x1xf32>
    %219 = arith.mulf %205, %218 : vector<8x1xf32>
    %220 = arith.subf %81, %219 : vector<8x1xf32>
    %c0_163 = arith.constant 0 : index
    %c38_164 = arith.constant 38 : index
    %221 = vector.load %arg0[%c0_163, %c38_164] : memref<8x896xf32, #tpu.memory_space<vmem>>, vector<8x640xf32>
    %222 = vector.broadcast %218 : vector<8x1xf32> to vector<8x640xf32>
    %223 = arith.mulf %199, %222 : vector<8x640xf32>
    %224 = vector.broadcast %220 : vector<8x1xf32> to vector<8x640xf32>
    %225 = arith.addf %223, %224 : vector<8x640xf32>
    %226 = arith.addf %225, %221 : vector<8x640xf32>
    %cst_165 = arith.constant 0.000000e+00 : f32
    %227 = vector.broadcast %cst_165 : f32 to vector<8x640xf32>
    %228 = arith.maximumf %226, %227 : vector<8x640xf32>
    %c0_166 = arith.constant 0 : index
    %c0_167 = arith.constant 0 : index
    %229 = vector.load %arg3[%c0_166, %c0_167] : memref<8x640xf32, #tpu.memory_space<vmem>>, vector<8x640xf32>
    tpu.vector_store %arg3[%c0_166, %c0_167], %228 {strides = array<i32>} : memref<8x640xf32, #tpu.memory_space<vmem>>, vector<8x640xf32>,
    return
  }
}

</mosaic_0001>

<llo_original>
// kernel: tpu_custom_call.1
$region0: #{tpu_custom_call.1}
  #allocation0 [shape = 'u32[]', space=smem, size = 0x4, offset = 0x4, fixed_abs, tag = 'smem constant byte address 0x4 - core index']
  #allocation1 [shape = 'u32[144,128]{1,0:T(1,128)}', space=vmem, size = 0x12000, scoped, tag = 'internal scratch']
  #allocation2 [shape = 'f32[8,768]{1,0:T(8,128)}', space=vmem, size = 0x6000, scoped, tag = 'scratch operand']
  %s0 = inlined_call_operand.vmem [shape: f32[8,896], index: 0, kind: input, shape index: {}]
  %s1 = inlined_call_operand.vmem [shape: f32[2,9,8,8], index: 1, kind: input, shape index: {}]
  %s2 = inlined_call_operand.vmem [shape: f32[4,8,1], index: 2, kind: input, shape index: {}]
  %s3 = inlined_call_operand.hbm [shape: f32[8,640], index: 3, kind: output, shape index: {}]
  %s4 = sld [smem:[#allocation0]]
  $region22: #{tpu_custom_call.1} parent=0
    _
  %s6 = ssub.s32 1, %s4
  %s7 = scalar_select 0, %s6, %s4
  $region1: #{tpu_custom_call.1} parent=0
    #allocation3 [shape = 'u8[20480]{0}', space=vmem, size = 0x5000, scoped, tag = 'output window, operand 0, single buffered']
    #allocation4 [shape = 's32[1]{0}', space=sflag, size = 0x4, scoped, tag = 'scoped memory for tpu_custom_call.1']
    %8 = vsyncpa [#allocation4], 0
    // Predicated region
    $region2: #{tpu_custom_call.1} parent=1 // pred_check
      _
    $region3: #{tpu_custom_call.1} parent=1 // pred_check_branch
      %10 = sbr.rel (0) target = $region5
    $region4: #{tpu_custom_call.1} parent=1 // pred_region
      _
    $region5: #{tpu_custom_call.1} parent=1 // pred_fallthru
      _
    // Predicated region
    $region6: #{tpu_custom_call.1} parent=1 // pred_check
      _
    $region7: #{tpu_custom_call.1} parent=1 // pred_check_branch
      %12 = sbr.rel (0) target = $region9
    $region8: #{tpu_custom_call.1} parent=1 // pred_region
      _
    $region9: #{tpu_custom_call.1} parent=1 // pred_fallthru
      _
    // Predicated region
    $region10: #{tpu_custom_call.1} parent=1 // pred_check
      _
    $region11: #{tpu_custom_call.1} parent=1 // pred_check_branch
      %14 = sbr.rel (0) target = $region13
    $region12: #{tpu_custom_call.1} parent=1 // pred_region
      _
    $region13: #{tpu_custom_call.1} parent=1 // pred_fallthru
      _
    %v15 = vlaneseq
    %v16 = vand.u32 %v15, 127
    %v17 = vadd.s32 %v16, 128
    %v18 = vadd.s32 %v16, 256
    %v19 = vadd.s32 %v16, 384
    %v20 = vadd.s32 %v16, 512
    %v21 = vadd.s32 %v16, 640
    %v22 = vcvt.s32.f32 %v16
    %v23 = vcvt.s32.f32 %v17
    %v24 = vcvt.s32.f32 %v18
    %v25 = vcvt.s32.f32 %v19
    %v26 = vcvt.s32.f32 %v20
    %v27 = vcvt.s32.f32 %v21
    %v28 = vadd.f32 %v22, 0.0
    %v29 = vadd.f32 %v23, 0.0
    %v30 = vadd.f32 %v24, 0.0
    %v31 = vadd.f32 %v25, 0.0
    %v32 = vadd.f32 %v26, 0.0
    %v33 = vadd.f32 %v27, 0.0
    %v34 = vadd.f32 %v28, 0.5
    %v35 = vadd.f32 %v29, 0.5
    %v36 = vadd.f32 %v30, 0.5
    %v37 = vadd.f32 %v31, 0.5
    %v38 = vadd.f32 %v32, 0.5
    %v39 = vadd.f32 %v33, 0.5
    %v40 = vrcp.pop 324.0
    %v41 = vmul.f32 %v34, %v40
    %v42 = vmul.f32 %v35, %v40
    %v43 = vmul.f32 %v36, %v40
    %v44 = vmul.f32 %v37, %v40
    %v45 = vmul.f32 %v38, %v40
    %v46 = vmul.f32 %v39, %v40
    %v47 = vfloor.f32 %v41
    %v48 = vfloor.f32 %v42
    %v49 = vfloor.f32 %v43
    %v50 = vfloor.f32 %v44
    %v51 = vfloor.f32 %v45
    %v52 = vfloor.f32 %v46
    %v53 = vmul.f32 %v47, 324.0
    %v54 = vmul.f32 %v48, 324.0
    %v55 = vmul.f32 %v49, 324.0
    %v56 = vmul.f32 %v50, 324.0
    %v57 = vmul.f32 %v51, 324.0
    %v58 = vmul.f32 %v52, 324.0
    %v59 = vsub.f32 %v28, %v53
    %v60 = vsub.f32 %v29, %v54
    %v61 = vsub.f32 %v30, %v55
    %v62 = vsub.f32 %v31, %v56
    %v63 = vsub.f32 %v32, %v57
    %v64 = vsub.f32 %v33, %v58
    %v65 = vadd.f32 %v59, 0.5
    %v66 = vadd.f32 %v60, 0.5
    %v67 = vadd.f32 %v61, 0.5
    %v68 = vadd.f32 %v62, 0.5
    %v69 = vadd.f32 %v63, 0.5
    %v70 = vadd.f32 %v64, 0.5
    %v71 = vrcp.pop 18.0
    %v72 = vmul.f32 %v65, %v71
    %v73 = vmul.f32 %v66, %v71
    %v74 = vmul.f32 %v67, %v71
    %v75 = vmul.f32 %v68, %v71
    %v76 = vmul.f32 %v69, %v71
    %v77 = vmul.f32 %v70, %v71
    %v78 = vfloor.f32 %v72
    %v79 = vfloor.f32 %v73
    %v80 = vfloor.f32 %v74
    %v81 = vfloor.f32 %v75
    %v82 = vfloor.f32 %v76
    %v83 = vfloor.f32 %v77
    %v84 = vmul.f32 %v78, 18.0
    %v85 = vmul.f32 %v79, 18.0
    %v86 = vmul.f32 %v80, 18.0
    %v87 = vmul.f32 %v81, 18.0
    %v88 = vmul.f32 %v82, 18.0
    %v89 = vmul.f32 %v83, 18.0
    %v90 = vsub.f32 %v59, %v84
    %v91 = vsub.f32 %v60, %v85
    %v92 = vsub.f32 %v61, %v86
    %v93 = vsub.f32 %v62, %v87
    %v94 = vsub.f32 %v63, %v88
    %v95 = vsub.f32 %v64, %v89
    %vm96 = vcmp.lt.f32.partialorder %v28, 648.0
    %vm97 = vcmp.lt.f32.partialorder %v29, 648.0
    %vm98 = vcmp.lt.f32.partialorder %v30, 648.0
    %vm99 = vcmp.lt.f32.partialorder %v31, 648.0
    %vm100 = vcmp.lt.f32.partialorder %v32, 648.0
    %vm101 = vcmp.lt.f32.partialorder %v33, 648.0
    %vm102 = vcmp.ge.f32.partialorder %v78, 1.0
    %vm103 = vcmp.ge.f32.partialorder %v79, 1.0
    %vm104 = vcmp.ge.f32.partialorder %v80, 1.0
    %vm105 = vcmp.ge.f32.partialorder %v81, 1.0
    %vm106 = vcmp.ge.f32.partialorder %v82, 1.0
    %vm107 = vcmp.ge.f32.partialorder %v83, 1.0
    %vm108 = vmand %vm96, %vm102
    %vm109 = vmand %vm97, %vm103
    %vm110 = vmand %vm98, %vm104
    %vm111 = vmand %vm99, %vm105
    %vm112 = vmand %vm100, %vm106
    %vm113 = vmand %vm101, %vm107
    %vm114 = vcmp.le.f32.partialorder %v78, 16.0
    %vm115 = vcmp.le.f32.partialorder %v79, 16.0
    %vm116 = vcmp.le.f32.partialorder %v80, 16.0
    %vm117 = vcmp.le.f32.partialorder %v81, 16.0
    %vm118 = vcmp.le.f32.partialorder %v82, 16.0
    %vm119 = vcmp.le.f32.partialorder %v83, 16.0
    %vm120 = vmand %vm108, %vm114
    %vm121 = vmand %vm109, %vm115
    %vm122 = vmand %vm110, %vm116
    %vm123 = vmand %vm111, %vm117
    %vm124 = vmand %vm112, %vm118
    %vm125 = vmand %vm113, %vm119
    %vm126 = vcmp.ge.f32.partialorder %v90, 1.0
    %vm127 = vcmp.ge.f32.partialorder %v91, 1.0
    %vm128 = vcmp.ge.f32.partialorder %v92, 1.0
    %vm129 = vcmp.ge.f32.partialorder %v93, 1.0
    %vm130 = vcmp.ge.f32.partialorder %v94, 1.0
    %vm131 = vcmp.ge.f32.partialorder %v95, 1.0
    %vm132 = vmand %vm120, %vm126
    %vm133 = vmand %vm121, %vm127
    %vm134 = vmand %vm122, %vm128
    %vm135 = vmand %vm123, %vm129
    %vm136 = vmand %vm124, %vm130
    %vm137 = vmand %vm125, %vm131
    %vm138 = vcmp.le.f32.partialorder %v90, 16.0
    %vm139 = vcmp.le.f32.partialorder %v91, 16.0
    %vm140 = vcmp.le.f32.partialorder %v92, 16.0
    %vm141 = vcmp.le.f32.partialorder %v93, 16.0
    %vm142 = vcmp.le.f32.partialorder %v94, 16.0
    %vm143 = vcmp.le.f32.partialorder %v95, 16.0
    %vm144 = vmand %vm132, %vm138
    %vm145 = vmand %vm133, %vm139
    %vm146 = vmand %vm134, %vm140
    %vm147 = vmand %vm135, %vm141
    %vm148 = vmand %vm136, %vm142
    %vm149 = vmand %vm137, %vm143
    %v150 = vsel %vm144, 1.0, 0.0
    %v151 = vsel %vm145, 1.0, 0.0
    %v152 = vsel %vm146, 1.0, 0.0
    %v153 = vsel %vm147, 1.0, 0.0
    %v154 = vsel %vm148, 1.0, 0.0
    %v155 = vsel %vm149, 1.0, 0.0
    %v156 = vadd.f32 %v22, 19.0
    %v157 = vadd.f32 %v23, 19.0
    %v158 = vadd.f32 %v24, 19.0
    %v159 = vadd.f32 %v25, 19.0
    %v160 = vadd.f32 %v26, 19.0
    %v161 = vadd.f32 %v156, 0.5
    %v162 = vadd.f32 %v157, 0.5
    %v163 = vadd.f32 %v158, 0.5
    %v164 = vadd.f32 %v159, 0.5
    %v165 = vadd.f32 %v160, 0.5
    %v166 = vmul.f32 %v161, %v40
    %v167 = vmul.f32 %v162, %v40
    %v168 = vmul.f32 %v163, %v40
    %v169 = vmul.f32 %v164, %v40
    %v170 = vmul.f32 %v165, %v40
    %v171 = vfloor.f32 %v166
    %v172 = vfloor.f32 %v167
    %v173 = vfloor.f32 %v168
    %v174 = vfloor.f32 %v169
    %v175 = vfloor.f32 %v170
    %v176 = vmul.f32 %v171, 324.0
    %v177 = vmul.f32 %v172, 324.0
    %v178 = vmul.f32 %v173, 324.0
    %v179 = vmul.f32 %v174, 324.0
    %v180 = vmul.f32 %v175, 324.0
    %v181 = vsub.f32 %v156, %v176
    %v182 = vsub.f32 %v157, %v177
    %v183 = vsub.f32 %v158, %v178
    %v184 = vsub.f32 %v159, %v179
    %v185 = vsub.f32 %v160, %v180
    %v186 = vadd.f32 %v181, 0.5
    %v187 = vadd.f32 %v182, 0.5
    %v188 = vadd.f32 %v183, 0.5
    %v189 = vadd.f32 %v184, 0.5
    %v190 = vadd.f32 %v185, 0.5
    %v191 = vmul.f32 %v186, %v71
    %v192 = vmul.f32 %v187, %v71
    %v193 = vmul.f32 %v188, %v71
    %v194 = vmul.f32 %v189, %v71
    %v195 = vmul.f32 %v190, %v71
    %v196 = vfloor.f32 %v191
    %v197 = vfloor.f32 %v192
    %v198 = vfloor.f32 %v193
    %v199 = vfloor.f32 %v194
    %v200 = vfloor.f32 %v195
    %v201 = vmul.f32 %v196, 18.0
    %v202 = vmul.f32 %v197, 18.0
    %v203 = vmul.f32 %v198, 18.0
    %v204 = vmul.f32 %v199, 18.0
    %v205 = vmul.f32 %v200, 18.0
    %v206 = vsub.f32 %v181, %v201
    %v207 = vsub.f32 %v182, %v202
    %v208 = vsub.f32 %v183, %v203
    %v209 = vsub.f32 %v184, %v204
    %v210 = vsub.f32 %v185, %v205
    %vm211 = vcmp.lt.f32.partialorder %v156, 648.0
    %vm212 = vcmp.lt.f32.partialorder %v157, 648.0
    %vm213 = vcmp.lt.f32.partialorder %v158, 648.0
    %vm214 = vcmp.lt.f32.partialorder %v159, 648.0
    %vm215 = vcmp.lt.f32.partialorder %v160, 648.0
    %vm216 = vcmp.ge.f32.partialorder %v196, 1.0
    %vm217 = vcmp.ge.f32.partialorder %v197, 1.0
    %vm218 = vcmp.ge.f32.partialorder %v198, 1.0
    %vm219 = vcmp.ge.f32.partialorder %v199, 1.0
    %vm220 = vcmp.ge.f32.partialorder %v200, 1.0
    %vm221 = vmand %vm211, %vm216
    %vm222 = vmand %vm212, %vm217
    %vm223 = vmand %vm213, %vm218
    %vm224 = vmand %vm214, %vm219
    %vm225 = vmand %vm215, %vm220
    %vm226 = vcmp.le.f32.partialorder %v196, 16.0
    %vm227 = vcmp.le.f32.partialorder %v197, 16.0
    %vm228 = vcmp.le.f32.partialorder %v198, 16.0
    %vm229 = vcmp.le.f32.partialorder %v199, 16.0
    %vm230 = vcmp.le.f32.partialorder %v200, 16.0
    %vm231 = vmand %vm221, %vm226
    %vm232 = vmand %vm222, %vm227
    %vm233 = vmand %vm223, %vm228
    %vm234 = vmand %vm224, %vm229
    %vm235 = vmand %vm225, %vm230
    %vm236 = vcmp.ge.f32.partialorder %v206, 1.0
    %vm237 = vcmp.ge.f32.partialorder %v207, 1.0
    %vm238 = vcmp.ge.f32.partialorder %v208, 1.0
    %vm239 = vcmp.ge.f32.partialorder %v209, 1.0
    %vm240 = vcmp.ge.f32.partialorder %v210, 1.0
    %vm241 = vmand %vm231, %vm236
    %vm242 = vmand %vm232, %vm237
    %vm243 = vmand %vm233, %vm238
    %vm244 = vmand %vm234, %vm239
    %vm245 = vmand %vm235, %vm240
    %vm246 = vcmp.le.f32.partialorder %v206, 16.0
    %vm247 = vcmp.le.f32.partialorder %v207, 16.0
    %vm248 = vcmp.le.f32.partialorder %v208, 16.0
    %vm249 = vcmp.le.f32.partialorder %v209, 16.0
    %vm250 = vcmp.le.f32.partialorder %v210, 16.0
    %vm251 = vmand %vm241, %vm246
    %vm252 = vmand %vm242, %vm247
    %vm253 = vmand %vm243, %vm248
    %vm254 = vmand %vm244, %vm249
    %vm255 = vmand %vm245, %vm250
    %v256 = vsel %vm251, 1.0, 0.0
    %v257 = vsel %vm252, 1.0, 0.0
    %v258 = vsel %vm253, 1.0, 0.0
    %v259 = vsel %vm254, 1.0, 0.0
    %v260 = vsel %vm255, 1.0, 0.0
    %v261 = vld [vmem:[%s2] sm:$0xff]
    %s262 = scalar_lea.vmem %s2, 8
    %v263 = vld [vmem:[%s262] sm:$0xff]
    %s264 = scalar_lea.vmem %s2, 16
    %v265 = vld [vmem:[%s264] sm:$0xff]
    %s266 = scalar_lea.vmem %s2, 24
    %v267 = vld [vmem:[%s266] sm:$0xff]
    %v268 = vld [vmem:[%s1] sm:$0xff]
    %v269 = vld [vmem:[%s0] sm:$0xff]
    %v270 = vld [vmem:[%s0 + $0x8] sm:$0xff]
    %v271 = vld [vmem:[%s0 + $0x10] sm:$0xff]
    %v272 = vld [vmem:[%s0 + $0x18] sm:$0xff]
    %v273 = vld [vmem:[%s0 + $0x20] sm:$0xff]
    %v274 = vld [vmem:[%s0 + $0x28] sm:$0xff]
    %s275 = scalar_lea.vmem %s1, 8
    %v276 = vld [vmem:[%s275] sm:$0xff]
    %v277 = vld [vmem:[%s0] sm:$0xff]
    %v278 = vld [vmem:[%s0 + $0x8] sm:$0xff]
    %v279 = vld [vmem:[%s0 + $0x10] sm:$0xff]
    %v280 = vld [vmem:[%s0 + $0x18] sm:$0xff]
    %v281 = vld [vmem:[%s0 + $0x20] sm:$0xff]
    %v282 = vld [vmem:[%s0 + $0x28] sm:$0xff]
    %v283 = vld [vmem:[%s0 + $0x30] sm:$0xff]
    %291 = vrot.lane.b32.xlu0 %v277, 127
    %v292 = vpop.permute.xlu0 %291
    %293 = vrot.lane.b32.xlu0 %v278, 127
    %v294 = vpop.permute.xlu0 %293
    %295 = vrot.lane.b32.xlu0 %v279, 127
    %v296 = vpop.permute.xlu0 %295
    %297 = vrot.lane.b32.xlu0 %v280, 127
    %v298 = vpop.permute.xlu0 %297
    %299 = vrot.lane.b32.xlu0 %v281, 127
    %v300 = vpop.permute.xlu0 %299
    %301 = vrot.lane.b32.xlu0 %v282, 127
    %v302 = vpop.permute.xlu0 %301
    %303 = vrot.lane.b32.xlu0 %v283, 127
    %v304 = vpop.permute.xlu0 %303
    %vm305 = vcmask 1039360
    %v306 = vsel %vm305, %v292, %v294
    %v307 = vsel %vm305, %v294, %v296
    %v308 = vsel %vm305, %v296, %v298
    %v309 = vsel %vm305, %v298, %v300
    %v310 = vsel %vm305, %v300, %v302
    %v311 = vsel %vm305, %v302, %v304
    %vm318 = vcmask 64512
    %v320 = vsel %vm318, %v276, 0
    %322 = vmatprep.subr.mxu0 0.0
    %323 = vmatpush1.msra.mxu0 0.0
    %324 = vmatprep.subr.mxu0 0.0
    %325 = vmatpush1.msra.mxu0 0.0
    %326 = vmatprep.subr.mxu0 0.0
    %327 = vmatpush1.msra.mxu0 0.0
    %328 = vmatprep.subr.mxu0 0.0
    %329 = vmatpush1.msra.mxu0 0.0
    %330 = vmatprep.subr.mxu0 0.0
    %331 = vmatpush1.msra.mxu0 0.0
    %332 = vmatprep.subr.mxu0 0.0
    %333 = vmatpush1.msra.mxu0 0.0
    %334 = vmatprep.subr.mxu0 0.0
    %335 = vmatpush1.msra.mxu0 0.0
    %336 = vmatprep.subr.mxu0 0.0
    %337 = vmatpush1.msra.mxu0 0.0
    %338 = vmatprep.subr.mxu0 0.0
    %339 = vmatpush1.msra.mxu0 0.0
    %340 = vmatprep.subr.mxu0 0.0
    %341 = vmatpush1.msra.mxu0 0.0
    %342 = vmatprep.subr.mxu0 0.0
    %343 = vmatpush1.msra.mxu0 0.0
    %344 = vmatprep.subr.mxu0 0.0
    %345 = vmatpush1.msra.mxu0 0.0
    %346 = vmatprep.subr.mxu0 0.0
    %347 = vmatpush1.msra.mxu0 0.0
    %348 = vmatprep.subr.mxu0 0.0
    %349 = vmatpush1.msra.mxu0 0.0
    %350 = vmatprep.subr.mxu0 0.0
    %351 = vmatpush1.msra.mxu0 0.0
    %352 = vmatprep.subr.mxu0 %v307
    %353 = vmatpush1.msra.mxu0 %v306
    %354 = vmatprep.subr.mxu0 0.0
    %355 = vmatpush2.msra.mxu0 0.0
    %356 = vmatprep.subr.mxu0 0.0
    %357 = vmatpush2.msra.mxu0 0.0
    %358 = vmatprep.subr.mxu0 0.0
    %359 = vmatpush2.msra.mxu0 0.0
    %360 = vmatprep.subr.mxu0 0.0
    %361 = vmatpush2.msra.mxu0 0.0
    %362 = vmatprep.subr.mxu0 0.0
    %363 = vmatpush2.msra.mxu0 0.0
    %364 = vmatprep.subr.mxu0 0.0
    %365 = vmatpush2.msra.mxu0 0.0
    %366 = vmatprep.subr.mxu0 0.0
    %367 = vmatpush2.msra.mxu0 0.0
    %368 = vmatprep.subr.mxu0 0.0
    %369 = vmatpush2.msra.mxu0 0.0
    %370 = vmatprep.subr.mxu0 0.0
    %371 = vmatpush2.msra.mxu0 0.0
    %372 = vmatprep.subr.mxu0 0.0
    %373 = vmatpush2.msra.mxu0 0.0
    %374 = vmatprep.subr.mxu0 0.0
    %375 = vmatpush2.msra.mxu0 0.0
    %376 = vmatprep.subr.mxu0 0.0
    %377 = vmatpush2.msra.mxu0 0.0
    %378 = vmatprep.subr.mxu0 0.0
    %379 = vmatpush2.msra.mxu0 0.0
    %380 = vmatprep.subr.mxu0 0.0
    %381 = vmatpush2.msra.mxu0 0.0
    %382 = vmatprep.subr.mxu0 0.0
    %383 = vmatpush2.msra.mxu0 0.0
    %384 = vmatprep.subr.mxu0 0.0
    %385 = vmatpush2.msra.mxu0 0.0
    %386 = vmatprep.mubr.f32.mxu0 0.0
    %387 = vmatmul.mubr.f32.gmra.mxu0 %v320
    %v388 = vpop.f32.mrf.mxu0
    %v389 = vadd.f32 0.0, %v388
    %v390 = vpop.f32.mrf.mxu0
    %v391 = vadd.f32 0.0, %v390
    %392 = vdwg.mxu0
    %393 = vmatprep.subr.mxu0 0.0
    %394 = vmatpush1.msra.mxu0 0.0
    %395 = vmatprep.subr.mxu0 0.0
    %396 = vmatpush1.msra.mxu0 0.0
    %397 = vmatprep.subr.mxu0 0.0
    %398 = vmatpush1.msra.mxu0 0.0
    %399 = vmatprep.subr.mxu0 0.0
    %400 = vmatpush1.msra.mxu0 0.0
    %401 = vmatprep.subr.mxu0 0.0
    %402 = vmatpush1.msra.mxu0 0.0
    %403 = vmatprep.subr.mxu0 0.0
    %404 = vmatpush1.msra.mxu0 0.0
    %405 = vmatprep.subr.mxu0 0.0
    %406 = vmatpush1.msra.mxu0 0.0
    %407 = vmatprep.subr.mxu0 0.0
    %408 = vmatpush1.msra.mxu0 0.0
    %409 = vmatprep.subr.mxu0 0.0
    %410 = vmatpush1.msra.mxu0 0.0
    %411 = vmatprep.subr.mxu0 0.0
    %412 = vmatpush1.msra.mxu0 0.0
    %413 = vmatprep.subr.mxu0 0.0
    %414 = vmatpush1.msra.mxu0 0.0
    %415 = vmatprep.subr.mxu0 0.0
    %416 = vmatpush1.msra.mxu0 0.0
    %417 = vmatprep.subr.mxu0 0.0
    %418 = vmatpush1.msra.mxu0 0.0
    %419 = vmatprep.subr.mxu0 0.0
    %420 = vmatpush1.msra.mxu0 0.0
    %421 = vmatprep.subr.mxu0 0.0
    %422 = vmatpush1.msra.mxu0 0.0
    %423 = vmatprep.subr.mxu0 %v309
    %424 = vmatpush1.msra.mxu0 %v308
    %425 = vmatprep.subr.mxu0 0.0
    %426 = vmatpush2.msra.mxu0 0.0
    %427 = vmatprep.subr.mxu0 0.0
    %428 = vmatpush2.msra.mxu0 0.0
    %429 = vmatprep.subr.mxu0 0.0
    %430 = vmatpush2.msra.mxu0 0.0
    %431 = vmatprep.subr.mxu0 0.0
    %432 = vmatpush2.msra.mxu0 0.0
    %433 = vmatprep.subr.mxu0 0.0
    %434 = vmatpush2.msra.mxu0 0.0
    %435 = vmatprep.subr.mxu0 0.0
    %436 = vmatpush2.msra.mxu0 0.0
    %437 = vmatprep.subr.mxu0 0.0
    %438 = vmatpush2.msra.mxu0 0.0
    %439 = vmatprep.subr.mxu0 0.0
    %440 = vmatpush2.msra.mxu0 0.0
    %441 = vmatprep.subr.mxu0 0.0
    %442 = vmatpush2.msra.mxu0 0.0
    %443 = vmatprep.subr.mxu0 0.0
    %444 = vmatpush2.msra.mxu0 0.0
    %445 = vmatprep.subr.mxu0 0.0
    %446 = vmatpush2.msra.mxu0 0.0
    %447 = vmatprep.subr.mxu0 0.0
    %448 = vmatpush2.msra.mxu0 0.0
    %449 = vmatprep.subr.mxu0 0.0
    %450 = vmatpush2.msra.mxu0 0.0
    %451 = vmatprep.subr.mxu0 0.0
    %452 = vmatpush2.msra.mxu0 0.0
    %453 = vmatprep.subr.mxu0 0.0
    %454 = vmatpush2.msra.mxu0 0.0
    %455 = vmatprep.subr.mxu0 0.0
    %456 = vmatpush2.msra.mxu0 0.0
    %457 = vmatprep.mubr.f32.mxu0 0.0
    %458 = vmatmul.mubr.f32.gmra.mxu0 %v320
    %v459 = vpop.f32.mrf.mxu0
    %v460 = vadd.f32 0.0, %v459
    %v461 = vpop.f32.mrf.mxu0
    %v462 = vadd.f32 0.0, %v461
    %463 = vdwg.mxu0
    %464 = vmatprep.subr.mxu0 0.0
    %465 = vmatpush1.msra.mxu0 0.0
    %466 = vmatprep.subr.mxu0 0.0
    %467 = vmatpush1.msra.mxu0 0.0
    %468 = vmatprep.subr.mxu0 0.0
    %469 = vmatpush1.msra.mxu0 0.0
    %470 = vmatprep.subr.mxu0 0.0
    %471 = vmatpush1.msra.mxu0 0.0
    %472 = vmatprep.subr.mxu0 0.0
    %473 = vmatpush1.msra.mxu0 0.0
    %474 = vmatprep.subr.mxu0 0.0
    %475 = vmatpush1.msra.mxu0 0.0
    %476 = vmatprep.subr.mxu0 0.0
    %477 = vmatpush1.msra.mxu0 0.0
    %478 = vmatprep.subr.mxu0 0.0
    %479 = vmatpush1.msra.mxu0 0.0
    %480 = vmatprep.subr.mxu0 0.0
    %481 = vmatpush1.msra.mxu0 0.0
    %482 = vmatprep.subr.mxu0 0.0
    %483 = vmatpush1.msra.mxu0 0.0
    %484 = vmatprep.subr.mxu0 0.0
    %485 = vmatpush1.msra.mxu0 0.0
    %486 = vmatprep.subr.mxu0 0.0
    %487 = vmatpush1.msra.mxu0 0.0
    %488 = vmatprep.subr.mxu0 0.0
    %489 = vmatpush1.msra.mxu0 0.0
    %490 = vmatprep.subr.mxu0 0.0
    %491 = vmatpush1.msra.mxu0 0.0
    %492 = vmatprep.subr.mxu0 0.0
    %493 = vmatpush1.msra.mxu0 0.0
    %494 = vmatprep.subr.mxu0 %v311
    %495 = vmatpush1.msra.mxu0 %v310
    %496 = vmatprep.subr.mxu0 0.0
    %497 = vmatpush2.msra.mxu0 0.0
    %498 = vmatprep.subr.mxu0 0.0
    %499 = vmatpush2.msra.mxu0 0.0
    %500 = vmatprep.subr.mxu0 0.0
    %501 = vmatpush2.msra.mxu0 0.0
    %502 = vmatprep.subr.mxu0 0.0
    %503 = vmatpush2.msra.mxu0 0.0
    %504 = vmatprep.subr.mxu0 0.0
    %505 = vmatpush2.msra.mxu0 0.0
    %506 = vmatprep.subr.mxu0 0.0
    %507 = vmatpush2.msra.mxu0 0.0
    %508 = vmatprep.subr.mxu0 0.0
    %509 = vmatpush2.msra.mxu0 0.0
    %510 = vmatprep.subr.mxu0 0.0
    %511 = vmatpush2.msra.mxu0 0.0
    %512 = vmatprep.subr.mxu0 0.0
    %513 = vmatpush2.msra.mxu0 0.0
    %514 = vmatprep.subr.mxu0 0.0
    %515 = vmatpush2.msra.mxu0 0.0
    %516 = vmatprep.subr.mxu0 0.0
    %517 = vmatpush2.msra.mxu0 0.0
    %518 = vmatprep.subr.mxu0 0.0
    %519 = vmatpush2.msra.mxu0 0.0
    %520 = vmatprep.subr.mxu0 0.0
    %521 = vmatpush2.msra.mxu0 0.0
    %522 = vmatprep.subr.mxu0 0.0
    %523 = vmatpush2.msra.mxu0 0.0
    %524 = vmatprep.subr.mxu0 0.0
    %525 = vmatpush2.msra.mxu0 0.0
    %526 = vmatprep.subr.mxu0 0.0
    %527 = vmatpush2.msra.mxu0 0.0
    %528 = vmatprep.mubr.f32.mxu0 0.0
    %529 = vmatmul.mubr.f32.gmra.mxu0 %v320
    %v530 = vpop.f32.mrf.mxu0
    %v531 = vadd.f32 0.0, %v530
    %v532 = vpop.f32.mrf.mxu0
    %v533 = vadd.f32 0.0, %v532
    %534 = vdwg.mxu0
    %v536 = vsel %vm318, %v268, 0
    %538 = vmatprep.subr.mxu0 0.0
    %539 = vmatpush1.msra.mxu0 0.0
    %540 = vmatprep.subr.mxu0 0.0
    %541 = vmatpush1.msra.mxu0 0.0
    %542 = vmatprep.subr.mxu0 0.0
    %543 = vmatpush1.msra.mxu0 0.0
    %544 = vmatprep.subr.mxu0 0.0
    %545 = vmatpush1.msra.mxu0 0.0
    %546 = vmatprep.subr.mxu0 0.0
    %547 = vmatpush1.msra.mxu0 0.0
    %548 = vmatprep.subr.mxu0 0.0
    %549 = vmatpush1.msra.mxu0 0.0
    %550 = vmatprep.subr.mxu0 0.0
    %551 = vmatpush1.msra.mxu0 0.0
    %552 = vmatprep.subr.mxu0 0.0
    %553 = vmatpush1.msra.mxu0 0.0
    %554 = vmatprep.subr.mxu0 0.0
    %555 = vmatpush1.msra.mxu0 0.0
    %556 = vmatprep.subr.mxu0 0.0
    %557 = vmatpush1.msra.mxu0 0.0
    %558 = vmatprep.subr.mxu0 0.0
    %559 = vmatpush1.msra.mxu0 0.0
    %560 = vmatprep.subr.mxu0 0.0
    %561 = vmatpush1.msra.mxu0 0.0
    %562 = vmatprep.subr.mxu0 0.0
    %563 = vmatpush1.msra.mxu0 0.0
    %564 = vmatprep.subr.mxu0 0.0
    %565 = vmatpush1.msra.mxu0 0.0
    %566 = vmatprep.subr.mxu0 0.0
    %567 = vmatpush1.msra.mxu0 0.0
    %568 = vmatprep.subr.mxu0 %v270
    %569 = vmatpush1.msra.mxu0 %v269
    %570 = vmatprep.subr.mxu0 0.0
    %571 = vmatpush2.msra.mxu0 0.0
    %572 = vmatprep.subr.mxu0 0.0
    %573 = vmatpush2.msra.mxu0 0.0
    %574 = vmatprep.subr.mxu0 0.0
    %575 = vmatpush2.msra.mxu0 0.0
    %576 = vmatprep.subr.mxu0 0.0
    %577 = vmatpush2.msra.mxu0 0.0
    %578 = vmatprep.subr.mxu0 0.0
    %579 = vmatpush2.msra.mxu0 0.0
    %580 = vmatprep.subr.mxu0 0.0
    %581 = vmatpush2.msra.mxu0 0.0
    %582 = vmatprep.subr.mxu0 0.0
    %583 = vmatpush2.msra.mxu0 0.0
    %584 = vmatprep.subr.mxu0 0.0
    %585 = vmatpush2.msra.mxu0 0.0
    %586 = vmatprep.subr.mxu0 0.0
    %587 = vmatpush2.msra.mxu0 0.0
    %588 = vmatprep.subr.mxu0 0.0
    %589 = vmatpush2.msra.mxu0 0.0
    %590 = vmatprep.subr.mxu0 0.0
    %591 = vmatpush2.msra.mxu0 0.0
    %592 = vmatprep.subr.mxu0 0.0
    %593 = vmatpush2.msra.mxu0 0.0
    %594 = vmatprep.subr.mxu0 0.0
    %595 = vmatpush2.msra.mxu0 0.0
    %596 = vmatprep.subr.mxu0 0.0
    %597 = vmatpush2.msra.mxu0 0.0
    %598 = vmatprep.subr.mxu0 0.0
    %599 = vmatpush2.msra.mxu0 0.0
    %600 = vmatprep.subr.mxu0 0.0
    %601 = vmatpush2.msra.mxu0 0.0
    %602 = vmatprep.mubr.f32.mxu0 0.0
    %603 = vmatmul.mubr.f32.gmra.mxu0 %v536
    %v604 = vpop.f32.mrf.mxu0
    %v605 = vadd.f32 %v389, %v604
    %v606 = vpop.f32.mrf.mxu0
    %v607 = vadd.f32 %v391, %v606
    %608 = vdwg.mxu0
    %609 = vmatprep.subr.mxu0 0.0
    %610 = vmatpush1.msra.mxu0 0.0
    %611 = vmatprep.subr.mxu0 0.0
    %612 = vmatpush1.msra.mxu0 0.0
    %613 = vmatprep.subr.mxu0 0.0
    %614 = vmatpush1.msra.mxu0 0.0
    %615 = vmatprep.subr.mxu0 0.0
    %616 = vmatpush1.msra.mxu0 0.0
    %617 = vmatprep.subr.mxu0 0.0
    %618 = vmatpush1.msra.mxu0 0.0
    %619 = vmatprep.subr.mxu0 0.0
    %620 = vmatpush1.msra.mxu0 0.0
    %621 = vmatprep.subr.mxu0 0.0
    %622 = vmatpush1.msra.mxu0 0.0
    %623 = vmatprep.subr.mxu0 0.0
    %624 = vmatpush1.msra.mxu0 0.0
    %625 = vmatprep.subr.mxu0 0.0
    %626 = vmatpush1.msra.mxu0 0.0
    %627 = vmatprep.subr.mxu0 0.0
    %628 = vmatpush1.msra.mxu0 0.0
    %629 = vmatprep.subr.mxu0 0.0
    %630 = vmatpush1.msra.mxu0 0.0
    %631 = vmatprep.subr.mxu0 0.0
    %632 = vmatpush1.msra.mxu0 0.0
    %633 = vmatprep.subr.mxu0 0.0
    %634 = vmatpush1.msra.mxu0 0.0
    %635 = vmatprep.subr.mxu0 0.0
    %636 = vmatpush1.msra.mxu0 0.0
    %637 = vmatprep.subr.mxu0 0.0
    %638 = vmatpush1.msra.mxu0 0.0
    %639 = vmatprep.subr.mxu0 %v272
    %640 = vmatpush1.msra.mxu0 %v271
    %641 = vmatprep.subr.mxu0 0.0
    %642 = vmatpush2.msra.mxu0 0.0
    %643 = vmatprep.subr.mxu0 0.0
    %644 = vmatpush2.msra.mxu0 0.0
    %645 = vmatprep.subr.mxu0 0.0
    %646 = vmatpush2.msra.mxu0 0.0
    %647 = vmatprep.subr.mxu0 0.0
    %648 = vmatpush2.msra.mxu0 0.0
    %649 = vmatprep.subr.mxu0 0.0
    %650 = vmatpush2.msra.mxu0 0.0
    %651 = vmatprep.subr.mxu0 0.0
    %652 = vmatpush2.msra.mxu0 0.0
    %653 = vmatprep.subr.mxu0 0.0
    %654 = vmatpush2.msra.mxu0 0.0
    %655 = vmatprep.subr.mxu0 0.0
    %656 = vmatpush2.msra.mxu0 0.0
    %657 = vmatprep.subr.mxu0 0.0
    %658 = vmatpush2.msra.mxu0 0.0
    %659 = vmatprep.subr.mxu0 0.0
    %660 = vmatpush2.msra.mxu0 0.0
    %661 = vmatprep.subr.mxu0 0.0
    %662 = vmatpush2.msra.mxu0 0.0
    %663 = vmatprep.subr.mxu0 0.0
    %664 = vmatpush2.msra.mxu0 0.0
    %665 = vmatprep.subr.mxu0 0.0
    %666 = vmatpush2.msra.mxu0 0.0
    %667 = vmatprep.subr.mxu0 0.0
    %668 = vmatpush2.msra.mxu0 0.0
    %669 = vmatprep.subr.mxu0 0.0
    %670 = vmatpush2.msra.mxu0 0.0
    %671 = vmatprep.subr.mxu0 0.0
    %672 = vmatpush2.msra.mxu0 0.0
    %673 = vmatprep.mubr.f32.mxu0 0.0
    %674 = vmatmul.mubr.f32.gmra.mxu0 %v536
    %v675 = vpop.f32.mrf.mxu0
    %v676 = vadd.f32 %v460, %v675
    %v677 = vpop.f32.mrf.mxu0
    %v678 = vadd.f32 %v462, %v677
    %679 = vdwg.mxu0
    %680 = vmatprep.subr.mxu0 0.0
    %681 = vmatpush1.msra.mxu0 0.0
    %682 = vmatprep.subr.mxu0 0.0
    %683 = vmatpush1.msra.mxu0 0.0
    %684 = vmatprep.subr.mxu0 0.0
    %685 = vmatpush1.msra.mxu0 0.0
    %686 = vmatprep.subr.mxu0 0.0
    %687 = vmatpush1.msra.mxu0 0.0
    %688 = vmatprep.subr.mxu0 0.0
    %689 = vmatpush1.msra.mxu0 0.0
    %690 = vmatprep.subr.mxu0 0.0
    %691 = vmatpush1.msra.mxu0 0.0
    %692 = vmatprep.subr.mxu0 0.0
    %693 = vmatpush1.msra.mxu0 0.0
    %694 = vmatprep.subr.mxu0 0.0
    %695 = vmatpush1.msra.mxu0 0.0
    %696 = vmatprep.subr.mxu0 0.0
    %697 = vmatpush1.msra.mxu0 0.0
    %698 = vmatprep.subr.mxu0 0.0
    %699 = vmatpush1.msra.mxu0 0.0
    %700 = vmatprep.subr.mxu0 0.0
    %701 = vmatpush1.msra.mxu0 0.0
    %702 = vmatprep.subr.mxu0 0.0
    %703 = vmatpush1.msra.mxu0 0.0
    %704 = vmatprep.subr.mxu0 0.0
    %705 = vmatpush1.msra.mxu0 0.0
    %706 = vmatprep.subr.mxu0 0.0
    %707 = vmatpush1.msra.mxu0 0.0
    %708 = vmatprep.subr.mxu0 0.0
    %709 = vmatpush1.msra.mxu0 0.0
    %710 = vmatprep.subr.mxu0 %v274
    %711 = vmatpush1.msra.mxu0 %v273
    %712 = vmatprep.subr.mxu0 0.0
    %713 = vmatpush2.msra.mxu0 0.0
    %714 = vmatprep.subr.mxu0 0.0
    %715 = vmatpush2.msra.mxu0 0.0
    %716 = vmatprep.subr.mxu0 0.0
    %717 = vmatpush2.msra.mxu0 0.0
    %718 = vmatprep.subr.mxu0 0.0
    %719 = vmatpush2.msra.mxu0 0.0
    %720 = vmatprep.subr.mxu0 0.0
    %721 = vmatpush2.msra.mxu0 0.0
    %722 = vmatprep.subr.mxu0 0.0
    %723 = vmatpush2.msra.mxu0 0.0
    %724 = vmatprep.subr.mxu0 0.0
    %725 = vmatpush2.msra.mxu0 0.0
    %726 = vmatprep.subr.mxu0 0.0
    %727 = vmatpush2.msra.mxu0 0.0
    %728 = vmatprep.subr.mxu0 0.0
    %729 = vmatpush2.msra.mxu0 0.0
    %730 = vmatprep.subr.mxu0 0.0
    %731 = vmatpush2.msra.mxu0 0.0
    %732 = vmatprep.subr.mxu0 0.0
    %733 = vmatpush2.msra.mxu0 0.0
    %734 = vmatprep.subr.mxu0 0.0
    %735 = vmatpush2.msra.mxu0 0.0
    %736 = vmatprep.subr.mxu0 0.0
    %737 = vmatpush2.msra.mxu0 0.0
    %738 = vmatprep.subr.mxu0 0.0
    %739 = vmatpush2.msra.mxu0 0.0
    %740 = vmatprep.subr.mxu0 0.0
    %741 = vmatpush2.msra.mxu0 0.0
    %742 = vmatprep.subr.mxu0 0.0
    %743 = vmatpush2.msra.mxu0 0.0
    %744 = vmatprep.mubr.f32.mxu0 0.0
    %745 = vmatmul.mubr.f32.gmra.mxu0 %v536
    %v746 = vpop.f32.mrf.mxu0
    %v747 = vadd.f32 %v531, %v746
    %v748 = vpop.f32.mrf.mxu0
    %v749 = vadd.f32 %v533, %v748
    %750 = vdwg.mxu0
    %s751 = scalar_lea.vmem %s1, 16
    %v752 = vld [vmem:[%s751] sm:$0xff]
    %753 = vrot.lane.b32.xlu0 %v277, 126
    %v754 = vpop.permute.xlu0 %753
    %755 = vrot.lane.b32.xlu0 %v278, 126
    %v756 = vpop.permute.xlu0 %755
    %757 = vrot.lane.b32.xlu0 %v279, 126
    %v758 = vpop.permute.xlu0 %757
    %759 = vrot.lane.b32.xlu0 %v280, 126
    %v760 = vpop.permute.xlu0 %759
    %761 = vrot.lane.b32.xlu0 %v281, 126
    %v762 = vpop.permute.xlu0 %761
    %763 = vrot.lane.b32.xlu0 %v282, 126
    %v764 = vpop.permute.xlu0 %763
    %765 = vrot.lane.b32.xlu0 %v283, 126
    %v766 = vpop.permute.xlu0 %765
    %vm767 = vcmask 1031168
    %v768 = vsel %vm767, %v754, %v756
    %v769 = vsel %vm767, %v756, %v758
    %v770 = vsel %vm767, %v758, %v760
    %v771 = vsel %vm767, %v760, %v762
    %v772 = vsel %vm767, %v762, %v764
    %v773 = vsel %vm767, %v764, %v766
    %v781 = vsel %vm318, %v752, 0
    %783 = vmatprep.subr.mxu0 0.0
    %784 = vmatpush1.msra.mxu0 0.0
    %785 = vmatprep.subr.mxu0 0.0
    %786 = vmatpush1.msra.mxu0 0.0
    %787 = vmatprep.subr.mxu0 0.0
    %788 = vmatpush1.msra.mxu0 0.0
    %789 = vmatprep.subr.mxu0 0.0
    %790 = vmatpush1.msra.mxu0 0.0
    %791 = vmatprep.subr.mxu0 0.0
    %792 = vmatpush1.msra.mxu0 0.0
    %793 = vmatprep.subr.mxu0 0.0
    %794 = vmatpush1.msra.mxu0 0.0
    %795 = vmatprep.subr.mxu0 0.0
    %796 = vmatpush1.msra.mxu0 0.0
    %797 = vmatprep.subr.mxu0 0.0
    %798 = vmatpush1.msra.mxu0 0.0
    %799 = vmatprep.subr.mxu0 0.0
    %800 = vmatpush1.msra.mxu0 0.0
    %801 = vmatprep.subr.mxu0 0.0
    %802 = vmatpush1.msra.mxu0 0.0
    %803 = vmatprep.subr.mxu0 0.0
    %804 = vmatpush1.msra.mxu0 0.0
    %805 = vmatprep.subr.mxu0 0.0
    %806 = vmatpush1.msra.mxu0 0.0
    %807 = vmatprep.subr.mxu0 0.0
    %808 = vmatpush1.msra.mxu0 0.0
    %809 = vmatprep.subr.mxu0 0.0
    %810 = vmatpush1.msra.mxu0 0.0
    %811 = vmatprep.subr.mxu0 0.0
    %812 = vmatpush1.msra.mxu0 0.0
    %813 = vmatprep.subr.mxu0 %v769
    %814 = vmatpush1.msra.mxu0 %v768
    %815 = vmatprep.subr.mxu0 0.0
    %816 = vmatpush2.msra.mxu0 0.0
    %817 = vmatprep.subr.mxu0 0.0
    %818 = vmatpush2.msra.mxu0 0.0
    %819 = vmatprep.subr.mxu0 0.0
    %820 = vmatpush2.msra.mxu0 0.0
    %821 = vmatprep.subr.mxu0 0.0
    %822 = vmatpush2.msra.mxu0 0.0
    %823 = vmatprep.subr.mxu0 0.0
    %824 = vmatpush2.msra.mxu0 0.0
    %825 = vmatprep.subr.mxu0 0.0
    %826 = vmatpush2.msra.mxu0 0.0
    %827 = vmatprep.subr.mxu0 0.0
    %828 = vmatpush2.msra.mxu0 0.0
    %829 = vmatprep.subr.mxu0 0.0
    %830 = vmatpush2.msra.mxu0 0.0
    %831 = vmatprep.subr.mxu0 0.0
    %832 = vmatpush2.msra.mxu0 0.0
    %833 = vmatprep.subr.mxu0 0.0
    %834 = vmatpush2.msra.mxu0 0.0
    %835 = vmatprep.subr.mxu0 0.0
    %836 = vmatpush2.msra.mxu0 0.0
    %837 = vmatprep.subr.mxu0 0.0
    %838 = vmatpush2.msra.mxu0 0.0
    %839 = vmatprep.subr.mxu0 0.0
    %840 = vmatpush2.msra.mxu0 0.0
    %841 = vmatprep.subr.mxu0 0.0
    %842 = vmatpush2.msra.mxu0 0.0
    %843 = vmatprep.subr.mxu0 0.0
    %844 = vmatpush2.msra.mxu0 0.0
    %845 = vmatprep.subr.mxu0 0.0
    %846 = vmatpush2.msra.mxu0 0.0
    %847 = vmatprep.mubr.f32.mxu0 0.0
    %848 = vmatmul.mubr.f32.gmra.mxu0 %v781
    %v849 = vpop.f32.mrf.mxu0
    %v850 = vadd.f32 0.0, %v849
    %v851 = vpop.f32.mrf.mxu0
    %v852 = vadd.f32 0.0, %v851
    %853 = vdwg.mxu0
    %854 = vmatprep.subr.mxu0 0.0
    %855 = vmatpush1.msra.mxu0 0.0
    %856 = vmatprep.subr.mxu0 0.0
    %857 = vmatpush1.msra.mxu0 0.0
    %858 = vmatprep.subr.mxu0 0.0
    %859 = vmatpush1.msra.mxu0 0.0
    %860 = vmatprep.subr.mxu0 0.0
    %861 = vmatpush1.msra.mxu0 0.0
    %862 = vmatprep.subr.mxu0 0.0
    %863 = vmatpush1.msra.mxu0 0.0
    %864 = vmatprep.subr.mxu0 0.0
    %865 = vmatpush1.msra.mxu0 0.0
    %866 = vmatprep.subr.mxu0 0.0
    %867 = vmatpush1.msra.mxu0 0.0
    %868 = vmatprep.subr.mxu0 0.0
    %869 = vmatpush1.msra.mxu0 0.0
    %870 = vmatprep.subr.mxu0 0.0
    %871 = vmatpush1.msra.mxu0 0.0
    %872 = vmatprep.subr.mxu0 0.0
    %873 = vmatpush1.msra.mxu0 0.0
    %874 = vmatprep.subr.mxu0 0.0
    %875 = vmatpush1.msra.mxu0 0.0
    %876 = vmatprep.subr.mxu0 0.0
    %877 = vmatpush1.msra.mxu0 0.0
    %878 = vmatprep.subr.mxu0 0.0
    %879 = vmatpush1.msra.mxu0 0.0
    %880 = vmatprep.subr.mxu0 0.0
    %881 = vmatpush1.msra.mxu0 0.0
    %882 = vmatprep.subr.mxu0 0.0
    %883 = vmatpush1.msra.mxu0 0.0
    %884 = vmatprep.subr.mxu0 %v771
    %885 = vmatpush1.msra.mxu0 %v770
    %886 = vmatprep.subr.mxu0 0.0
    %887 = vmatpush2.msra.mxu0 0.0
    %888 = vmatprep.subr.mxu0 0.0
    %889 = vmatpush2.msra.mxu0 0.0
    %890 = vmatprep.subr.mxu0 0.0
    %891 = vmatpush2.msra.mxu0 0.0
    %892 = vmatprep.subr.mxu0 0.0
    %893 = vmatpush2.msra.mxu0 0.0
    %894 = vmatprep.subr.mxu0 0.0
    %895 = vmatpush2.msra.mxu0 0.0
    %896 = vmatprep.subr.mxu0 0.0
    %897 = vmatpush2.msra.mxu0 0.0
    %898 = vmatprep.subr.mxu0 0.0
    %899 = vmatpush2.msra.mxu0 0.0
    %900 = vmatprep.subr.mxu0 0.0
    %901 = vmatpush2.msra.mxu0 0.0
    %902 = vmatprep.subr.mxu0 0.0
    %903 = vmatpush2.msra.mxu0 0.0
    %904 = vmatprep.subr.mxu0 0.0
    %905 = vmatpush2.msra.mxu0 0.0
    %906 = vmatprep.subr.mxu0 0.0
    %907 = vmatpush2.msra.mxu0 0.0
    %908 = vmatprep.subr.mxu0 0.0
    %909 = vmatpush2.msra.mxu0 0.0
    %910 = vmatprep.subr.mxu0 0.0
    %911 = vmatpush2.msra.mxu0 0.0
    %912 = vmatprep.subr.mxu0 0.0
    %913 = vmatpush2.msra.mxu0 0.0
    %914 = vmatprep.subr.mxu0 0.0
    %915 = vmatpush2.msra.mxu0 0.0
    %916 = vmatprep.subr.mxu0 0.0
    %917 = vmatpush2.msra.mxu0 0.0
    %918 = vmatprep.mubr.f32.mxu0 0.0
    %919 = vmatmul.mubr.f32.gmra.mxu0 %v781
    %v920 = vpop.f32.mrf.mxu0
    %v921 = vadd.f32 0.0, %v920
    %v922 = vpop.f32.mrf.mxu0
    %v923 = vadd.f32 0.0, %v922
    %924 = vdwg.mxu0
    %925 = vmatprep.subr.mxu0 0.0
    %926 = vmatpush1.msra.mxu0 0.0
    %927 = vmatprep.subr.mxu0 0.0
    %928 = vmatpush1.msra.mxu0 0.0
    %929 = vmatprep.subr.mxu0 0.0
    %930 = vmatpush1.msra.mxu0 0.0
    %931 = vmatprep.subr.mxu0 0.0
    %932 = vmatpush1.msra.mxu0 0.0
    %933 = vmatprep.subr.mxu0 0.0
    %934 = vmatpush1.msra.mxu0 0.0
    %935 = vmatprep.subr.mxu0 0.0
    %936 = vmatpush1.msra.mxu0 0.0
    %937 = vmatprep.subr.mxu0 0.0
    %938 = vmatpush1.msra.mxu0 0.0
    %939 = vmatprep.subr.mxu0 0.0
    %940 = vmatpush1.msra.mxu0 0.0
    %941 = vmatprep.subr.mxu0 0.0
    %942 = vmatpush1.msra.mxu0 0.0
    %943 = vmatprep.subr.mxu0 0.0
    %944 = vmatpush1.msra.mxu0 0.0
    %945 = vmatprep.subr.mxu0 0.0
    %946 = vmatpush1.msra.mxu0 0.0
    %947 = vmatprep.subr.mxu0 0.0
    %948 = vmatpush1.msra.mxu0 0.0
    %949 = vmatprep.subr.mxu0 0.0
    %950 = vmatpush1.msra.mxu0 0.0
    %951 = vmatprep.subr.mxu0 0.0
    %952 = vmatpush1.msra.mxu0 0.0
    %953 = vmatprep.subr.mxu0 0.0
    %954 = vmatpush1.msra.mxu0 0.0
    %955 = vmatprep.subr.mxu0 %v773
    %956 = vmatpush1.msra.mxu0 %v772
    %957 = vmatprep.subr.mxu0 0.0
    %958 = vmatpush2.msra.mxu0 0.0
    %959 = vmatprep.subr.mxu0 0.0
    %960 = vmatpush2.msra.mxu0 0.0
    %961 = vmatprep.subr.mxu0 0.0
    %962 = vmatpush2.msra.mxu0 0.0
    %963 = vmatprep.subr.mxu0 0.0
    %964 = vmatpush2.msra.mxu0 0.0
    %965 = vmatprep.subr.mxu0 0.0
    %966 = vmatpush2.msra.mxu0 0.0
    %967 = vmatprep.subr.mxu0 0.0
    %968 = vmatpush2.msra.mxu0 0.0
    %969 = vmatprep.subr.mxu0 0.0
    %970 = vmatpush2.msra.mxu0 0.0
    %971 = vmatprep.subr.mxu0 0.0
    %972 = vmatpush2.msra.mxu0 0.0
    %973 = vmatprep.subr.mxu0 0.0
    %974 = vmatpush2.msra.mxu0 0.0
    %975 = vmatprep.subr.mxu0 0.0
    %976 = vmatpush2.msra.mxu0 0.0
    %977 = vmatprep.subr.mxu0 0.0
    %978 = vmatpush2.msra.mxu0 0.0
    %979 = vmatprep.subr.mxu0 0.0
    %980 = vmatpush2.msra.mxu0 0.0
    %981 = vmatprep.subr.mxu0 0.0
    %982 = vmatpush2.msra.mxu0 0.0
    %983 = vmatprep.subr.mxu0 0.0
    %984 = vmatpush2.msra.mxu0 0.0
    %985 = vmatprep.subr.mxu0 0.0
    %986 = vmatpush2.msra.mxu0 0.0
    %987 = vmatprep.subr.mxu0 0.0
    %988 = vmatpush2.msra.mxu0 0.0
    %989 = vmatprep.mubr.f32.mxu0 0.0
    %990 = vmatmul.mubr.f32.gmra.mxu0 %v781
    %v991 = vpop.f32.mrf.mxu0
    %v992 = vadd.f32 0.0, %v991
    %v993 = vpop.f32.mrf.mxu0
    %v994 = vadd.f32 0.0, %v993
    %995 = vdwg.mxu0
    %v996 = vadd.f32 %v605, %v850
    %v997 = vadd.f32 %v607, %v852
    %v998 = vadd.f32 %v676, %v921
    %v999 = vadd.f32 %v678, %v923
    %v1000 = vadd.f32 %v747, %v992
    %v1001 = vadd.f32 %v749, %v994
    %s1002 = scalar_lea.vmem %s1, 24
    %v1003 = vld [vmem:[%s1002] sm:$0xff]
    %1004 = vrot.lane.b32.xlu0 %v277, 110
    %v1005 = vpop.permute.xlu0 %1004
    %1006 = vrot.lane.b32.xlu0 %v278, 110
    %v1007 = vpop.permute.xlu0 %1006
    %1008 = vrot.lane.b32.xlu0 %v279, 110
    %v1009 = vpop.permute.xlu0 %1008
    %1010 = vrot.lane.b32.xlu0 %v280, 110
    %v1011 = vpop.permute.xlu0 %1010
    %1012 = vrot.lane.b32.xlu0 %v281, 110
    %v1013 = vpop.permute.xlu0 %1012
    %1014 = vrot.lane.b32.xlu0 %v282, 110
    %v1015 = vpop.permute.xlu0 %1014
    %1016 = vrot.lane.b32.xlu0 %v283, 110
    %v1017 = vpop.permute.xlu0 %1016
    %vm1018 = vcmask 900096
    %v1019 = vsel %vm1018, %v1005, %v1007
    %v1020 = vsel %vm1018, %v1007, %v1009
    %v1021 = vsel %vm1018, %v1009, %v1011
    %v1022 = vsel %vm1018, %v1011, %v1013
    %v1023 = vsel %vm1018, %v1013, %v1015
    %v1024 = vsel %vm1018, %v1015, %v1017
    %v1032 = vsel %vm318, %v1003, 0
    %1034 = vmatprep.subr.mxu0 0.0
    %1035 = vmatpush1.msra.mxu0 0.0
    %1036 = vmatprep.subr.mxu0 0.0
    %1037 = vmatpush1.msra.mxu0 0.0
    %1038 = vmatprep.subr.mxu0 0.0
    %1039 = vmatpush1.msra.mxu0 0.0
    %1040 = vmatprep.subr.mxu0 0.0
    %1041 = vmatpush1.msra.mxu0 0.0
    %1042 = vmatprep.subr.mxu0 0.0
    %1043 = vmatpush1.msra.mxu0 0.0
    %1044 = vmatprep.subr.mxu0 0.0
    %1045 = vmatpush1.msra.mxu0 0.0
    %1046 = vmatprep.subr.mxu0 0.0
    %1047 = vmatpush1.msra.mxu0 0.0
    %1048 = vmatprep.subr.mxu0 0.0
    %1049 = vmatpush1.msra.mxu0 0.0
    %1050 = vmatprep.subr.mxu0 0.0
    %1051 = vmatpush1.msra.mxu0 0.0
    %1052 = vmatprep.subr.mxu0 0.0
    %1053 = vmatpush1.msra.mxu0 0.0
    %1054 = vmatprep.subr.mxu0 0.0
    %1055 = vmatpush1.msra.mxu0 0.0
    %1056 = vmatprep.subr.mxu0 0.0
    %1057 = vmatpush1.msra.mxu0 0.0
    %1058 = vmatprep.subr.mxu0 0.0
    %1059 = vmatpush1.msra.mxu0 0.0
    %1060 = vmatprep.subr.mxu0 0.0
    %1061 = vmatpush1.msra.mxu0 0.0
    %1062 = vmatprep.subr.mxu0 0.0
    %1063 = vmatpush1.msra.mxu0 0.0
    %1064 = vmatprep.subr.mxu0 %v1020
    %1065 = vmatpush1.msra.mxu0 %v1019
    %1066 = vmatprep.subr.mxu0 0.0
    %1067 = vmatpush2.msra.mxu0 0.0
    %1068 = vmatprep.subr.mxu0 0.0
    %1069 = vmatpush2.msra.mxu0 0.0
    %1070 = vmatprep.subr.mxu0 0.0
    %1071 = vmatpush2.msra.mxu0 0.0
    %1072 = vmatprep.subr.mxu0 0.0
    %1073 = vmatpush2.msra.mxu0 0.0
    %1074 = vmatprep.subr.mxu0 0.0
    %1075 = vmatpush2.msra.mxu0 0.0
    %1076 = vmatprep.subr.mxu0 0.0
    %1077 = vmatpush2.msra.mxu0 0.0
    %1078 = vmatprep.subr.mxu0 0.0
    %1079 = vmatpush2.msra.mxu0 0.0
    %1080 = vmatprep.subr.mxu0 0.0
    %1081 = vmatpush2.msra.mxu0 0.0
    %1082 = vmatprep.subr.mxu0 0.0
    %1083 = vmatpush2.msra.mxu0 0.0
    %1084 = vmatprep.subr.mxu0 0.0
    %1085 = vmatpush2.msra.mxu0 0.0
    %1086 = vmatprep.subr.mxu0 0.0
    %1087 = vmatpush2.msra.mxu0 0.0
    %1088 = vmatprep.subr.mxu0 0.0
    %1089 = vmatpush2.msra.mxu0 0.0
    %1090 = vmatprep.subr.mxu0 0.0
    %1091 = vmatpush2.msra.mxu0 0.0
    %1092 = vmatprep.subr.mxu0 0.0
    %1093 = vmatpush2.msra.mxu0 0.0
    %1094 = vmatprep.subr.mxu0 0.0
    %1095 = vmatpush2.msra.mxu0 0.0
    %1096 = vmatprep.subr.mxu0 0.0
    %1097 = vmatpush2.msra.mxu0 0.0
    %1098 = vmatprep.mubr.f32.mxu0 0.0
    %1099 = vmatmul.mubr.f32.gmra.mxu0 %v1032
    %v1100 = vpop.f32.mrf.mxu0
    %v1101 = vadd.f32 0.0, %v1100
    %v1102 = vpop.f32.mrf.mxu0
    %v1103 = vadd.f32 0.0, %v1102
    %1104 = vdwg.mxu0
    %1105 = vmatprep.subr.mxu0 0.0
    %1106 = vmatpush1.msra.mxu0 0.0
    %1107 = vmatprep.subr.mxu0 0.0
    %1108 = vmatpush1.msra.mxu0 0.0
    %1109 = vmatprep.subr.mxu0 0.0
    %1110 = vmatpush1.msra.mxu0 0.0
    %1111 = vmatprep.subr.mxu0 0.0
    %1112 = vmatpush1.msra.mxu0 0.0
    %1113 = vmatprep.subr.mxu0 0.0
    %1114 = vmatpush1.msra.mxu0 0.0
    %1115 = vmatprep.subr.mxu0 0.0
    %1116 = vmatpush1.msra.mxu0 0.0
    %1117 = vmatprep.subr.mxu0 0.0
    %1118 = vmatpush1.msra.mxu0 0.0
    %1119 = vmatprep.subr.mxu0 0.0
    %1120 = vmatpush1.msra.mxu0 0.0
    %1121 = vmatprep.subr.mxu0 0.0
    %1122 = vmatpush1.msra.mxu0 0.0
    %1123 = vmatprep.subr.mxu0 0.0
    %1124 = vmatpush1.msra.mxu0 0.0
    %1125 = vmatprep.subr.mxu0 0.0
    %1126 = vmatpush1.msra.mxu0 0.0
    %1127 = vmatprep.subr.mxu0 0.0
    %1128 = vmatpush1.msra.mxu0 0.0
    %1129 = vmatprep.subr.mxu0 0.0
    %1130 = vmatpush1.msra.mxu0 0.0
    %1131 = vmatprep.subr.mxu0 0.0
    %1132 = vmatpush1.msra.mxu0 0.0
    %1133 = vmatprep.subr.mxu0 0.0
    %1134 = vmatpush1.msra.mxu0 0.0
    %1135 = vmatprep.subr.mxu0 %v1022
    %1136 = vmatpush1.msra.mxu0 %v1021
    %1137 = vmatprep.subr.mxu0 0.0
    %1138 = vmatpush2.msra.mxu0 0.0
    %1139 = vmatprep.subr.mxu0 0.0
    %1140 = vmatpush2.msra.mxu0 0.0
    %1141 = vmatprep.subr.mxu0 0.0
    %1142 = vmatpush2.msra.mxu0 0.0
    %1143 = vmatprep.subr.mxu0 0.0
    %1144 = vmatpush2.msra.mxu0 0.0
    %1145 = vmatprep.subr.mxu0 0.0
    %1146 = vmatpush2.msra.mxu0 0.0
    %1147 = vmatprep.subr.mxu0 0.0
    %1148 = vmatpush2.msra.mxu0 0.0
    %1149 = vmatprep.subr.mxu0 0.0
    %1150 = vmatpush2.msra.mxu0 0.0
    %1151 = vmatprep.subr.mxu0 0.0
    %1152 = vmatpush2.msra.mxu0 0.0
    %1153 = vmatprep.subr.mxu0 0.0
    %1154 = vmatpush2.msra.mxu0 0.0
    %1155 = vmatprep.subr.mxu0 0.0
    %1156 = vmatpush2.msra.mxu0 0.0
    %1157 = vmatprep.subr.mxu0 0.0
    %1158 = vmatpush2.msra.mxu0 0.0
    %1159 = vmatprep.subr.mxu0 0.0
    %1160 = vmatpush2.msra.mxu0 0.0
    %1161 = vmatprep.subr.mxu0 0.0
    %1162 = vmatpush2.msra.mxu0 0.0
    %1163 = vmatprep.subr.mxu0 0.0
    %1164 = vmatpush2.msra.mxu0 0.0
    %1165 = vmatprep.subr.mxu0 0.0
    %1166 = vmatpush2.msra.mxu0 0.0
    %1167 = vmatprep.subr.mxu0 0.0
    %1168 = vmatpush2.msra.mxu0 0.0
    %1169 = vmatprep.mubr.f32.mxu0 0.0
    %1170 = vmatmul.mubr.f32.gmra.mxu0 %v1032
    %v1171 = vpop.f32.mrf.mxu0
    %v1172 = vadd.f32 0.0, %v1171
    %v1173 = vpop.f32.mrf.mxu0
    %v1174 = vadd.f32 0.0, %v1173
    %1175 = vdwg.mxu0
    %1176 = vmatprep.subr.mxu0 0.0
    %1177 = vmatpush1.msra.mxu0 0.0
    %1178 = vmatprep.subr.mxu0 0.0
    %1179 = vmatpush1.msra.mxu0 0.0
    %1180 = vmatprep.subr.mxu0 0.0
    %1181 = vmatpush1.msra.mxu0 0.0
    %1182 = vmatprep.subr.mxu0 0.0
    %1183 = vmatpush1.msra.mxu0 0.0
    %1184 = vmatprep.subr.mxu0 0.0
    %1185 = vmatpush1.msra.mxu0 0.0
    %1186 = vmatprep.subr.mxu0 0.0
    %1187 = vmatpush1.msra.mxu0 0.0
    %1188 = vmatprep.subr.mxu0 0.0
    %1189 = vmatpush1.msra.mxu0 0.0
    %1190 = vmatprep.subr.mxu0 0.0
    %1191 = vmatpush1.msra.mxu0 0.0
    %1192 = vmatprep.subr.mxu0 0.0
    %1193 = vmatpush1.msra.mxu0 0.0
    %1194 = vmatprep.subr.mxu0 0.0
    %1195 = vmatpush1.msra.mxu0 0.0
    %1196 = vmatprep.subr.mxu0 0.0
    %1197 = vmatpush1.msra.mxu0 0.0
    %1198 = vmatprep.subr.mxu0 0.0
    %1199 = vmatpush1.msra.mxu0 0.0
    %1200 = vmatprep.subr.mxu0 0.0
    %1201 = vmatpush1.msra.mxu0 0.0
    %1202 = vmatprep.subr.mxu0 0.0
    %1203 = vmatpush1.msra.mxu0 0.0
    %1204 = vmatprep.subr.mxu0 0.0
    %1205 = vmatpush1.msra.mxu0 0.0
    %1206 = vmatprep.subr.mxu0 %v1024
    %1207 = vmatpush1.msra.mxu0 %v1023
    %1208 = vmatprep.subr.mxu0 0.0
    %1209 = vmatpush2.msra.mxu0 0.0
    %1210 = vmatprep.subr.mxu0 0.0
    %1211 = vmatpush2.msra.mxu0 0.0
    %1212 = vmatprep.subr.mxu0 0.0
    %1213 = vmatpush2.msra.mxu0 0.0
    %1214 = vmatprep.subr.mxu0 0.0
    %1215 = vmatpush2.msra.mxu0 0.0
    %1216 = vmatprep.subr.mxu0 0.0
    %1217 = vmatpush2.msra.mxu0 0.0
    %1218 = vmatprep.subr.mxu0 0.0
    %1219 = vmatpush2.msra.mxu0 0.0
    %1220 = vmatprep.subr.mxu0 0.0
    %1221 = vmatpush2.msra.mxu0 0.0
    %1222 = vmatprep.subr.mxu0 0.0
    %1223 = vmatpush2.msra.mxu0 0.0
    %1224 = vmatprep.subr.mxu0 0.0
    %1225 = vmatpush2.msra.mxu0 0.0
    %1226 = vmatprep.subr.mxu0 0.0
    %1227 = vmatpush2.msra.mxu0 0.0
    %1228 = vmatprep.subr.mxu0 0.0
    %1229 = vmatpush2.msra.mxu0 0.0
    %1230 = vmatprep.subr.mxu0 0.0
    %1231 = vmatpush2.msra.mxu0 0.0
    %1232 = vmatprep.subr.mxu0 0.0
    %1233 = vmatpush2.msra.mxu0 0.0
    %1234 = vmatprep.subr.mxu0 0.0
    %1235 = vmatpush2.msra.mxu0 0.0
    %1236 = vmatprep.subr.mxu0 0.0
    %1237 = vmatpush2.msra.mxu0 0.0
    %1238 = vmatprep.subr.mxu0 0.0
    %1239 = vmatpush2.msra.mxu0 0.0
    %1240 = vmatprep.mubr.f32.mxu0 0.0
    %1241 = vmatmul.mubr.f32.gmra.mxu0 %v1032
    %v1242 = vpop.f32.mrf.mxu0
    %v1243 = vadd.f32 0.0, %v1242
    %v1244 = vpop.f32.mrf.mxu0
    %v1245 = vadd.f32 0.0, %v1244
    %1246 = vdwg.mxu0
    %v1247 = vadd.f32 %v996, %v1101
    %v1248 = vadd.f32 %v997, %v1103
    %v1249 = vadd.f32 %v998, %v1172
    %v1250 = vadd.f32 %v999, %v1174
    %v1251 = vadd.f32 %v1000, %v1243
    %v1252 = vadd.f32 %v1001, %v1245
    %s1253 = scalar_lea.vmem %s1, 32
    %v1254 = vld [vmem:[%s1253] sm:$0xff]
    %1255 = vrot.lane.b32.xlu0 %v277, 109
    %v1256 = vpop.permute.xlu0 %1255
    %1257 = vrot.lane.b32.xlu0 %v278, 109
    %v1258 = vpop.permute.xlu0 %1257
    %1259 = vrot.lane.b32.xlu0 %v279, 109
    %v1260 = vpop.permute.xlu0 %1259
    %1261 = vrot.lane.b32.xlu0 %v280, 109
    %v1262 = vpop.permute.xlu0 %1261
    %1263 = vrot.lane.b32.xlu0 %v281, 109
    %v1264 = vpop.permute.xlu0 %1263
    %1265 = vrot.lane.b32.xlu0 %v282, 109
    %v1266 = vpop.permute.xlu0 %1265
    %1267 = vrot.lane.b32.xlu0 %v283, 109
    %v1268 = vpop.permute.xlu0 %1267
    %vm1269 = vcmask 891904
    %v1270 = vsel %vm1269, %v1256, %v1258
    %v1271 = vsel %vm1269, %v1258, %v1260
    %v1272 = vsel %vm1269, %v1260, %v1262
    %v1273 = vsel %vm1269, %v1262, %v1264
    %v1274 = vsel %vm1269, %v1264, %v1266
    %v1275 = vsel %vm1269, %v1266, %v1268
    %v1283 = vsel %vm318, %v1254, 0
    %1285 = vmatprep.subr.mxu0 0.0
    %1286 = vmatpush1.msra.mxu0 0.0
    %1287 = vmatprep.subr.mxu0 0.0
    %1288 = vmatpush1.msra.mxu0 0.0
    %1289 = vmatprep.subr.mxu0 0.0
    %1290 = vmatpush1.msra.mxu0 0.0
    %1291 = vmatprep.subr.mxu0 0.0
    %1292 = vmatpush1.msra.mxu0 0.0
    %1293 = vmatprep.subr.mxu0 0.0
    %1294 = vmatpush1.msra.mxu0 0.0
    %1295 = vmatprep.subr.mxu0 0.0
    %1296 = vmatpush1.msra.mxu0 0.0
    %1297 = vmatprep.subr.mxu0 0.0
    %1298 = vmatpush1.msra.mxu0 0.0
    %1299 = vmatprep.subr.mxu0 0.0
    %1300 = vmatpush1.msra.mxu0 0.0
    %1301 = vmatprep.subr.mxu0 0.0
    %1302 = vmatpush1.msra.mxu0 0.0
    %1303 = vmatprep.subr.mxu0 0.0
    %1304 = vmatpush1.msra.mxu0 0.0
    %1305 = vmatprep.subr.mxu0 0.0
    %1306 = vmatpush1.msra.mxu0 0.0
    %1307 = vmatprep.subr.mxu0 0.0
    %1308 = vmatpush1.msra.mxu0 0.0
    %1309 = vmatprep.subr.mxu0 0.0
    %1310 = vmatpush1.msra.mxu0 0.0
    %1311 = vmatprep.subr.mxu0 0.0
    %1312 = vmatpush1.msra.mxu0 0.0
    %1313 = vmatprep.subr.mxu0 0.0
    %1314 = vmatpush1.msra.mxu0 0.0
    %1315 = vmatprep.subr.mxu0 %v1271
    %1316 = vmatpush1.msra.mxu0 %v1270
    %1317 = vmatprep.subr.mxu0 0.0
    %1318 = vmatpush2.msra.mxu0 0.0
    %1319 = vmatprep.subr.mxu0 0.0
    %1320 = vmatpush2.msra.mxu0 0.0
    %1321 = vmatprep.subr.mxu0 0.0
    %1322 = vmatpush2.msra.mxu0 0.0
    %1323 = vmatprep.subr.mxu0 0.0
    %1324 = vmatpush2.msra.mxu0 0.0
    %1325 = vmatprep.subr.mxu0 0.0
    %1326 = vmatpush2.msra.mxu0 0.0
    %1327 = vmatprep.subr.mxu0 0.0
    %1328 = vmatpush2.msra.mxu0 0.0
    %1329 = vmatprep.subr.mxu0 0.0
    %1330 = vmatpush2.msra.mxu0 0.0
    %1331 = vmatprep.subr.mxu0 0.0
    %1332 = vmatpush2.msra.mxu0 0.0
    %1333 = vmatprep.subr.mxu0 0.0
    %1334 = vmatpush2.msra.mxu0 0.0
    %1335 = vmatprep.subr.mxu0 0.0
    %1336 = vmatpush2.msra.mxu0 0.0
    %1337 = vmatprep.subr.mxu0 0.0
    %1338 = vmatpush2.msra.mxu0 0.0
    %1339 = vmatprep.subr.mxu0 0.0
    %1340 = vmatpush2.msra.mxu0 0.0
    %1341 = vmatprep.subr.mxu0 0.0
    %1342 = vmatpush2.msra.mxu0 0.0
    %1343 = vmatprep.subr.mxu0 0.0
    %1344 = vmatpush2.msra.mxu0 0.0
    %1345 = vmatprep.subr.mxu0 0.0
    %1346 = vmatpush2.msra.mxu0 0.0
    %1347 = vmatprep.subr.mxu0 0.0
    %1348 = vmatpush2.msra.mxu0 0.0
    %1349 = vmatprep.mubr.f32.mxu0 0.0
    %1350 = vmatmul.mubr.f32.gmra.mxu0 %v1283
    %v1351 = vpop.f32.mrf.mxu0
    %v1352 = vadd.f32 0.0, %v1351
    %v1353 = vpop.f32.mrf.mxu0
    %v1354 = vadd.f32 0.0, %v1353
    %1355 = vdwg.mxu0
    %1356 = vmatprep.subr.mxu0 0.0
    %1357 = vmatpush1.msra.mxu0 0.0
    %1358 = vmatprep.subr.mxu0 0.0
    %1359 = vmatpush1.msra.mxu0 0.0
    %1360 = vmatprep.subr.mxu0 0.0
    %1361 = vmatpush1.msra.mxu0 0.0
    %1362 = vmatprep.subr.mxu0 0.0
    %1363 = vmatpush1.msra.mxu0 0.0
    %1364 = vmatprep.subr.mxu0 0.0
    %1365 = vmatpush1.msra.mxu0 0.0
    %1366 = vmatprep.subr.mxu0 0.0
    %1367 = vmatpush1.msra.mxu0 0.0
    %1368 = vmatprep.subr.mxu0 0.0
    %1369 = vmatpush1.msra.mxu0 0.0
    %1370 = vmatprep.subr.mxu0 0.0
    %1371 = vmatpush1.msra.mxu0 0.0
    %1372 = vmatprep.subr.mxu0 0.0
    %1373 = vmatpush1.msra.mxu0 0.0
    %1374 = vmatprep.subr.mxu0 0.0
    %1375 = vmatpush1.msra.mxu0 0.0
    %1376 = vmatprep.subr.mxu0 0.0
    %1377 = vmatpush1.msra.mxu0 0.0
    %1378 = vmatprep.subr.mxu0 0.0
    %1379 = vmatpush1.msra.mxu0 0.0
    %1380 = vmatprep.subr.mxu0 0.0
    %1381 = vmatpush1.msra.mxu0 0.0
    %1382 = vmatprep.subr.mxu0 0.0
    %1383 = vmatpush1.msra.mxu0 0.0
    %1384 = vmatprep.subr.mxu0 0.0
    %1385 = vmatpush1.msra.mxu0 0.0
    %1386 = vmatprep.subr.mxu0 %v1273
    %1387 = vmatpush1.msra.mxu0 %v1272
    %1388 = vmatprep.subr.mxu0 0.0
    %1389 = vmatpush2.msra.mxu0 0.0
    %1390 = vmatprep.subr.mxu0 0.0
    %1391 = vmatpush2.msra.mxu0 0.0
    %1392 = vmatprep.subr.mxu0 0.0
    %1393 = vmatpush2.msra.mxu0 0.0
    %1394 = vmatprep.subr.mxu0 0.0
    %1395 = vmatpush2.msra.mxu0 0.0
    %1396 = vmatprep.subr.mxu0 0.0
    %1397 = vmatpush2.msra.mxu0 0.0
    %1398 = vmatprep.subr.mxu0 0.0
    %1399 = vmatpush2.msra.mxu0 0.0
    %1400 = vmatprep.subr.mxu0 0.0
    %1401 = vmatpush2.msra.mxu0 0.0
    %1402 = vmatprep.subr.mxu0 0.0
    %1403 = vmatpush2.msra.mxu0 0.0
    %1404 = vmatprep.subr.mxu0 0.0
    %1405 = vmatpush2.msra.mxu0 0.0
    %1406 = vmatprep.subr.mxu0 0.0
    %1407 = vmatpush2.msra.mxu0 0.0
    %1408 = vmatprep.subr.mxu0 0.0
    %1409 = vmatpush2.msra.mxu0 0.0
    %1410 = vmatprep.subr.mxu0 0.0
    %1411 = vmatpush2.msra.mxu0 0.0
    %1412 = vmatprep.subr.mxu0 0.0
    %1413 = vmatpush2.msra.mxu0 0.0
    %1414 = vmatprep.subr.mxu0 0.0
    %1415 = vmatpush2.msra.mxu0 0.0
    %1416 = vmatprep.subr.mxu0 0.0
    %1417 = vmatpush2.msra.mxu0 0.0
    %1418 = vmatprep.subr.mxu0 0.0
    %1419 = vmatpush2.msra.mxu0 0.0
    %1420 = vmatprep.mubr.f32.mxu0 0.0
    %1421 = vmatmul.mubr.f32.gmra.mxu0 %v1283
    %v1422 = vpop.f32.mrf.mxu0
    %v1423 = vadd.f32 0.0, %v1422
    %v1424 = vpop.f32.mrf.mxu0
    %v1425 = vadd.f32 0.0, %v1424
    %1426 = vdwg.mxu0
    %1427 = vmatprep.subr.mxu0 0.0
    %1428 = vmatpush1.msra.mxu0 0.0
    %1429 = vmatprep.subr.mxu0 0.0
    %1430 = vmatpush1.msra.mxu0 0.0
    %1431 = vmatprep.subr.mxu0 0.0
    %1432 = vmatpush1.msra.mxu0 0.0
    %1433 = vmatprep.subr.mxu0 0.0
    %1434 = vmatpush1.msra.mxu0 0.0
    %1435 = vmatprep.subr.mxu0 0.0
    %1436 = vmatpush1.msra.mxu0 0.0
    %1437 = vmatprep.subr.mxu0 0.0
    %1438 = vmatpush1.msra.mxu0 0.0
    %1439 = vmatprep.subr.mxu0 0.0
    %1440 = vmatpush1.msra.mxu0 0.0
    %1441 = vmatprep.subr.mxu0 0.0
    %1442 = vmatpush1.msra.mxu0 0.0
    %1443 = vmatprep.subr.mxu0 0.0
    %1444 = vmatpush1.msra.mxu0 0.0
    %1445 = vmatprep.subr.mxu0 0.0
    %1446 = vmatpush1.msra.mxu0 0.0
    %1447 = vmatprep.subr.mxu0 0.0
    %1448 = vmatpush1.msra.mxu0 0.0
    %1449 = vmatprep.subr.mxu0 0.0
    %1450 = vmatpush1.msra.mxu0 0.0
    %1451 = vmatprep.subr.mxu0 0.0
    %1452 = vmatpush1.msra.mxu0 0.0
    %1453 = vmatprep.subr.mxu0 0.0
    %1454 = vmatpush1.msra.mxu0 0.0
    %1455 = vmatprep.subr.mxu0 0.0
    %1456 = vmatpush1.msra.mxu0 0.0
    %1457 = vmatprep.subr.mxu0 %v1275
    %1458 = vmatpush1.msra.mxu0 %v1274
    %1459 = vmatprep.subr.mxu0 0.0
    %1460 = vmatpush2.msra.mxu0 0.0
    %1461 = vmatprep.subr.mxu0 0.0
    %1462 = vmatpush2.msra.mxu0 0.0
    %1463 = vmatprep.subr.mxu0 0.0
    %1464 = vmatpush2.msra.mxu0 0.0
    %1465 = vmatprep.subr.mxu0 0.0
    %1466 = vmatpush2.msra.mxu0 0.0
    %1467 = vmatprep.subr.mxu0 0.0
    %1468 = vmatpush2.msra.mxu0 0.0
    %1469 = vmatprep.subr.mxu0 0.0
    %1470 = vmatpush2.msra.mxu0 0.0
    %1471 = vmatprep.subr.mxu0 0.0
    %1472 = vmatpush2.msra.mxu0 0.0
    %1473 = vmatprep.subr.mxu0 0.0
    %1474 = vmatpush2.msra.mxu0 0.0
    %1475 = vmatprep.subr.mxu0 0.0
    %1476 = vmatpush2.msra.mxu0 0.0
    %1477 = vmatprep.subr.mxu0 0.0
    %1478 = vmatpush2.msra.mxu0 0.0
    %1479 = vmatprep.subr.mxu0 0.0
    %1480 = vmatpush2.msra.mxu0 0.0
    %1481 = vmatprep.subr.mxu0 0.0
    %1482 = vmatpush2.msra.mxu0 0.0
    %1483 = vmatprep.subr.mxu0 0.0
    %1484 = vmatpush2.msra.mxu0 0.0
    %1485 = vmatprep.subr.mxu0 0.0
    %1486 = vmatpush2.msra.mxu0 0.0
    %1487 = vmatprep.subr.mxu0 0.0
    %1488 = vmatpush2.msra.mxu0 0.0
    %1489 = vmatprep.subr.mxu0 0.0
    %1490 = vmatpush2.msra.mxu0 0.0
    %1491 = vmatprep.mubr.f32.mxu0 0.0
    %1492 = vmatmul.mubr.f32.gmra.mxu0 %v1283
    %v1493 = vpop.f32.mrf.mxu0
    %v1494 = vadd.f32 0.0, %v1493
    %v1495 = vpop.f32.mrf.mxu0
    %v1496 = vadd.f32 0.0, %v1495
    %1497 = vdwg.mxu0
    %v1498 = vadd.f32 %v1247, %v1352
    %v1499 = vadd.f32 %v1248, %v1354
    %v1500 = vadd.f32 %v1249, %v1423
    %v1501 = vadd.f32 %v1250, %v1425
    %v1502 = vadd.f32 %v1251, %v1494
    %v1503 = vadd.f32 %v1252, %v1496
    %s1504 = scalar_lea.vmem %s1, 40
    %v1505 = vld [vmem:[%s1504] sm:$0xff]
    %1506 = vrot.lane.b32.xlu0 %v277, 108
    %v1507 = vpop.permute.xlu0 %1506
    %1508 = vrot.lane.b32.xlu0 %v278, 108
    %v1509 = vpop.permute.xlu0 %1508
    %1510 = vrot.lane.b32.xlu0 %v279, 108
    %v1511 = vpop.permute.xlu0 %1510
    %1512 = vrot.lane.b32.xlu0 %v280, 108
    %v1513 = vpop.permute.xlu0 %1512
    %1514 = vrot.lane.b32.xlu0 %v281, 108
    %v1515 = vpop.permute.xlu0 %1514
    %1516 = vrot.lane.b32.xlu0 %v282, 108
    %v1517 = vpop.permute.xlu0 %1516
    %1518 = vrot.lane.b32.xlu0 %v283, 108
    %v1519 = vpop.permute.xlu0 %1518
    %vm1520 = vcmask 883712
    %v1521 = vsel %vm1520, %v1507, %v1509
    %v1522 = vsel %vm1520, %v1509, %v1511
    %v1523 = vsel %vm1520, %v1511, %v1513
    %v1524 = vsel %vm1520, %v1513, %v1515
    %v1525 = vsel %vm1520, %v1515, %v1517
    %v1526 = vsel %vm1520, %v1517, %v1519
    %v1534 = vsel %vm318, %v1505, 0
    %1536 = vmatprep.subr.mxu0 0.0
    %1537 = vmatpush1.msra.mxu0 0.0
    %1538 = vmatprep.subr.mxu0 0.0
    %1539 = vmatpush1.msra.mxu0 0.0
    %1540 = vmatprep.subr.mxu0 0.0
    %1541 = vmatpush1.msra.mxu0 0.0
    %1542 = vmatprep.subr.mxu0 0.0
    %1543 = vmatpush1.msra.mxu0 0.0
    %1544 = vmatprep.subr.mxu0 0.0
    %1545 = vmatpush1.msra.mxu0 0.0
    %1546 = vmatprep.subr.mxu0 0.0
    %1547 = vmatpush1.msra.mxu0 0.0
    %1548 = vmatprep.subr.mxu0 0.0
    %1549 = vmatpush1.msra.mxu0 0.0
    %1550 = vmatprep.subr.mxu0 0.0
    %1551 = vmatpush1.msra.mxu0 0.0
    %1552 = vmatprep.subr.mxu0 0.0
    %1553 = vmatpush1.msra.mxu0 0.0
    %1554 = vmatprep.subr.mxu0 0.0
    %1555 = vmatpush1.msra.mxu0 0.0
    %1556 = vmatprep.subr.mxu0 0.0
    %1557 = vmatpush1.msra.mxu0 0.0
    %1558 = vmatprep.subr.mxu0 0.0
    %1559 = vmatpush1.msra.mxu0 0.0
    %1560 = vmatprep.subr.mxu0 0.0
    %1561 = vmatpush1.msra.mxu0 0.0
    %1562 = vmatprep.subr.mxu0 0.0
    %1563 = vmatpush1.msra.mxu0 0.0
    %1564 = vmatprep.subr.mxu0 0.0
    %1565 = vmatpush1.msra.mxu0 0.0
    %1566 = vmatprep.subr.mxu0 %v1522
    %1567 = vmatpush1.msra.mxu0 %v1521
    %1568 = vmatprep.subr.mxu0 0.0
    %1569 = vmatpush2.msra.mxu0 0.0
    %1570 = vmatprep.subr.mxu0 0.0
    %1571 = vmatpush2.msra.mxu0 0.0
    %1572 = vmatprep.subr.mxu0 0.0
    %1573 = vmatpush2.msra.mxu0 0.0
    %1574 = vmatprep.subr.mxu0 0.0
    %1575 = vmatpush2.msra.mxu0 0.0
    %1576 = vmatprep.subr.mxu0 0.0
    %1577 = vmatpush2.msra.mxu0 0.0
    %1578 = vmatprep.subr.mxu0 0.0
    %1579 = vmatpush2.msra.mxu0 0.0
    %1580 = vmatprep.subr.mxu0 0.0
    %1581 = vmatpush2.msra.mxu0 0.0
    %1582 = vmatprep.subr.mxu0 0.0
    %1583 = vmatpush2.msra.mxu0 0.0
    %1584 = vmatprep.subr.mxu0 0.0
    %1585 = vmatpush2.msra.mxu0 0.0
    %1586 = vmatprep.subr.mxu0 0.0
    %1587 = vmatpush2.msra.mxu0 0.0
    %1588 = vmatprep.subr.mxu0 0.0
    %1589 = vmatpush2.msra.mxu0 0.0
    %1590 = vmatprep.subr.mxu0 0.0
    %1591 = vmatpush2.msra.mxu0 0.0
    %1592 = vmatprep.subr.mxu0 0.0
    %1593 = vmatpush2.msra.mxu0 0.0
    %1594 = vmatprep.subr.mxu0 0.0
    %1595 = vmatpush2.msra.mxu0 0.0
    %1596 = vmatprep.subr.mxu0 0.0
    %1597 = vmatpush2.msra.mxu0 0.0
    %1598 = vmatprep.subr.mxu0 0.0
    %1599 = vmatpush2.msra.mxu0 0.0
    %1600 = vmatprep.mubr.f32.mxu0 0.0
    %1601 = vmatmul.mubr.f32.gmra.mxu0 %v1534
    %v1602 = vpop.f32.mrf.mxu0
    %v1603 = vadd.f32 0.0, %v1602
    %v1604 = vpop.f32.mrf.mxu0
    %v1605 = vadd.f32 0.0, %v1604
    %1606 = vdwg.mxu0
    %1607 = vmatprep.subr.mxu0 0.0
    %1608 = vmatpush1.msra.mxu0 0.0
    %1609 = vmatprep.subr.mxu0 0.0
    %1610 = vmatpush1.msra.mxu0 0.0
    %1611 = vmatprep.subr.mxu0 0.0
    %1612 = vmatpush1.msra.mxu0 0.0
    %1613 = vmatprep.subr.mxu0 0.0
    %1614 = vmatpush1.msra.mxu0 0.0
    %1615 = vmatprep.subr.mxu0 0.0
    %1616 = vmatpush1.msra.mxu0 0.0
    %1617 = vmatprep.subr.mxu0 0.0
    %1618 = vmatpush1.msra.mxu0 0.0
    %1619 = vmatprep.subr.mxu0 0.0
    %1620 = vmatpush1.msra.mxu0 0.0
    %1621 = vmatprep.subr.mxu0 0.0
    %1622 = vmatpush1.msra.mxu0 0.0
    %1623 = vmatprep.subr.mxu0 0.0
    %1624 = vmatpush1.msra.mxu0 0.0
    %1625 = vmatprep.subr.mxu0 0.0
    %1626 = vmatpush1.msra.mxu0 0.0
    %1627 = vmatprep.subr.mxu0 0.0
    %1628 = vmatpush1.msra.mxu0 0.0
    %1629 = vmatprep.subr.mxu0 0.0
    %1630 = vmatpush1.msra.mxu0 0.0
    %1631 = vmatprep.subr.mxu0 0.0
    %1632 = vmatpush1.msra.mxu0 0.0
    %1633 = vmatprep.subr.mxu0 0.0
    %1634 = vmatpush1.msra.mxu0 0.0
    %1635 = vmatprep.subr.mxu0 0.0
    %1636 = vmatpush1.msra.mxu0 0.0
    %1637 = vmatprep.subr.mxu0 %v1524
    %1638 = vmatpush1.msra.mxu0 %v1523
    %1639 = vmatprep.subr.mxu0 0.0
    %1640 = vmatpush2.msra.mxu0 0.0
    %1641 = vmatprep.subr.mxu0 0.0
    %1642 = vmatpush2.msra.mxu0 0.0
    %1643 = vmatprep.subr.mxu0 0.0
    %1644 = vmatpush2.msra.mxu0 0.0
    %1645 = vmatprep.subr.mxu0 0.0
    %1646 = vmatpush2.msra.mxu0 0.0
    %1647 = vmatprep.subr.mxu0 0.0
    %1648 = vmatpush2.msra.mxu0 0.0
    %1649 = vmatprep.subr.mxu0 0.0
    %1650 = vmatpush2.msra.mxu0 0.0
    %1651 = vmatprep.subr.mxu0 0.0
    %1652 = vmatpush2.msra.mxu0 0.0
    %1653 = vmatprep.subr.mxu0 0.0
    %1654 = vmatpush2.msra.mxu0 0.0
    %1655 = vmatprep.subr.mxu0 0.0
    %1656 = vmatpush2.msra.mxu0 0.0
    %1657 = vmatprep.subr.mxu0 0.0
    %1658 = vmatpush2.msra.mxu0 0.0
    %1659 = vmatprep.subr.mxu0 0.0
    %1660 = vmatpush2.msra.mxu0 0.0
    %1661 = vmatprep.subr.mxu0 0.0
    %1662 = vmatpush2.msra.mxu0 0.0
    %1663 = vmatprep.subr.mxu0 0.0
    %1664 = vmatpush2.msra.mxu0 0.0
    %1665 = vmatprep.subr.mxu0 0.0
    %1666 = vmatpush2.msra.mxu0 0.0
    %1667 = vmatprep.subr.mxu0 0.0
    %1668 = vmatpush2.msra.mxu0 0.0
    %1669 = vmatprep.subr.mxu0 0.0
    %1670 = vmatpush2.msra.mxu0 0.0
    %1671 = vmatprep.mubr.f32.mxu0 0.0
    %1672 = vmatmul.mubr.f32.gmra.mxu0 %v1534
    %v1673 = vpop.f32.mrf.mxu0
    %v1674 = vadd.f32 0.0, %v1673
    %v1675 = vpop.f32.mrf.mxu0
    %v1676 = vadd.f32 0.0, %v1675
    %1677 = vdwg.mxu0
    %1678 = vmatprep.subr.mxu0 0.0
    %1679 = vmatpush1.msra.mxu0 0.0
    %1680 = vmatprep.subr.mxu0 0.0
    %1681 = vmatpush1.msra.mxu0 0.0
    %1682 = vmatprep.subr.mxu0 0.0
    %1683 = vmatpush1.msra.mxu0 0.0
    %1684 = vmatprep.subr.mxu0 0.0
    %1685 = vmatpush1.msra.mxu0 0.0
    %1686 = vmatprep.subr.mxu0 0.0
    %1687 = vmatpush1.msra.mxu0 0.0
    %1688 = vmatprep.subr.mxu0 0.0
    %1689 = vmatpush1.msra.mxu0 0.0
    %1690 = vmatprep.subr.mxu0 0.0
    %1691 = vmatpush1.msra.mxu0 0.0
    %1692 = vmatprep.subr.mxu0 0.0
    %1693 = vmatpush1.msra.mxu0 0.0
    %1694 = vmatprep.subr.mxu0 0.0
    %1695 = vmatpush1.msra.mxu0 0.0
    %1696 = vmatprep.subr.mxu0 0.0
    %1697 = vmatpush1.msra.mxu0 0.0
    %1698 = vmatprep.subr.mxu0 0.0
    %1699 = vmatpush1.msra.mxu0 0.0
    %1700 = vmatprep.subr.mxu0 0.0
    %1701 = vmatpush1.msra.mxu0 0.0
    %1702 = vmatprep.subr.mxu0 0.0
    %1703 = vmatpush1.msra.mxu0 0.0
    %1704 = vmatprep.subr.mxu0 0.0
    %1705 = vmatpush1.msra.mxu0 0.0
    %1706 = vmatprep.subr.mxu0 0.0
    %1707 = vmatpush1.msra.mxu0 0.0
    %1708 = vmatprep.subr.mxu0 %v1526
    %1709 = vmatpush1.msra.mxu0 %v1525
    %1710 = vmatprep.subr.mxu0 0.0
    %1711 = vmatpush2.msra.mxu0 0.0
    %1712 = vmatprep.subr.mxu0 0.0
    %1713 = vmatpush2.msra.mxu0 0.0
    %1714 = vmatprep.subr.mxu0 0.0
    %1715 = vmatpush2.msra.mxu0 0.0
    %1716 = vmatprep.subr.mxu0 0.0
    %1717 = vmatpush2.msra.mxu0 0.0
    %1718 = vmatprep.subr.mxu0 0.0
    %1719 = vmatpush2.msra.mxu0 0.0
    %1720 = vmatprep.subr.mxu0 0.0
    %1721 = vmatpush2.msra.mxu0 0.0
    %1722 = vmatprep.subr.mxu0 0.0
    %1723 = vmatpush2.msra.mxu0 0.0
    %1724 = vmatprep.subr.mxu0 0.0
    %1725 = vmatpush2.msra.mxu0 0.0
    %1726 = vmatprep.subr.mxu0 0.0
    %1727 = vmatpush2.msra.mxu0 0.0
    %1728 = vmatprep.subr.mxu0 0.0
    %1729 = vmatpush2.msra.mxu0 0.0
    %1730 = vmatprep.subr.mxu0 0.0
    %1731 = vmatpush2.msra.mxu0 0.0
    %1732 = vmatprep.subr.mxu0 0.0
    %1733 = vmatpush2.msra.mxu0 0.0
    %1734 = vmatprep.subr.mxu0 0.0
    %1735 = vmatpush2.msra.mxu0 0.0
    %1736 = vmatprep.subr.mxu0 0.0
    %1737 = vmatpush2.msra.mxu0 0.0
    %1738 = vmatprep.subr.mxu0 0.0
    %1739 = vmatpush2.msra.mxu0 0.0
    %1740 = vmatprep.subr.mxu0 0.0
    %1741 = vmatpush2.msra.mxu0 0.0
    %1742 = vmatprep.mubr.f32.mxu0 0.0
    %1743 = vmatmul.mubr.f32.gmra.mxu0 %v1534
    %v1744 = vpop.f32.mrf.mxu0
    %v1745 = vadd.f32 0.0, %v1744
    %v1746 = vpop.f32.mrf.mxu0
    %v1747 = vadd.f32 0.0, %v1746
    %1748 = vdwg.mxu0
    %v1749 = vadd.f32 %v1498, %v1603
    %v1750 = vadd.f32 %v1499, %v1605
    %v1751 = vadd.f32 %v1500, %v1674
    %v1752 = vadd.f32 %v1501, %v1676
    %v1753 = vadd.f32 %v1502, %v1745
    %v1754 = vadd.f32 %v1503, %v1747
    %s1755 = scalar_lea.vmem %s1, 48
    %v1756 = vld [vmem:[%s1755] sm:$0xff]
    %1757 = vrot.lane.b32.xlu0 %v277, 92
    %v1758 = vpop.permute.xlu0 %1757
    %1759 = vrot.lane.b32.xlu0 %v278, 92
    %v1760 = vpop.permute.xlu0 %1759
    %1761 = vrot.lane.b32.xlu0 %v279, 92
    %v1762 = vpop.permute.xlu0 %1761
    %1763 = vrot.lane.b32.xlu0 %v280, 92
    %v1764 = vpop.permute.xlu0 %1763
    %1765 = vrot.lane.b32.xlu0 %v281, 92
    %v1766 = vpop.permute.xlu0 %1765
    %1767 = vrot.lane.b32.xlu0 %v282, 92
    %v1768 = vpop.permute.xlu0 %1767
    %1769 = vrot.lane.b32.xlu0 %v283, 92
    %v1770 = vpop.permute.xlu0 %1769
    %vm1771 = vcmask 752640
    %v1772 = vsel %vm1771, %v1758, %v1760
    %v1773 = vsel %vm1771, %v1760, %v1762
    %v1774 = vsel %vm1771, %v1762, %v1764
    %v1775 = vsel %vm1771, %v1764, %v1766
    %v1776 = vsel %vm1771, %v1766, %v1768
    %v1777 = vsel %vm1771, %v1768, %v1770
    %v1785 = vsel %vm318, %v1756, 0
    %1787 = vmatprep.subr.mxu0 0.0
    %1788 = vmatpush1.msra.mxu0 0.0
    %1789 = vmatprep.subr.mxu0 0.0
    %1790 = vmatpush1.msra.mxu0 0.0
    %1791 = vmatprep.subr.mxu0 0.0
    %1792 = vmatpush1.msra.mxu0 0.0
    %1793 = vmatprep.subr.mxu0 0.0
    %1794 = vmatpush1.msra.mxu0 0.0
    %1795 = vmatprep.subr.mxu0 0.0
    %1796 = vmatpush1.msra.mxu0 0.0
    %1797 = vmatprep.subr.mxu0 0.0
    %1798 = vmatpush1.msra.mxu0 0.0
    %1799 = vmatprep.subr.mxu0 0.0
    %1800 = vmatpush1.msra.mxu0 0.0
    %1801 = vmatprep.subr.mxu0 0.0
    %1802 = vmatpush1.msra.mxu0 0.0
    %1803 = vmatprep.subr.mxu0 0.0
    %1804 = vmatpush1.msra.mxu0 0.0
    %1805 = vmatprep.subr.mxu0 0.0
    %1806 = vmatpush1.msra.mxu0 0.0
    %1807 = vmatprep.subr.mxu0 0.0
    %1808 = vmatpush1.msra.mxu0 0.0
    %1809 = vmatprep.subr.mxu0 0.0
    %1810 = vmatpush1.msra.mxu0 0.0
    %1811 = vmatprep.subr.mxu0 0.0
    %1812 = vmatpush1.msra.mxu0 0.0
    %1813 = vmatprep.subr.mxu0 0.0
    %1814 = vmatpush1.msra.mxu0 0.0
    %1815 = vmatprep.subr.mxu0 0.0
    %1816 = vmatpush1.msra.mxu0 0.0
    %1817 = vmatprep.subr.mxu0 %v1773
    %1818 = vmatpush1.msra.mxu0 %v1772
    %1819 = vmatprep.subr.mxu0 0.0
    %1820 = vmatpush2.msra.mxu0 0.0
    %1821 = vmatprep.subr.mxu0 0.0
    %1822 = vmatpush2.msra.mxu0 0.0
    %1823 = vmatprep.subr.mxu0 0.0
    %1824 = vmatpush2.msra.mxu0 0.0
    %1825 = vmatprep.subr.mxu0 0.0
    %1826 = vmatpush2.msra.mxu0 0.0
    %1827 = vmatprep.subr.mxu0 0.0
    %1828 = vmatpush2.msra.mxu0 0.0
    %1829 = vmatprep.subr.mxu0 0.0
    %1830 = vmatpush2.msra.mxu0 0.0
    %1831 = vmatprep.subr.mxu0 0.0
    %1832 = vmatpush2.msra.mxu0 0.0
    %1833 = vmatprep.subr.mxu0 0.0
    %1834 = vmatpush2.msra.mxu0 0.0
    %1835 = vmatprep.subr.mxu0 0.0
    %1836 = vmatpush2.msra.mxu0 0.0
    %1837 = vmatprep.subr.mxu0 0.0
    %1838 = vmatpush2.msra.mxu0 0.0
    %1839 = vmatprep.subr.mxu0 0.0
    %1840 = vmatpush2.msra.mxu0 0.0
    %1841 = vmatprep.subr.mxu0 0.0
    %1842 = vmatpush2.msra.mxu0 0.0
    %1843 = vmatprep.subr.mxu0 0.0
    %1844 = vmatpush2.msra.mxu0 0.0
    %1845 = vmatprep.subr.mxu0 0.0
    %1846 = vmatpush2.msra.mxu0 0.0
    %1847 = vmatprep.subr.mxu0 0.0
    %1848 = vmatpush2.msra.mxu0 0.0
    %1849 = vmatprep.subr.mxu0 0.0
    %1850 = vmatpush2.msra.mxu0 0.0
    %1851 = vmatprep.mubr.f32.mxu0 0.0
    %1852 = vmatmul.mubr.f32.gmra.mxu0 %v1785
    %v1853 = vpop.f32.mrf.mxu0
    %v1854 = vadd.f32 0.0, %v1853
    %v1855 = vpop.f32.mrf.mxu0
    %v1856 = vadd.f32 0.0, %v1855
    %1857 = vdwg.mxu0
    %1858 = vmatprep.subr.mxu0 0.0
    %1859 = vmatpush1.msra.mxu0 0.0
    %1860 = vmatprep.subr.mxu0 0.0
    %1861 = vmatpush1.msra.mxu0 0.0
    %1862 = vmatprep.subr.mxu0 0.0
    %1863 = vmatpush1.msra.mxu0 0.0
    %1864 = vmatprep.subr.mxu0 0.0
    %1865 = vmatpush1.msra.mxu0 0.0
    %1866 = vmatprep.subr.mxu0 0.0
    %1867 = vmatpush1.msra.mxu0 0.0
    %1868 = vmatprep.subr.mxu0 0.0
    %1869 = vmatpush1.msra.mxu0 0.0
    %1870 = vmatprep.subr.mxu0 0.0
    %1871 = vmatpush1.msra.mxu0 0.0
    %1872 = vmatprep.subr.mxu0 0.0
    %1873 = vmatpush1.msra.mxu0 0.0
    %1874 = vmatprep.subr.mxu0 0.0
    %1875 = vmatpush1.msra.mxu0 0.0
    %1876 = vmatprep.subr.mxu0 0.0
    %1877 = vmatpush1.msra.mxu0 0.0
    %1878 = vmatprep.subr.mxu0 0.0
    %1879 = vmatpush1.msra.mxu0 0.0
    %1880 = vmatprep.subr.mxu0 0.0
    %1881 = vmatpush1.msra.mxu0 0.0
    %1882 = vmatprep.subr.mxu0 0.0
    %1883 = vmatpush1.msra.mxu0 0.0
    %1884 = vmatprep.subr.mxu0 0.0
    %1885 = vmatpush1.msra.mxu0 0.0
    %1886 = vmatprep.subr.mxu0 0.0
    %1887 = vmatpush1.msra.mxu0 0.0
    %1888 = vmatprep.subr.mxu0 %v1775
    %1889 = vmatpush1.msra.mxu0 %v1774
    %1890 = vmatprep.subr.mxu0 0.0
    %1891 = vmatpush2.msra.mxu0 0.0
    %1892 = vmatprep.subr.mxu0 0.0
    %1893 = vmatpush2.msra.mxu0 0.0
    %1894 = vmatprep.subr.mxu0 0.0
    %1895 = vmatpush2.msra.mxu0 0.0
    %1896 = vmatprep.subr.mxu0 0.0
    %1897 = vmatpush2.msra.mxu0 0.0
    %1898 = vmatprep.subr.mxu0 0.0
    %1899 = vmatpush2.msra.mxu0 0.0
    %1900 = vmatprep.subr.mxu0 0.0
    %1901 = vmatpush2.msra.mxu0 0.0
    %1902 = vmatprep.subr.mxu0 0.0
    %1903 = vmatpush2.msra.mxu0 0.0
    %1904 = vmatprep.subr.mxu0 0.0
    %1905 = vmatpush2.msra.mxu0 0.0
    %1906 = vmatprep.subr.mxu0 0.0
    %1907 = vmatpush2.msra.mxu0 0.0
    %1908 = vmatprep.subr.mxu0 0.0
    %1909 = vmatpush2.msra.mxu0 0.0
    %1910 = vmatprep.subr.mxu0 0.0
    %1911 = vmatpush2.msra.mxu0 0.0
    %1912 = vmatprep.subr.mxu0 0.0
    %1913 = vmatpush2.msra.mxu0 0.0
    %1914 = vmatprep.subr.mxu0 0.0
    %1915 = vmatpush2.msra.mxu0 0.0
    %1916 = vmatprep.subr.mxu0 0.0
    %1917 = vmatpush2.msra.mxu0 0.0
    %1918 = vmatprep.subr.mxu0 0.0
    %1919 = vmatpush2.msra.mxu0 0.0
    %1920 = vmatprep.subr.mxu0 0.0
    %1921 = vmatpush2.msra.mxu0 0.0
    %1922 = vmatprep.mubr.f32.mxu0 0.0
    %1923 = vmatmul.mubr.f32.gmra.mxu0 %v1785
    %v1924 = vpop.f32.mrf.mxu0
    %v1925 = vadd.f32 0.0, %v1924
    %v1926 = vpop.f32.mrf.mxu0
    %v1927 = vadd.f32 0.0, %v1926
    %1928 = vdwg.mxu0
    %1929 = vmatprep.subr.mxu0 0.0
    %1930 = vmatpush1.msra.mxu0 0.0
    %1931 = vmatprep.subr.mxu0 0.0
    %1932 = vmatpush1.msra.mxu0 0.0
    %1933 = vmatprep.subr.mxu0 0.0
    %1934 = vmatpush1.msra.mxu0 0.0
    %1935 = vmatprep.subr.mxu0 0.0
    %1936 = vmatpush1.msra.mxu0 0.0
    %1937 = vmatprep.subr.mxu0 0.0
    %1938 = vmatpush1.msra.mxu0 0.0
    %1939 = vmatprep.subr.mxu0 0.0
    %1940 = vmatpush1.msra.mxu0 0.0
    %1941 = vmatprep.subr.mxu0 0.0
    %1942 = vmatpush1.msra.mxu0 0.0
    %1943 = vmatprep.subr.mxu0 0.0
    %1944 = vmatpush1.msra.mxu0 0.0
    %1945 = vmatprep.subr.mxu0 0.0
    %1946 = vmatpush1.msra.mxu0 0.0
    %1947 = vmatprep.subr.mxu0 0.0
    %1948 = vmatpush1.msra.mxu0 0.0
    %1949 = vmatprep.subr.mxu0 0.0
    %1950 = vmatpush1.msra.mxu0 0.0
    %1951 = vmatprep.subr.mxu0 0.0
    %1952 = vmatpush1.msra.mxu0 0.0
    %1953 = vmatprep.subr.mxu0 0.0
    %1954 = vmatpush1.msra.mxu0 0.0
    %1955 = vmatprep.subr.mxu0 0.0
    %1956 = vmatpush1.msra.mxu0 0.0
    %1957 = vmatprep.subr.mxu0 0.0
    %1958 = vmatpush1.msra.mxu0 0.0
    %1959 = vmatprep.subr.mxu0 %v1777
    %1960 = vmatpush1.msra.mxu0 %v1776
    %1961 = vmatprep.subr.mxu0 0.0
    %1962 = vmatpush2.msra.mxu0 0.0
    %1963 = vmatprep.subr.mxu0 0.0
    %1964 = vmatpush2.msra.mxu0 0.0
    %1965 = vmatprep.subr.mxu0 0.0
    %1966 = vmatpush2.msra.mxu0 0.0
    %1967 = vmatprep.subr.mxu0 0.0
    %1968 = vmatpush2.msra.mxu0 0.0
    %1969 = vmatprep.subr.mxu0 0.0
    %1970 = vmatpush2.msra.mxu0 0.0
    %1971 = vmatprep.subr.mxu0 0.0
    %1972 = vmatpush2.msra.mxu0 0.0
    %1973 = vmatprep.subr.mxu0 0.0
    %1974 = vmatpush2.msra.mxu0 0.0
    %1975 = vmatprep.subr.mxu0 0.0
    %1976 = vmatpush2.msra.mxu0 0.0
    %1977 = vmatprep.subr.mxu0 0.0
    %1978 = vmatpush2.msra.mxu0 0.0
    %1979 = vmatprep.subr.mxu0 0.0
    %1980 = vmatpush2.msra.mxu0 0.0
    %1981 = vmatprep.subr.mxu0 0.0
    %1982 = vmatpush2.msra.mxu0 0.0
    %1983 = vmatprep.subr.mxu0 0.0
    %1984 = vmatpush2.msra.mxu0 0.0
    %1985 = vmatprep.subr.mxu0 0.0
    %1986 = vmatpush2.msra.mxu0 0.0
    %1987 = vmatprep.subr.mxu0 0.0
    %1988 = vmatpush2.msra.mxu0 0.0
    %1989 = vmatprep.subr.mxu0 0.0
    %1990 = vmatpush2.msra.mxu0 0.0
    %1991 = vmatprep.subr.mxu0 0.0
    %1992 = vmatpush2.msra.mxu0 0.0
    %1993 = vmatprep.mubr.f32.mxu0 0.0
    %1994 = vmatmul.mubr.f32.gmra.mxu0 %v1785
    %v1995 = vpop.f32.mrf.mxu0
    %v1996 = vadd.f32 0.0, %v1995
    %v1997 = vpop.f32.mrf.mxu0
    %v1998 = vadd.f32 0.0, %v1997
    %1999 = vdwg.mxu0
    %v2000 = vadd.f32 %v1749, %v1854
    %v2001 = vadd.f32 %v1750, %v1856
    %v2002 = vadd.f32 %v1751, %v1925
    %v2003 = vadd.f32 %v1752, %v1927
    %v2004 = vadd.f32 %v1753, %v1996
    %v2005 = vadd.f32 %v1754, %v1998
    %s2006 = scalar_lea.vmem %s1, 56
    %v2007 = vld [vmem:[%s2006] sm:$0xff]
    %2008 = vrot.lane.b32.xlu0 %v277, 91
    %v2009 = vpop.permute.xlu0 %2008
    %2010 = vrot.lane.b32.xlu0 %v278, 91
    %v2011 = vpop.permute.xlu0 %2010
    %2012 = vrot.lane.b32.xlu0 %v279, 91
    %v2013 = vpop.permute.xlu0 %2012
    %2014 = vrot.lane.b32.xlu0 %v280, 91
    %v2015 = vpop.permute.xlu0 %2014
    %2016 = vrot.lane.b32.xlu0 %v281, 91
    %v2017 = vpop.permute.xlu0 %2016
    %2018 = vrot.lane.b32.xlu0 %v282, 91
    %v2019 = vpop.permute.xlu0 %2018
    %2020 = vrot.lane.b32.xlu0 %v283, 91
    %v2021 = vpop.permute.xlu0 %2020
    %vm2022 = vcmask 744448
    %v2023 = vsel %vm2022, %v2009, %v2011
    %v2024 = vsel %vm2022, %v2011, %v2013
    %v2025 = vsel %vm2022, %v2013, %v2015
    %v2026 = vsel %vm2022, %v2015, %v2017
    %v2027 = vsel %vm2022, %v2017, %v2019
    %v2028 = vsel %vm2022, %v2019, %v2021
    %v2036 = vsel %vm318, %v2007, 0
    %2038 = vmatprep.subr.mxu0 0.0
    %2039 = vmatpush1.msra.mxu0 0.0
    %2040 = vmatprep.subr.mxu0 0.0
    %2041 = vmatpush1.msra.mxu0 0.0
    %2042 = vmatprep.subr.mxu0 0.0
    %2043 = vmatpush1.msra.mxu0 0.0
    %2044 = vmatprep.subr.mxu0 0.0
    %2045 = vmatpush1.msra.mxu0 0.0
    %2046 = vmatprep.subr.mxu0 0.0
    %2047 = vmatpush1.msra.mxu0 0.0
    %2048 = vmatprep.subr.mxu0 0.0
    %2049 = vmatpush1.msra.mxu0 0.0
    %2050 = vmatprep.subr.mxu0 0.0
    %2051 = vmatpush1.msra.mxu0 0.0
    %2052 = vmatprep.subr.mxu0 0.0
    %2053 = vmatpush1.msra.mxu0 0.0
    %2054 = vmatprep.subr.mxu0 0.0
    %2055 = vmatpush1.msra.mxu0 0.0
    %2056 = vmatprep.subr.mxu0 0.0
    %2057 = vmatpush1.msra.mxu0 0.0
    %2058 = vmatprep.subr.mxu0 0.0
    %2059 = vmatpush1.msra.mxu0 0.0
    %2060 = vmatprep.subr.mxu0 0.0
    %2061 = vmatpush1.msra.mxu0 0.0
    %2062 = vmatprep.subr.mxu0 0.0
    %2063 = vmatpush1.msra.mxu0 0.0
    %2064 = vmatprep.subr.mxu0 0.0
    %2065 = vmatpush1.msra.mxu0 0.0
    %2066 = vmatprep.subr.mxu0 0.0
    %2067 = vmatpush1.msra.mxu0 0.0
    %2068 = vmatprep.subr.mxu0 %v2024
    %2069 = vmatpush1.msra.mxu0 %v2023
    %2070 = vmatprep.subr.mxu0 0.0
    %2071 = vmatpush2.msra.mxu0 0.0
    %2072 = vmatprep.subr.mxu0 0.0
    %2073 = vmatpush2.msra.mxu0 0.0
    %2074 = vmatprep.subr.mxu0 0.0
    %2075 = vmatpush2.msra.mxu0 0.0
    %2076 = vmatprep.subr.mxu0 0.0
    %2077 = vmatpush2.msra.mxu0 0.0
    %2078 = vmatprep.subr.mxu0 0.0
    %2079 = vmatpush2.msra.mxu0 0.0
    %2080 = vmatprep.subr.mxu0 0.0
    %2081 = vmatpush2.msra.mxu0 0.0
    %2082 = vmatprep.subr.mxu0 0.0
    %2083 = vmatpush2.msra.mxu0 0.0
    %2084 = vmatprep.subr.mxu0 0.0
    %2085 = vmatpush2.msra.mxu0 0.0
    %2086 = vmatprep.subr.mxu0 0.0
    %2087 = vmatpush2.msra.mxu0 0.0
    %2088 = vmatprep.subr.mxu0 0.0
    %2089 = vmatpush2.msra.mxu0 0.0
    %2090 = vmatprep.subr.mxu0 0.0
    %2091 = vmatpush2.msra.mxu0 0.0
    %2092 = vmatprep.subr.mxu0 0.0
    %2093 = vmatpush2.msra.mxu0 0.0
    %2094 = vmatprep.subr.mxu0 0.0
    %2095 = vmatpush2.msra.mxu0 0.0
    %2096 = vmatprep.subr.mxu0 0.0
    %2097 = vmatpush2.msra.mxu0 0.0
    %2098 = vmatprep.subr.mxu0 0.0
    %2099 = vmatpush2.msra.mxu0 0.0
    %2100 = vmatprep.subr.mxu0 0.0
    %2101 = vmatpush2.msra.mxu0 0.0
    %2102 = vmatprep.mubr.f32.mxu0 0.0
    %2103 = vmatmul.mubr.f32.gmra.mxu0 %v2036
    %v2104 = vpop.f32.mrf.mxu0
    %v2105 = vadd.f32 0.0, %v2104
    %v2106 = vpop.f32.mrf.mxu0
    %v2107 = vadd.f32 0.0, %v2106
    %2108 = vdwg.mxu0
    %2109 = vmatprep.subr.mxu0 0.0
    %2110 = vmatpush1.msra.mxu0 0.0
    %2111 = vmatprep.subr.mxu0 0.0
    %2112 = vmatpush1.msra.mxu0 0.0
    %2113 = vmatprep.subr.mxu0 0.0
    %2114 = vmatpush1.msra.mxu0 0.0
    %2115 = vmatprep.subr.mxu0 0.0
    %2116 = vmatpush1.msra.mxu0 0.0
    %2117 = vmatprep.subr.mxu0 0.0
    %2118 = vmatpush1.msra.mxu0 0.0
    %2119 = vmatprep.subr.mxu0 0.0
    %2120 = vmatpush1.msra.mxu0 0.0
    %2121 = vmatprep.subr.mxu0 0.0
    %2122 = vmatpush1.msra.mxu0 0.0
    %2123 = vmatprep.subr.mxu0 0.0
    %2124 = vmatpush1.msra.mxu0 0.0
    %2125 = vmatprep.subr.mxu0 0.0
    %2126 = vmatpush1.msra.mxu0 0.0
    %2127 = vmatprep.subr.mxu0 0.0
    %2128 = vmatpush1.msra.mxu0 0.0
    %2129 = vmatprep.subr.mxu0 0.0
    %2130 = vmatpush1.msra.mxu0 0.0
    %2131 = vmatprep.subr.mxu0 0.0
    %2132 = vmatpush1.msra.mxu0 0.0
    %2133 = vmatprep.subr.mxu0 0.0
    %2134 = vmatpush1.msra.mxu0 0.0
    %2135 = vmatprep.subr.mxu0 0.0
    %2136 = vmatpush1.msra.mxu0 0.0
    %2137 = vmatprep.subr.mxu0 0.0
    %2138 = vmatpush1.msra.mxu0 0.0
    %2139 = vmatprep.subr.mxu0 %v2026
    %2140 = vmatpush1.msra.mxu0 %v2025
    %2141 = vmatprep.subr.mxu0 0.0
    %2142 = vmatpush2.msra.mxu0 0.0
    %2143 = vmatprep.subr.mxu0 0.0
    %2144 = vmatpush2.msra.mxu0 0.0
    %2145 = vmatprep.subr.mxu0 0.0
    %2146 = vmatpush2.msra.mxu0 0.0
    %2147 = vmatprep.subr.mxu0 0.0
    %2148 = vmatpush2.msra.mxu0 0.0
    %2149 = vmatprep.subr.mxu0 0.0
    %2150 = vmatpush2.msra.mxu0 0.0
    %2151 = vmatprep.subr.mxu0 0.0
    %2152 = vmatpush2.msra.mxu0 0.0
    %2153 = vmatprep.subr.mxu0 0.0
    %2154 = vmatpush2.msra.mxu0 0.0
    %2155 = vmatprep.subr.mxu0 0.0
    %2156 = vmatpush2.msra.mxu0 0.0
    %2157 = vmatprep.subr.mxu0 0.0
    %2158 = vmatpush2.msra.mxu0 0.0
    %2159 = vmatprep.subr.mxu0 0.0
    %2160 = vmatpush2.msra.mxu0 0.0
    %2161 = vmatprep.subr.mxu0 0.0
    %2162 = vmatpush2.msra.mxu0 0.0
    %2163 = vmatprep.subr.mxu0 0.0
    %2164 = vmatpush2.msra.mxu0 0.0
    %2165 = vmatprep.subr.mxu0 0.0
    %2166 = vmatpush2.msra.mxu0 0.0
    %2167 = vmatprep.subr.mxu0 0.0
    %2168 = vmatpush2.msra.mxu0 0.0
    %2169 = vmatprep.subr.mxu0 0.0
    %2170 = vmatpush2.msra.mxu0 0.0
    %2171 = vmatprep.subr.mxu0 0.0
    %2172 = vmatpush2.msra.mxu0 0.0
    %2173 = vmatprep.mubr.f32.mxu0 0.0
    %2174 = vmatmul.mubr.f32.gmra.mxu0 %v2036
    %v2175 = vpop.f32.mrf.mxu0
    %v2176 = vadd.f32 0.0, %v2175
    %v2177 = vpop.f32.mrf.mxu0
    %v2178 = vadd.f32 0.0, %v2177
    %2179 = vdwg.mxu0
    %2180 = vmatprep.subr.mxu0 0.0
    %2181 = vmatpush1.msra.mxu0 0.0
    %2182 = vmatprep.subr.mxu0 0.0
    %2183 = vmatpush1.msra.mxu0 0.0
    %2184 = vmatprep.subr.mxu0 0.0
    %2185 = vmatpush1.msra.mxu0 0.0
    %2186 = vmatprep.subr.mxu0 0.0
    %2187 = vmatpush1.msra.mxu0 0.0
    %2188 = vmatprep.subr.mxu0 0.0
    %2189 = vmatpush1.msra.mxu0 0.0
    %2190 = vmatprep.subr.mxu0 0.0
    %2191 = vmatpush1.msra.mxu0 0.0
    %2192 = vmatprep.subr.mxu0 0.0
    %2193 = vmatpush1.msra.mxu0 0.0
    %2194 = vmatprep.subr.mxu0 0.0
    %2195 = vmatpush1.msra.mxu0 0.0
    %2196 = vmatprep.subr.mxu0 0.0
    %2197 = vmatpush1.msra.mxu0 0.0
    %2198 = vmatprep.subr.mxu0 0.0
    %2199 = vmatpush1.msra.mxu0 0.0
    %2200 = vmatprep.subr.mxu0 0.0
    %2201 = vmatpush1.msra.mxu0 0.0
    %2202 = vmatprep.subr.mxu0 0.0
    %2203 = vmatpush1.msra.mxu0 0.0
    %2204 = vmatprep.subr.mxu0 0.0
    %2205 = vmatpush1.msra.mxu0 0.0
    %2206 = vmatprep.subr.mxu0 0.0
    %2207 = vmatpush1.msra.mxu0 0.0
    %2208 = vmatprep.subr.mxu0 0.0
    %2209 = vmatpush1.msra.mxu0 0.0
    %2210 = vmatprep.subr.mxu0 %v2028
    %2211 = vmatpush1.msra.mxu0 %v2027
    %2212 = vmatprep.subr.mxu0 0.0
    %2213 = vmatpush2.msra.mxu0 0.0
    %2214 = vmatprep.subr.mxu0 0.0
    %2215 = vmatpush2.msra.mxu0 0.0
    %2216 = vmatprep.subr.mxu0 0.0
    %2217 = vmatpush2.msra.mxu0 0.0
    %2218 = vmatprep.subr.mxu0 0.0
    %2219 = vmatpush2.msra.mxu0 0.0
    %2220 = vmatprep.subr.mxu0 0.0
    %2221 = vmatpush2.msra.mxu0 0.0
    %2222 = vmatprep.subr.mxu0 0.0
    %2223 = vmatpush2.msra.mxu0 0.0
    %2224 = vmatprep.subr.mxu0 0.0
    %2225 = vmatpush2.msra.mxu0 0.0
    %2226 = vmatprep.subr.mxu0 0.0
    %2227 = vmatpush2.msra.mxu0 0.0
    %2228 = vmatprep.subr.mxu0 0.0
    %2229 = vmatpush2.msra.mxu0 0.0
    %2230 = vmatprep.subr.mxu0 0.0
    %2231 = vmatpush2.msra.mxu0 0.0
    %2232 = vmatprep.subr.mxu0 0.0
    %2233 = vmatpush2.msra.mxu0 0.0
    %2234 = vmatprep.subr.mxu0 0.0
    %2235 = vmatpush2.msra.mxu0 0.0
    %2236 = vmatprep.subr.mxu0 0.0
    %2237 = vmatpush2.msra.mxu0 0.0
    %2238 = vmatprep.subr.mxu0 0.0
    %2239 = vmatpush2.msra.mxu0 0.0
    %2240 = vmatprep.subr.mxu0 0.0
    %2241 = vmatpush2.msra.mxu0 0.0
    %2242 = vmatprep.subr.mxu0 0.0
    %2243 = vmatpush2.msra.mxu0 0.0
    %2244 = vmatprep.mubr.f32.mxu0 0.0
    %2245 = vmatmul.mubr.f32.gmra.mxu0 %v2036
    %v2246 = vpop.f32.mrf.mxu0
    %v2247 = vadd.f32 0.0, %v2246
    %v2248 = vpop.f32.mrf.mxu0
    %v2249 = vadd.f32 0.0, %v2248
    %2250 = vdwg.mxu0
    %v2251 = vadd.f32 %v2000, %v2105
    %v2252 = vadd.f32 %v2001, %v2107
    %v2253 = vadd.f32 %v2002, %v2176
    %v2254 = vadd.f32 %v2003, %v2178
    %v2255 = vadd.f32 %v2004, %v2247
    %v2256 = vadd.f32 %v2005, %v2249
    %s2257 = scalar_lea.vmem %s1, 64
    %v2258 = vld [vmem:[%s2257] sm:$0xff]
    %2259 = vrot.lane.b32.xlu0 %v277, 90
    %v2260 = vpop.permute.xlu0 %2259
    %2261 = vrot.lane.b32.xlu0 %v278, 90
    %v2262 = vpop.permute.xlu0 %2261
    %2263 = vrot.lane.b32.xlu0 %v279, 90
    %v2264 = vpop.permute.xlu0 %2263
    %2265 = vrot.lane.b32.xlu0 %v280, 90
    %v2266 = vpop.permute.xlu0 %2265
    %2267 = vrot.lane.b32.xlu0 %v281, 90
    %v2268 = vpop.permute.xlu0 %2267
    %2269 = vrot.lane.b32.xlu0 %v282, 90
    %v2270 = vpop.permute.xlu0 %2269
    %2271 = vrot.lane.b32.xlu0 %v283, 90
    %v2272 = vpop.permute.xlu0 %2271
    %vm2273 = vcmask 736256
    %v2274 = vsel %vm2273, %v2260, %v2262
    %v2275 = vsel %vm2273, %v2262, %v2264
    %v2276 = vsel %vm2273, %v2264, %v2266
    %v2277 = vsel %vm2273, %v2266, %v2268
    %v2278 = vsel %vm2273, %v2268, %v2270
    %v2279 = vsel %vm2273, %v2270, %v2272
    %v2287 = vsel %vm318, %v2258, 0
    %2289 = vmatprep.subr.mxu0 0.0
    %2290 = vmatpush1.msra.mxu0 0.0
    %2291 = vmatprep.subr.mxu0 0.0
    %2292 = vmatpush1.msra.mxu0 0.0
    %2293 = vmatprep.subr.mxu0 0.0
    %2294 = vmatpush1.msra.mxu0 0.0
    %2295 = vmatprep.subr.mxu0 0.0
    %2296 = vmatpush1.msra.mxu0 0.0
    %2297 = vmatprep.subr.mxu0 0.0
    %2298 = vmatpush1.msra.mxu0 0.0
    %2299 = vmatprep.subr.mxu0 0.0
    %2300 = vmatpush1.msra.mxu0 0.0
    %2301 = vmatprep.subr.mxu0 0.0
    %2302 = vmatpush1.msra.mxu0 0.0
    %2303 = vmatprep.subr.mxu0 0.0
    %2304 = vmatpush1.msra.mxu0 0.0
    %2305 = vmatprep.subr.mxu0 0.0
    %2306 = vmatpush1.msra.mxu0 0.0
    %2307 = vmatprep.subr.mxu0 0.0
    %2308 = vmatpush1.msra.mxu0 0.0
    %2309 = vmatprep.subr.mxu0 0.0
    %2310 = vmatpush1.msra.mxu0 0.0
    %2311 = vmatprep.subr.mxu0 0.0
    %2312 = vmatpush1.msra.mxu0 0.0
    %2313 = vmatprep.subr.mxu0 0.0
    %2314 = vmatpush1.msra.mxu0 0.0
    %2315 = vmatprep.subr.mxu0 0.0
    %2316 = vmatpush1.msra.mxu0 0.0
    %2317 = vmatprep.subr.mxu0 0.0
    %2318 = vmatpush1.msra.mxu0 0.0
    %2319 = vmatprep.subr.mxu0 %v2275
    %2320 = vmatpush1.msra.mxu0 %v2274
    %2321 = vmatprep.subr.mxu0 0.0
    %2322 = vmatpush2.msra.mxu0 0.0
    %2323 = vmatprep.subr.mxu0 0.0
    %2324 = vmatpush2.msra.mxu0 0.0
    %2325 = vmatprep.subr.mxu0 0.0
    %2326 = vmatpush2.msra.mxu0 0.0
    %2327 = vmatprep.subr.mxu0 0.0
    %2328 = vmatpush2.msra.mxu0 0.0
    %2329 = vmatprep.subr.mxu0 0.0
    %2330 = vmatpush2.msra.mxu0 0.0
    %2331 = vmatprep.subr.mxu0 0.0
    %2332 = vmatpush2.msra.mxu0 0.0
    %2333 = vmatprep.subr.mxu0 0.0
    %2334 = vmatpush2.msra.mxu0 0.0
    %2335 = vmatprep.subr.mxu0 0.0
    %2336 = vmatpush2.msra.mxu0 0.0
    %2337 = vmatprep.subr.mxu0 0.0
    %2338 = vmatpush2.msra.mxu0 0.0
    %2339 = vmatprep.subr.mxu0 0.0
    %2340 = vmatpush2.msra.mxu0 0.0
    %2341 = vmatprep.subr.mxu0 0.0
    %2342 = vmatpush2.msra.mxu0 0.0
    %2343 = vmatprep.subr.mxu0 0.0
    %2344 = vmatpush2.msra.mxu0 0.0
    %2345 = vmatprep.subr.mxu0 0.0
    %2346 = vmatpush2.msra.mxu0 0.0
    %2347 = vmatprep.subr.mxu0 0.0
    %2348 = vmatpush2.msra.mxu0 0.0
    %2349 = vmatprep.subr.mxu0 0.0
    %2350 = vmatpush2.msra.mxu0 0.0
    %2351 = vmatprep.subr.mxu0 0.0
    %2352 = vmatpush2.msra.mxu0 0.0
    %2353 = vmatprep.mubr.f32.mxu0 0.0
    %2354 = vmatmul.mubr.f32.gmra.mxu0 %v2287
    %v2355 = vpop.f32.mrf.mxu0
    %v2356 = vadd.f32 0.0, %v2355
    %v2357 = vpop.f32.mrf.mxu0
    %v2358 = vadd.f32 0.0, %v2357
    %2359 = vdwg.mxu0
    %2360 = vmatprep.subr.mxu0 0.0
    %2361 = vmatpush1.msra.mxu0 0.0
    %2362 = vmatprep.subr.mxu0 0.0
    %2363 = vmatpush1.msra.mxu0 0.0
    %2364 = vmatprep.subr.mxu0 0.0
    %2365 = vmatpush1.msra.mxu0 0.0
    %2366 = vmatprep.subr.mxu0 0.0
    %2367 = vmatpush1.msra.mxu0 0.0
    %2368 = vmatprep.subr.mxu0 0.0
    %2369 = vmatpush1.msra.mxu0 0.0
    %2370 = vmatprep.subr.mxu0 0.0
    %2371 = vmatpush1.msra.mxu0 0.0
    %2372 = vmatprep.subr.mxu0 0.0
    %2373 = vmatpush1.msra.mxu0 0.0
    %2374 = vmatprep.subr.mxu0 0.0
    %2375 = vmatpush1.msra.mxu0 0.0
    %2376 = vmatprep.subr.mxu0 0.0
    %2377 = vmatpush1.msra.mxu0 0.0
    %2378 = vmatprep.subr.mxu0 0.0
    %2379 = vmatpush1.msra.mxu0 0.0
    %2380 = vmatprep.subr.mxu0 0.0
    %2381 = vmatpush1.msra.mxu0 0.0
    %2382 = vmatprep.subr.mxu0 0.0
    %2383 = vmatpush1.msra.mxu0 0.0
    %2384 = vmatprep.subr.mxu0 0.0
    %2385 = vmatpush1.msra.mxu0 0.0
    %2386 = vmatprep.subr.mxu0 0.0
    %2387 = vmatpush1.msra.mxu0 0.0
    %2388 = vmatprep.subr.mxu0 0.0
    %2389 = vmatpush1.msra.mxu0 0.0
    %2390 = vmatprep.subr.mxu0 %v2277
    %2391 = vmatpush1.msra.mxu0 %v2276
    %2392 = vmatprep.subr.mxu0 0.0
    %2393 = vmatpush2.msra.mxu0 0.0
    %2394 = vmatprep.subr.mxu0 0.0
    %2395 = vmatpush2.msra.mxu0 0.0
    %2396 = vmatprep.subr.mxu0 0.0
    %2397 = vmatpush2.msra.mxu0 0.0
    %2398 = vmatprep.subr.mxu0 0.0
    %2399 = vmatpush2.msra.mxu0 0.0
    %2400 = vmatprep.subr.mxu0 0.0
    %2401 = vmatpush2.msra.mxu0 0.0
    %2402 = vmatprep.subr.mxu0 0.0
    %2403 = vmatpush2.msra.mxu0 0.0
    %2404 = vmatprep.subr.mxu0 0.0
    %2405 = vmatpush2.msra.mxu0 0.0
    %2406 = vmatprep.subr.mxu0 0.0
    %2407 = vmatpush2.msra.mxu0 0.0
    %2408 = vmatprep.subr.mxu0 0.0
    %2409 = vmatpush2.msra.mxu0 0.0
    %2410 = vmatprep.subr.mxu0 0.0
    %2411 = vmatpush2.msra.mxu0 0.0
    %2412 = vmatprep.subr.mxu0 0.0
    %2413 = vmatpush2.msra.mxu0 0.0
    %2414 = vmatprep.subr.mxu0 0.0
    %2415 = vmatpush2.msra.mxu0 0.0
    %2416 = vmatprep.subr.mxu0 0.0
    %2417 = vmatpush2.msra.mxu0 0.0
    %2418 = vmatprep.subr.mxu0 0.0
    %2419 = vmatpush2.msra.mxu0 0.0
    %2420 = vmatprep.subr.mxu0 0.0
    %2421 = vmatpush2.msra.mxu0 0.0
    %2422 = vmatprep.subr.mxu0 0.0
    %2423 = vmatpush2.msra.mxu0 0.0
    %2424 = vmatprep.mubr.f32.mxu0 0.0
    %2425 = vmatmul.mubr.f32.gmra.mxu0 %v2287
    %v2426 = vpop.f32.mrf.mxu0
    %v2427 = vadd.f32 0.0, %v2426
    %v2428 = vpop.f32.mrf.mxu0
    %v2429 = vadd.f32 0.0, %v2428
    %2430 = vdwg.mxu0
    %2431 = vmatprep.subr.mxu0 0.0
    %2432 = vmatpush1.msra.mxu0 0.0
    %2433 = vmatprep.subr.mxu0 0.0
    %2434 = vmatpush1.msra.mxu0 0.0
    %2435 = vmatprep.subr.mxu0 0.0
    %2436 = vmatpush1.msra.mxu0 0.0
    %2437 = vmatprep.subr.mxu0 0.0
    %2438 = vmatpush1.msra.mxu0 0.0
    %2439 = vmatprep.subr.mxu0 0.0
    %2440 = vmatpush1.msra.mxu0 0.0
    %2441 = vmatprep.subr.mxu0 0.0
    %2442 = vmatpush1.msra.mxu0 0.0
    %2443 = vmatprep.subr.mxu0 0.0
    %2444 = vmatpush1.msra.mxu0 0.0
    %2445 = vmatprep.subr.mxu0 0.0
    %2446 = vmatpush1.msra.mxu0 0.0
    %2447 = vmatprep.subr.mxu0 0.0
    %2448 = vmatpush1.msra.mxu0 0.0
    %2449 = vmatprep.subr.mxu0 0.0
    %2450 = vmatpush1.msra.mxu0 0.0
    %2451 = vmatprep.subr.mxu0 0.0
    %2452 = vmatpush1.msra.mxu0 0.0
    %2453 = vmatprep.subr.mxu0 0.0
    %2454 = vmatpush1.msra.mxu0 0.0
    %2455 = vmatprep.subr.mxu0 0.0
    %2456 = vmatpush1.msra.mxu0 0.0
    %2457 = vmatprep.subr.mxu0 0.0
    %2458 = vmatpush1.msra.mxu0 0.0
    %2459 = vmatprep.subr.mxu0 0.0
    %2460 = vmatpush1.msra.mxu0 0.0
    %2461 = vmatprep.subr.mxu0 %v2279
    %2462 = vmatpush1.msra.mxu0 %v2278
    %2463 = vmatprep.subr.mxu0 0.0
    %2464 = vmatpush2.msra.mxu0 0.0
    %2465 = vmatprep.subr.mxu0 0.0
    %2466 = vmatpush2.msra.mxu0 0.0
    %2467 = vmatprep.subr.mxu0 0.0
    %2468 = vmatpush2.msra.mxu0 0.0
    %2469 = vmatprep.subr.mxu0 0.0
    %2470 = vmatpush2.msra.mxu0 0.0
    %2471 = vmatprep.subr.mxu0 0.0
    %2472 = vmatpush2.msra.mxu0 0.0
    %2473 = vmatprep.subr.mxu0 0.0
    %2474 = vmatpush2.msra.mxu0 0.0
    %2475 = vmatprep.subr.mxu0 0.0
    %2476 = vmatpush2.msra.mxu0 0.0
    %2477 = vmatprep.subr.mxu0 0.0
    %2478 = vmatpush2.msra.mxu0 0.0
    %2479 = vmatprep.subr.mxu0 0.0
    %2480 = vmatpush2.msra.mxu0 0.0
    %2481 = vmatprep.subr.mxu0 0.0
    %2482 = vmatpush2.msra.mxu0 0.0
    %2483 = vmatprep.subr.mxu0 0.0
    %2484 = vmatpush2.msra.mxu0 0.0
    %2485 = vmatprep.subr.mxu0 0.0
    %2486 = vmatpush2.msra.mxu0 0.0
    %2487 = vmatprep.subr.mxu0 0.0
    %2488 = vmatpush2.msra.mxu0 0.0
    %2489 = vmatprep.subr.mxu0 0.0
    %2490 = vmatpush2.msra.mxu0 0.0
    %2491 = vmatprep.subr.mxu0 0.0
    %2492 = vmatpush2.msra.mxu0 0.0
    %2493 = vmatprep.subr.mxu0 0.0
    %2494 = vmatpush2.msra.mxu0 0.0
    %2495 = vmatprep.mubr.f32.mxu0 0.0
    %2496 = vmatmul.mubr.f32.gmra.mxu0 %v2287
    %v2497 = vpop.f32.mrf.mxu0
    %v2498 = vadd.f32 0.0, %v2497
    %v2499 = vpop.f32.mrf.mxu0
    %v2500 = vadd.f32 0.0, %v2499
    %2501 = vdwg.mxu0
    %v2502 = vadd.f32 %v2251, %v2356
    %v2503 = vadd.f32 %v2252, %v2358
    %v2504 = vadd.f32 %v2253, %v2427
    %v2505 = vadd.f32 %v2254, %v2429
    %v2506 = vadd.f32 %v2255, %v2498
    %v2507 = vadd.f32 %v2256, %v2500
    %v2508 = vmul.f32 %v2502, %v150
    %v2509 = vmul.f32 %v2503, %v151
    %v2510 = vmul.f32 %v2504, %v152
    %v2511 = vmul.f32 %v2505, %v153
    %v2512 = vmul.f32 %v2506, %v154
    %v2513 = vmul.f32 %v2507, %v155
    %v2514 = vadd.f32 %v2508, %v2509
    %v2515 = vadd.f32 %v2514, %v2510
    %v2516 = vadd.f32 %v2515, %v2511
    %v2517 = vadd.f32 %v2516, %v2512
    %v2518 = vadd.f32 %v2517, %v2513
    %2519 = vadd.xlane.f32.xlu0 %v2518
    %v2520 = vpop.xlane.xlu0 %2519
    %v2521 = vmul.f32 %v2520, 0.001953125
    %v2522 = vsub.f32 %v2502, %v2521
    %v2523 = vsub.f32 %v2503, %v2521
    %v2524 = vsub.f32 %v2504, %v2521
    %v2525 = vsub.f32 %v2505, %v2521
    %v2526 = vsub.f32 %v2506, %v2521
    %v2527 = vsub.f32 %v2507, %v2521
    %v2528 = vmul.f32 %v2522, %v150
    %v2529 = vmul.f32 %v2523, %v151
    %v2530 = vmul.f32 %v2524, %v152
    %v2531 = vmul.f32 %v2525, %v153
    %v2532 = vmul.f32 %v2526, %v154
    %v2533 = vmul.f32 %v2527, %v155
    %v2534 = vmul.f32 %v2528, %v2528
    %v2535 = vmul.f32 %v2529, %v2529
    %v2536 = vmul.f32 %v2530, %v2530
    %v2537 = vmul.f32 %v2531, %v2531
    %v2538 = vmul.f32 %v2532, %v2532
    %v2539 = vmul.f32 %v2533, %v2533
    %v2540 = vadd.f32 %v2534, %v2535
    %v2541 = vadd.f32 %v2540, %v2536
    %v2542 = vadd.f32 %v2541, %v2537
    %v2543 = vadd.f32 %v2542, %v2538
    %v2544 = vadd.f32 %v2543, %v2539
    %2545 = vadd.xlane.f32.xlu0 %v2544
    %v2546 = vpop.xlane.xlu0 %2545
    %v2547 = vmul.f32 %v2546, 0.001953125
    %v2548 = vadd.f32 %v2547, 1e-05
    %v2549 = vrsqrt.pop %v2548
    %v2550 = vmul.f32 %v261, %v2549
    %v2551 = vmul.f32 %v2521, %v2550
    %v2552 = vsub.f32 %v263, %v2551
    %2554 = vset.pattern.permute.xlu0 0
    %2555 = vperm.xlu0 %2554, %v2550
    %v2556 = vpop.permute.xlu0 %2555
    %v2558 = vmul.f32 %v2502, %v2556
    %v2559 = vmul.f32 %v2503, %v2556
    %v2560 = vmul.f32 %v2504, %v2556
    %v2561 = vmul.f32 %v2505, %v2556
    %v2562 = vmul.f32 %v2506, %v2556
    %v2563 = vmul.f32 %v2507, %v2556
    %2565 = vset.pattern.permute.xlu0 0
    %2566 = vperm.xlu0 %2565, %v2552
    %v2567 = vpop.permute.xlu0 %2566
    %v2569 = vadd.f32 %v2558, %v2567
    %v2570 = vadd.f32 %v2559, %v2567
    %v2571 = vadd.f32 %v2560, %v2567
    %v2572 = vadd.f32 %v2561, %v2567
    %v2573 = vadd.f32 %v2562, %v2567
    %v2574 = vadd.f32 %v2563, %v2567
    %v2575 = vmax.f32 %v2569, 0.0
    %v2576 = vmax.f32 %v2570, 0.0
    %v2577 = vmax.f32 %v2571, 0.0
    %v2578 = vmax.f32 %v2572, 0.0
    %v2579 = vmax.f32 %v2573, 0.0
    %v2580 = vmax.f32 %v2574, 0.0
    %v2581 = vmul.f32 %v2575, %v150
    %v2582 = vmul.f32 %v2576, %v151
    %v2583 = vmul.f32 %v2577, %v152
    %v2584 = vmul.f32 %v2578, %v153
    %v2585 = vmul.f32 %v2579, %v154
    %v2586 = vmul.f32 %v2580, %v155
    %2587 = vst [vmem:[#allocation2] sm:$0xff] %v2581
    %2588 = vst [vmem:[#allocation2 + $0x8] sm:$0xff] %v2582
    %2589 = vst [vmem:[#allocation2 + $0x10] sm:$0xff] %v2583
    %2590 = vst [vmem:[#allocation2 + $0x18] sm:$0xff] %v2584
    %2591 = vst [vmem:[#allocation2 + $0x20] sm:$0xff] %v2585
    %2592 = vst [vmem:[#allocation2 + $0x28] sm:$0xff] %v2586
    %s2593 = scalar_lea.vmem %s1, 72
    %v2594 = vld [vmem:[%s2593] sm:$0xff]
    %v2595 = vld [vmem:[#allocation2] sm:$0xff]
    %v2596 = vld [vmem:[#allocation2 + $0x8] sm:$0xff]
    %v2597 = vld [vmem:[#allocation2 + $0x10] sm:$0xff]
    %v2598 = vld [vmem:[#allocation2 + $0x18] sm:$0xff]
    %v2599 = vld [vmem:[#allocation2 + $0x20] sm:$0xff]
    %s2600 = scalar_lea.vmem %s1, 80
    %v2601 = vld [vmem:[%s2600] sm:$0xff]
    %v2602 = vld [vmem:[#allocation2] sm:$0xff]
    %v2603 = vld [vmem:[#allocation2 + $0x8] sm:$0xff]
    %v2604 = vld [vmem:[#allocation2 + $0x10] sm:$0xff]
    %v2605 = vld [vmem:[#allocation2 + $0x18] sm:$0xff]
    %v2606 = vld [vmem:[#allocation2 + $0x20] sm:$0xff]
    %v2607 = vld [vmem:[#allocation2 + $0x28] sm:$0xff]
    %2614 = vrot.lane.b32.xlu0 %v2602, 127
    %v2615 = vpop.permute.xlu0 %2614
    %2616 = vrot.lane.b32.xlu0 %v2603, 127
    %v2617 = vpop.permute.xlu0 %2616
    %2618 = vrot.lane.b32.xlu0 %v2604, 127
    %v2619 = vpop.permute.xlu0 %2618
    %2620 = vrot.lane.b32.xlu0 %v2605, 127
    %v2621 = vpop.permute.xlu0 %2620
    %2622 = vrot.lane.b32.xlu0 %v2606, 127
    %v2623 = vpop.permute.xlu0 %2622
    %2624 = vrot.lane.b32.xlu0 %v2607, 127
    %v2625 = vpop.permute.xlu0 %2624
    %v2626 = vsel %vm305, %v2615, %v2617
    %v2627 = vsel %vm305, %v2617, %v2619
    %v2628 = vsel %vm305, %v2619, %v2621
    %v2629 = vsel %vm305, %v2621, %v2623
    %v2630 = vsel %vm305, %v2623, %v2625
    %v2637 = vsel %vm318, %v2601, 0
    %2639 = vmatprep.subr.mxu0 0.0
    %2640 = vmatpush1.msra.mxu0 0.0
    %2641 = vmatprep.subr.mxu0 0.0
    %2642 = vmatpush1.msra.mxu0 0.0
    %2643 = vmatprep.subr.mxu0 0.0
    %2644 = vmatpush1.msra.mxu0 0.0
    %2645 = vmatprep.subr.mxu0 0.0
    %2646 = vmatpush1.msra.mxu0 0.0
    %2647 = vmatprep.subr.mxu0 0.0
    %2648 = vmatpush1.msra.mxu0 0.0
    %2649 = vmatprep.subr.mxu0 0.0
    %2650 = vmatpush1.msra.mxu0 0.0
    %2651 = vmatprep.subr.mxu0 0.0
    %2652 = vmatpush1.msra.mxu0 0.0
    %2653 = vmatprep.subr.mxu0 0.0
    %2654 = vmatpush1.msra.mxu0 0.0
    %2655 = vmatprep.subr.mxu0 0.0
    %2656 = vmatpush1.msra.mxu0 0.0
    %2657 = vmatprep.subr.mxu0 0.0
    %2658 = vmatpush1.msra.mxu0 0.0
    %2659 = vmatprep.subr.mxu0 0.0
    %2660 = vmatpush1.msra.mxu0 0.0
    %2661 = vmatprep.subr.mxu0 0.0
    %2662 = vmatpush1.msra.mxu0 0.0
    %2663 = vmatprep.subr.mxu0 0.0
    %2664 = vmatpush1.msra.mxu0 0.0
    %2665 = vmatprep.subr.mxu0 0.0
    %2666 = vmatpush1.msra.mxu0 0.0
    %2667 = vmatprep.subr.mxu0 0.0
    %2668 = vmatpush1.msra.mxu0 0.0
    %2669 = vmatprep.subr.mxu0 %v2627
    %2670 = vmatpush1.msra.mxu0 %v2626
    %2671 = vmatprep.subr.mxu0 0.0
    %2672 = vmatpush2.msra.mxu0 0.0
    %2673 = vmatprep.subr.mxu0 0.0
    %2674 = vmatpush2.msra.mxu0 0.0
    %2675 = vmatprep.subr.mxu0 0.0
    %2676 = vmatpush2.msra.mxu0 0.0
    %2677 = vmatprep.subr.mxu0 0.0
    %2678 = vmatpush2.msra.mxu0 0.0
    %2679 = vmatprep.subr.mxu0 0.0
    %2680 = vmatpush2.msra.mxu0 0.0
    %2681 = vmatprep.subr.mxu0 0.0
    %2682 = vmatpush2.msra.mxu0 0.0
    %2683 = vmatprep.subr.mxu0 0.0
    %2684 = vmatpush2.msra.mxu0 0.0
    %2685 = vmatprep.subr.mxu0 0.0
    %2686 = vmatpush2.msra.mxu0 0.0
    %2687 = vmatprep.subr.mxu0 0.0
    %2688 = vmatpush2.msra.mxu0 0.0
    %2689 = vmatprep.subr.mxu0 0.0
    %2690 = vmatpush2.msra.mxu0 0.0
    %2691 = vmatprep.subr.mxu0 0.0
    %2692 = vmatpush2.msra.mxu0 0.0
    %2693 = vmatprep.subr.mxu0 0.0
    %2694 = vmatpush2.msra.mxu0 0.0
    %2695 = vmatprep.subr.mxu0 0.0
    %2696 = vmatpush2.msra.mxu0 0.0
    %2697 = vmatprep.subr.mxu0 0.0
    %2698 = vmatpush2.msra.mxu0 0.0
    %2699 = vmatprep.subr.mxu0 0.0
    %2700 = vmatpush2.msra.mxu0 0.0
    %2701 = vmatprep.subr.mxu0 0.0
    %2702 = vmatpush2.msra.mxu0 0.0
    %2703 = vmatprep.mubr.f32.mxu0 0.0
    %2704 = vmatmul.mubr.f32.gmra.mxu0 %v2637
    %v2705 = vpop.f32.mrf.mxu0
    %v2706 = vadd.f32 0.0, %v2705
    %v2707 = vpop.f32.mrf.mxu0
    %v2708 = vadd.f32 0.0, %v2707
    %2709 = vdwg.mxu0
    %2710 = vmatprep.subr.mxu0 0.0
    %2711 = vmatpush1.msra.mxu0 0.0
    %2712 = vmatprep.subr.mxu0 0.0
    %2713 = vmatpush1.msra.mxu0 0.0
    %2714 = vmatprep.subr.mxu0 0.0
    %2715 = vmatpush1.msra.mxu0 0.0
    %2716 = vmatprep.subr.mxu0 0.0
    %2717 = vmatpush1.msra.mxu0 0.0
    %2718 = vmatprep.subr.mxu0 0.0
    %2719 = vmatpush1.msra.mxu0 0.0
    %2720 = vmatprep.subr.mxu0 0.0
    %2721 = vmatpush1.msra.mxu0 0.0
    %2722 = vmatprep.subr.mxu0 0.0
    %2723 = vmatpush1.msra.mxu0 0.0
    %2724 = vmatprep.subr.mxu0 0.0
    %2725 = vmatpush1.msra.mxu0 0.0
    %2726 = vmatprep.subr.mxu0 0.0
    %2727 = vmatpush1.msra.mxu0 0.0
    %2728 = vmatprep.subr.mxu0 0.0
    %2729 = vmatpush1.msra.mxu0 0.0
    %2730 = vmatprep.subr.mxu0 0.0
    %2731 = vmatpush1.msra.mxu0 0.0
    %2732 = vmatprep.subr.mxu0 0.0
    %2733 = vmatpush1.msra.mxu0 0.0
    %2734 = vmatprep.subr.mxu0 0.0
    %2735 = vmatpush1.msra.mxu0 0.0
    %2736 = vmatprep.subr.mxu0 0.0
    %2737 = vmatpush1.msra.mxu0 0.0
    %2738 = vmatprep.subr.mxu0 0.0
    %2739 = vmatpush1.msra.mxu0 0.0
    %2740 = vmatprep.subr.mxu0 %v2629
    %2741 = vmatpush1.msra.mxu0 %v2628
    %2742 = vmatprep.subr.mxu0 0.0
    %2743 = vmatpush2.msra.mxu0 0.0
    %2744 = vmatprep.subr.mxu0 0.0
    %2745 = vmatpush2.msra.mxu0 0.0
    %2746 = vmatprep.subr.mxu0 0.0
    %2747 = vmatpush2.msra.mxu0 0.0
    %2748 = vmatprep.subr.mxu0 0.0
    %2749 = vmatpush2.msra.mxu0 0.0
    %2750 = vmatprep.subr.mxu0 0.0
    %2751 = vmatpush2.msra.mxu0 0.0
    %2752 = vmatprep.subr.mxu0 0.0
    %2753 = vmatpush2.msra.mxu0 0.0
    %2754 = vmatprep.subr.mxu0 0.0
    %2755 = vmatpush2.msra.mxu0 0.0
    %2756 = vmatprep.subr.mxu0 0.0
    %2757 = vmatpush2.msra.mxu0 0.0
    %2758 = vmatprep.subr.mxu0 0.0
    %2759 = vmatpush2.msra.mxu0 0.0
    %2760 = vmatprep.subr.mxu0 0.0
    %2761 = vmatpush2.msra.mxu0 0.0
    %2762 = vmatprep.subr.mxu0 0.0
    %2763 = vmatpush2.msra.mxu0 0.0
    %2764 = vmatprep.subr.mxu0 0.0
    %2765 = vmatpush2.msra.mxu0 0.0
    %2766 = vmatprep.subr.mxu0 0.0
    %2767 = vmatpush2.msra.mxu0 0.0
    %2768 = vmatprep.subr.mxu0 0.0
    %2769 = vmatpush2.msra.mxu0 0.0
    %2770 = vmatprep.subr.mxu0 0.0
    %2771 = vmatpush2.msra.mxu0 0.0
    %2772 = vmatprep.subr.mxu0 0.0
    %2773 = vmatpush2.msra.mxu0 0.0
    %2774 = vmatprep.mubr.f32.mxu0 0.0
    %2775 = vmatmul.mubr.f32.gmra.mxu0 %v2637
    %v2776 = vpop.f32.mrf.mxu0
    %v2777 = vadd.f32 0.0, %v2776
    %v2778 = vpop.f32.mrf.mxu0
    %v2779 = vadd.f32 0.0, %v2778
    %2780 = vdwg.mxu0
    %2781 = vmatprep.subr.mxu0 0.0
    %2782 = vmatpush1.msra.mxu0 0.0
    %2783 = vmatprep.subr.mxu0 0.0
    %2784 = vmatpush1.msra.mxu0 0.0
    %2785 = vmatprep.subr.mxu0 0.0
    %2786 = vmatpush1.msra.mxu0 0.0
    %2787 = vmatprep.subr.mxu0 0.0
    %2788 = vmatpush1.msra.mxu0 0.0
    %2789 = vmatprep.subr.mxu0 0.0
    %2790 = vmatpush1.msra.mxu0 0.0
    %2791 = vmatprep.subr.mxu0 0.0
    %2792 = vmatpush1.msra.mxu0 0.0
    %2793 = vmatprep.subr.mxu0 0.0
    %2794 = vmatpush1.msra.mxu0 0.0
    %2795 = vmatprep.subr.mxu0 0.0
    %2796 = vmatpush1.msra.mxu0 0.0
    %2797 = vmatprep.subr.mxu0 0.0
    %2798 = vmatpush1.msra.mxu0 0.0
    %2799 = vmatprep.subr.mxu0 0.0
    %2800 = vmatpush1.msra.mxu0 0.0
    %2801 = vmatprep.subr.mxu0 0.0
    %2802 = vmatpush1.msra.mxu0 0.0
    %2803 = vmatprep.subr.mxu0 0.0
    %2804 = vmatpush1.msra.mxu0 0.0
    %2805 = vmatprep.subr.mxu0 0.0
    %2806 = vmatpush1.msra.mxu0 0.0
    %2807 = vmatprep.subr.mxu0 0.0
    %2808 = vmatpush1.msra.mxu0 0.0
    %2809 = vmatprep.subr.mxu0 0.0
    %2810 = vmatpush1.msra.mxu0 0.0
    %2811 = vmatprep.subr.mxu0 0.0
    %2812 = vmatpush1.msra.mxu0 %v2630
    %2813 = vmatprep.subr.mxu0 0.0
    %2814 = vmatpush2.msra.mxu0 0.0
    %2815 = vmatprep.subr.mxu0 0.0
    %2816 = vmatpush2.msra.mxu0 0.0
    %2817 = vmatprep.subr.mxu0 0.0
    %2818 = vmatpush2.msra.mxu0 0.0
    %2819 = vmatprep.subr.mxu0 0.0
    %2820 = vmatpush2.msra.mxu0 0.0
    %2821 = vmatprep.subr.mxu0 0.0
    %2822 = vmatpush2.msra.mxu0 0.0
    %2823 = vmatprep.subr.mxu0 0.0
    %2824 = vmatpush2.msra.mxu0 0.0
    %2825 = vmatprep.subr.mxu0 0.0
    %2826 = vmatpush2.msra.mxu0 0.0
    %2827 = vmatprep.subr.mxu0 0.0
    %2828 = vmatpush2.msra.mxu0 0.0
    %2829 = vmatprep.subr.mxu0 0.0
    %2830 = vmatpush2.msra.mxu0 0.0
    %2831 = vmatprep.subr.mxu0 0.0
    %2832 = vmatpush2.msra.mxu0 0.0
    %2833 = vmatprep.subr.mxu0 0.0
    %2834 = vmatpush2.msra.mxu0 0.0
    %2835 = vmatprep.subr.mxu0 0.0
    %2836 = vmatpush2.msra.mxu0 0.0
    %2837 = vmatprep.subr.mxu0 0.0
    %2838 = vmatpush2.msra.mxu0 0.0
    %2839 = vmatprep.subr.mxu0 0.0
    %2840 = vmatpush2.msra.mxu0 0.0
    %2841 = vmatprep.subr.mxu0 0.0
    %2842 = vmatpush2.msra.mxu0 0.0
    %2843 = vmatprep.subr.mxu0 0.0
    %2844 = vmatpush2.msra.mxu0 0.0
    %2845 = vmatprep.mubr.f32.mxu0 0.0
    %2846 = vmatmul.mubr.f32.gmra.mxu0 %v2637
    %v2847 = vpop.f32.mrf.mxu0
    %v2848 = vadd.f32 0.0, %v2847
    %v2849 = vpop.f32.mrf.mxu0
    %2850 = vdwg.mxu0
    %v2852 = vsel %vm318, %v2594, 0
    %2854 = vmatprep.subr.mxu0 0.0
    %2855 = vmatpush1.msra.mxu0 0.0
    %2856 = vmatprep.subr.mxu0 0.0
    %2857 = vmatpush1.msra.mxu0 0.0
    %2858 = vmatprep.subr.mxu0 0.0
    %2859 = vmatpush1.msra.mxu0 0.0
    %2860 = vmatprep.subr.mxu0 0.0
    %2861 = vmatpush1.msra.mxu0 0.0
    %2862 = vmatprep.subr.mxu0 0.0
    %2863 = vmatpush1.msra.mxu0 0.0
    %2864 = vmatprep.subr.mxu0 0.0
    %2865 = vmatpush1.msra.mxu0 0.0
    %2866 = vmatprep.subr.mxu0 0.0
    %2867 = vmatpush1.msra.mxu0 0.0
    %2868 = vmatprep.subr.mxu0 0.0
    %2869 = vmatpush1.msra.mxu0 0.0
    %2870 = vmatprep.subr.mxu0 0.0
    %2871 = vmatpush1.msra.mxu0 0.0
    %2872 = vmatprep.subr.mxu0 0.0
    %2873 = vmatpush1.msra.mxu0 0.0
    %2874 = vmatprep.subr.mxu0 0.0
    %2875 = vmatpush1.msra.mxu0 0.0
    %2876 = vmatprep.subr.mxu0 0.0
    %2877 = vmatpush1.msra.mxu0 0.0
    %2878 = vmatprep.subr.mxu0 0.0
    %2879 = vmatpush1.msra.mxu0 0.0
    %2880 = vmatprep.subr.mxu0 0.0
    %2881 = vmatpush1.msra.mxu0 0.0
    %2882 = vmatprep.subr.mxu0 0.0
    %2883 = vmatpush1.msra.mxu0 0.0
    %2884 = vmatprep.subr.mxu0 %v2596
    %2885 = vmatpush1.msra.mxu0 %v2595
    %2886 = vmatprep.subr.mxu0 0.0
    %2887 = vmatpush2.msra.mxu0 0.0
    %2888 = vmatprep.subr.mxu0 0.0
    %2889 = vmatpush2.msra.mxu0 0.0
    %2890 = vmatprep.subr.mxu0 0.0
    %2891 = vmatpush2.msra.mxu0 0.0
    %2892 = vmatprep.subr.mxu0 0.0
    %2893 = vmatpush2.msra.mxu0 0.0
    %2894 = vmatprep.subr.mxu0 0.0
    %2895 = vmatpush2.msra.mxu0 0.0
    %2896 = vmatprep.subr.mxu0 0.0
    %2897 = vmatpush2.msra.mxu0 0.0
    %2898 = vmatprep.subr.mxu0 0.0
    %2899 = vmatpush2.msra.mxu0 0.0
    %2900 = vmatprep.subr.mxu0 0.0
    %2901 = vmatpush2.msra.mxu0 0.0
    %2902 = vmatprep.subr.mxu0 0.0
    %2903 = vmatpush2.msra.mxu0 0.0
    %2904 = vmatprep.subr.mxu0 0.0
    %2905 = vmatpush2.msra.mxu0 0.0
    %2906 = vmatprep.subr.mxu0 0.0
    %2907 = vmatpush2.msra.mxu0 0.0
    %2908 = vmatprep.subr.mxu0 0.0
    %2909 = vmatpush2.msra.mxu0 0.0
    %2910 = vmatprep.subr.mxu0 0.0
    %2911 = vmatpush2.msra.mxu0 0.0
    %2912 = vmatprep.subr.mxu0 0.0
    %2913 = vmatpush2.msra.mxu0 0.0
    %2914 = vmatprep.subr.mxu0 0.0
    %2915 = vmatpush2.msra.mxu0 0.0
    %2916 = vmatprep.subr.mxu0 0.0
    %2917 = vmatpush2.msra.mxu0 0.0
    %2918 = vmatprep.mubr.f32.mxu0 0.0
    %2919 = vmatmul.mubr.f32.gmra.mxu0 %v2852
    %v2920 = vpop.f32.mrf.mxu0
    %v2921 = vadd.f32 %v2706, %v2920
    %v2922 = vpop.f32.mrf.mxu0
    %v2923 = vadd.f32 %v2708, %v2922
    %2924 = vdwg.mxu0
    %2925 = vmatprep.subr.mxu0 0.0
    %2926 = vmatpush1.msra.mxu0 0.0
    %2927 = vmatprep.subr.mxu0 0.0
    %2928 = vmatpush1.msra.mxu0 0.0
    %2929 = vmatprep.subr.mxu0 0.0
    %2930 = vmatpush1.msra.mxu0 0.0
    %2931 = vmatprep.subr.mxu0 0.0
    %2932 = vmatpush1.msra.mxu0 0.0
    %2933 = vmatprep.subr.mxu0 0.0
    %2934 = vmatpush1.msra.mxu0 0.0
    %2935 = vmatprep.subr.mxu0 0.0
    %2936 = vmatpush1.msra.mxu0 0.0
    %2937 = vmatprep.subr.mxu0 0.0
    %2938 = vmatpush1.msra.mxu0 0.0
    %2939 = vmatprep.subr.mxu0 0.0
    %2940 = vmatpush1.msra.mxu0 0.0
    %2941 = vmatprep.subr.mxu0 0.0
    %2942 = vmatpush1.msra.mxu0 0.0
    %2943 = vmatprep.subr.mxu0 0.0
    %2944 = vmatpush1.msra.mxu0 0.0
    %2945 = vmatprep.subr.mxu0 0.0
    %2946 = vmatpush1.msra.mxu0 0.0
    %2947 = vmatprep.subr.mxu0 0.0
    %2948 = vmatpush1.msra.mxu0 0.0
    %2949 = vmatprep.subr.mxu0 0.0
    %2950 = vmatpush1.msra.mxu0 0.0
    %2951 = vmatprep.subr.mxu0 0.0
    %2952 = vmatpush1.msra.mxu0 0.0
    %2953 = vmatprep.subr.mxu0 0.0
    %2954 = vmatpush1.msra.mxu0 0.0
    %2955 = vmatprep.subr.mxu0 %v2598
    %2956 = vmatpush1.msra.mxu0 %v2597
    %2957 = vmatprep.subr.mxu0 0.0
    %2958 = vmatpush2.msra.mxu0 0.0
    %2959 = vmatprep.subr.mxu0 0.0
    %2960 = vmatpush2.msra.mxu0 0.0
    %2961 = vmatprep.subr.mxu0 0.0
    %2962 = vmatpush2.msra.mxu0 0.0
    %2963 = vmatprep.subr.mxu0 0.0
    %2964 = vmatpush2.msra.mxu0 0.0
    %2965 = vmatprep.subr.mxu0 0.0
    %2966 = vmatpush2.msra.mxu0 0.0
    %2967 = vmatprep.subr.mxu0 0.0
    %2968 = vmatpush2.msra.mxu0 0.0
    %2969 = vmatprep.subr.mxu0 0.0
    %2970 = vmatpush2.msra.mxu0 0.0
    %2971 = vmatprep.subr.mxu0 0.0
    %2972 = vmatpush2.msra.mxu0 0.0
    %2973 = vmatprep.subr.mxu0 0.0
    %2974 = vmatpush2.msra.mxu0 0.0
    %2975 = vmatprep.subr.mxu0 0.0
    %2976 = vmatpush2.msra.mxu0 0.0
    %2977 = vmatprep.subr.mxu0 0.0
    %2978 = vmatpush2.msra.mxu0 0.0
    %2979 = vmatprep.subr.mxu0 0.0
    %2980 = vmatpush2.msra.mxu0 0.0
    %2981 = vmatprep.subr.mxu0 0.0
    %2982 = vmatpush2.msra.mxu0 0.0
    %2983 = vmatprep.subr.mxu0 0.0
    %2984 = vmatpush2.msra.mxu0 0.0
    %2985 = vmatprep.subr.mxu0 0.0
    %2986 = vmatpush2.msra.mxu0 0.0
    %2987 = vmatprep.subr.mxu0 0.0
    %2988 = vmatpush2.msra.mxu0 0.0
    %2989 = vmatprep.mubr.f32.mxu0 0.0
    %2990 = vmatmul.mubr.f32.gmra.mxu0 %v2852
    %v2991 = vpop.f32.mrf.mxu0
    %v2992 = vadd.f32 %v2777, %v2991
    %v2993 = vpop.f32.mrf.mxu0
    %v2994 = vadd.f32 %v2779, %v2993
    %2995 = vdwg.mxu0
    %2996 = vmatprep.subr.mxu0 0.0
    %2997 = vmatpush1.msra.mxu0 0.0
    %2998 = vmatprep.subr.mxu0 0.0
    %2999 = vmatpush1.msra.mxu0 0.0
    %3000 = vmatprep.subr.mxu0 0.0
    %3001 = vmatpush1.msra.mxu0 0.0
    %3002 = vmatprep.subr.mxu0 0.0
    %3003 = vmatpush1.msra.mxu0 0.0
    %3004 = vmatprep.subr.mxu0 0.0
    %3005 = vmatpush1.msra.mxu0 0.0
    %3006 = vmatprep.subr.mxu0 0.0
    %3007 = vmatpush1.msra.mxu0 0.0
    %3008 = vmatprep.subr.mxu0 0.0
    %3009 = vmatpush1.msra.mxu0 0.0
    %3010 = vmatprep.subr.mxu0 0.0
    %3011 = vmatpush1.msra.mxu0 0.0
    %3012 = vmatprep.subr.mxu0 0.0
    %3013 = vmatpush1.msra.mxu0 0.0
    %3014 = vmatprep.subr.mxu0 0.0
    %3015 = vmatpush1.msra.mxu0 0.0
    %3016 = vmatprep.subr.mxu0 0.0
    %3017 = vmatpush1.msra.mxu0 0.0
    %3018 = vmatprep.subr.mxu0 0.0
    %3019 = vmatpush1.msra.mxu0 0.0
    %3020 = vmatprep.subr.mxu0 0.0
    %3021 = vmatpush1.msra.mxu0 0.0
    %3022 = vmatprep.subr.mxu0 0.0
    %3023 = vmatpush1.msra.mxu0 0.0
    %3024 = vmatprep.subr.mxu0 0.0
    %3025 = vmatpush1.msra.mxu0 0.0
    %3026 = vmatprep.subr.mxu0 0.0
    %3027 = vmatpush1.msra.mxu0 %v2599
    %3028 = vmatprep.subr.mxu0 0.0
    %3029 = vmatpush2.msra.mxu0 0.0
    %3030 = vmatprep.subr.mxu0 0.0
    %3031 = vmatpush2.msra.mxu0 0.0
    %3032 = vmatprep.subr.mxu0 0.0
    %3033 = vmatpush2.msra.mxu0 0.0
    %3034 = vmatprep.subr.mxu0 0.0
    %3035 = vmatpush2.msra.mxu0 0.0
    %3036 = vmatprep.subr.mxu0 0.0
    %3037 = vmatpush2.msra.mxu0 0.0
    %3038 = vmatprep.subr.mxu0 0.0
    %3039 = vmatpush2.msra.mxu0 0.0
    %3040 = vmatprep.subr.mxu0 0.0
    %3041 = vmatpush2.msra.mxu0 0.0
    %3042 = vmatprep.subr.mxu0 0.0
    %3043 = vmatpush2.msra.mxu0 0.0
    %3044 = vmatprep.subr.mxu0 0.0
    %3045 = vmatpush2.msra.mxu0 0.0
    %3046 = vmatprep.subr.mxu0 0.0
    %3047 = vmatpush2.msra.mxu0 0.0
    %3048 = vmatprep.subr.mxu0 0.0
    %3049 = vmatpush2.msra.mxu0 0.0
    %3050 = vmatprep.subr.mxu0 0.0
    %3051 = vmatpush2.msra.mxu0 0.0
    %3052 = vmatprep.subr.mxu0 0.0
    %3053 = vmatpush2.msra.mxu0 0.0
    %3054 = vmatprep.subr.mxu0 0.0
    %3055 = vmatpush2.msra.mxu0 0.0
    %3056 = vmatprep.subr.mxu0 0.0
    %3057 = vmatpush2.msra.mxu0 0.0
    %3058 = vmatprep.subr.mxu0 0.0
    %3059 = vmatpush2.msra.mxu0 0.0
    %3060 = vmatprep.mubr.f32.mxu0 0.0
    %3061 = vmatmul.mubr.f32.gmra.mxu0 %v2852
    %v3062 = vpop.f32.mrf.mxu0
    %v3063 = vadd.f32 %v2848, %v3062
    %v3064 = vpop.f32.mrf.mxu0
    %3065 = vdwg.mxu0
    %s3066 = scalar_lea.vmem %s1, 88
    %v3067 = vld [vmem:[%s3066] sm:$0xff]
    %3068 = vrot.lane.b32.xlu0 %v2602, 126
    %v3069 = vpop.permute.xlu0 %3068
    %3070 = vrot.lane.b32.xlu0 %v2603, 126
    %v3071 = vpop.permute.xlu0 %3070
    %3072 = vrot.lane.b32.xlu0 %v2604, 126
    %v3073 = vpop.permute.xlu0 %3072
    %3074 = vrot.lane.b32.xlu0 %v2605, 126
    %v3075 = vpop.permute.xlu0 %3074
    %3076 = vrot.lane.b32.xlu0 %v2606, 126
    %v3077 = vpop.permute.xlu0 %3076
    %3078 = vrot.lane.b32.xlu0 %v2607, 126
    %v3079 = vpop.permute.xlu0 %3078
    %v3080 = vsel %vm767, %v3069, %v3071
    %v3081 = vsel %vm767, %v3071, %v3073
    %v3082 = vsel %vm767, %v3073, %v3075
    %v3083 = vsel %vm767, %v3075, %v3077
    %v3084 = vsel %vm767, %v3077, %v3079
    %v3091 = vsel %vm318, %v3067, 0
    %3093 = vmatprep.subr.mxu0 0.0
    %3094 = vmatpush1.msra.mxu0 0.0
    %3095 = vmatprep.subr.mxu0 0.0
    %3096 = vmatpush1.msra.mxu0 0.0
    %3097 = vmatprep.subr.mxu0 0.0
    %3098 = vmatpush1.msra.mxu0 0.0
    %3099 = vmatprep.subr.mxu0 0.0
    %3100 = vmatpush1.msra.mxu0 0.0
    %3101 = vmatprep.subr.mxu0 0.0
    %3102 = vmatpush1.msra.mxu0 0.0
    %3103 = vmatprep.subr.mxu0 0.0
    %3104 = vmatpush1.msra.mxu0 0.0
    %3105 = vmatprep.subr.mxu0 0.0
    %3106 = vmatpush1.msra.mxu0 0.0
    %3107 = vmatprep.subr.mxu0 0.0
    %3108 = vmatpush1.msra.mxu0 0.0
    %3109 = vmatprep.subr.mxu0 0.0
    %3110 = vmatpush1.msra.mxu0 0.0
    %3111 = vmatprep.subr.mxu0 0.0
    %3112 = vmatpush1.msra.mxu0 0.0
    %3113 = vmatprep.subr.mxu0 0.0
    %3114 = vmatpush1.msra.mxu0 0.0
    %3115 = vmatprep.subr.mxu0 0.0
    %3116 = vmatpush1.msra.mxu0 0.0
    %3117 = vmatprep.subr.mxu0 0.0
    %3118 = vmatpush1.msra.mxu0 0.0
    %3119 = vmatprep.subr.mxu0 0.0
    %3120 = vmatpush1.msra.mxu0 0.0
    %3121 = vmatprep.subr.mxu0 0.0
    %3122 = vmatpush1.msra.mxu0 0.0
    %3123 = vmatprep.subr.mxu0 %v3081
    %3124 = vmatpush1.msra.mxu0 %v3080
    %3125 = vmatprep.subr.mxu0 0.0
    %3126 = vmatpush2.msra.mxu0 0.0
    %3127 = vmatprep.subr.mxu0 0.0
    %3128 = vmatpush2.msra.mxu0 0.0
    %3129 = vmatprep.subr.mxu0 0.0
    %3130 = vmatpush2.msra.mxu0 0.0
    %3131 = vmatprep.subr.mxu0 0.0
    %3132 = vmatpush2.msra.mxu0 0.0
    %3133 = vmatprep.subr.mxu0 0.0
    %3134 = vmatpush2.msra.mxu0 0.0
    %3135 = vmatprep.subr.mxu0 0.0
    %3136 = vmatpush2.msra.mxu0 0.0
    %3137 = vmatprep.subr.mxu0 0.0
    %3138 = vmatpush2.msra.mxu0 0.0
    %3139 = vmatprep.subr.mxu0 0.0
    %3140 = vmatpush2.msra.mxu0 0.0
    %3141 = vmatprep.subr.mxu0 0.0
    %3142 = vmatpush2.msra.mxu0 0.0
    %3143 = vmatprep.subr.mxu0 0.0
    %3144 = vmatpush2.msra.mxu0 0.0
    %3145 = vmatprep.subr.mxu0 0.0
    %3146 = vmatpush2.msra.mxu0 0.0
    %3147 = vmatprep.subr.mxu0 0.0
    %3148 = vmatpush2.msra.mxu0 0.0
    %3149 = vmatprep.subr.mxu0 0.0
    %3150 = vmatpush2.msra.mxu0 0.0
    %3151 = vmatprep.subr.mxu0 0.0
    %3152 = vmatpush2.msra.mxu0 0.0
    %3153 = vmatprep.subr.mxu0 0.0
    %3154 = vmatpush2.msra.mxu0 0.0
    %3155 = vmatprep.subr.mxu0 0.0
    %3156 = vmatpush2.msra.mxu0 0.0
    %3157 = vmatprep.mubr.f32.mxu0 0.0
    %3158 = vmatmul.mubr.f32.gmra.mxu0 %v3091
    %v3159 = vpop.f32.mrf.mxu0
    %v3160 = vadd.f32 0.0, %v3159
    %v3161 = vpop.f32.mrf.mxu0
    %v3162 = vadd.f32 0.0, %v3161
    %3163 = vdwg.mxu0
    %3164 = vmatprep.subr.mxu0 0.0
    %3165 = vmatpush1.msra.mxu0 0.0
    %3166 = vmatprep.subr.mxu0 0.0
    %3167 = vmatpush1.msra.mxu0 0.0
    %3168 = vmatprep.subr.mxu0 0.0
    %3169 = vmatpush1.msra.mxu0 0.0
    %3170 = vmatprep.subr.mxu0 0.0
    %3171 = vmatpush1.msra.mxu0 0.0
    %3172 = vmatprep.subr.mxu0 0.0
    %3173 = vmatpush1.msra.mxu0 0.0
    %3174 = vmatprep.subr.mxu0 0.0
    %3175 = vmatpush1.msra.mxu0 0.0
    %3176 = vmatprep.subr.mxu0 0.0
    %3177 = vmatpush1.msra.mxu0 0.0
    %3178 = vmatprep.subr.mxu0 0.0
    %3179 = vmatpush1.msra.mxu0 0.0
    %3180 = vmatprep.subr.mxu0 0.0
    %3181 = vmatpush1.msra.mxu0 0.0
    %3182 = vmatprep.subr.mxu0 0.0
    %3183 = vmatpush1.msra.mxu0 0.0
    %3184 = vmatprep.subr.mxu0 0.0
    %3185 = vmatpush1.msra.mxu0 0.0
    %3186 = vmatprep.subr.mxu0 0.0
    %3187 = vmatpush1.msra.mxu0 0.0
    %3188 = vmatprep.subr.mxu0 0.0
    %3189 = vmatpush1.msra.mxu0 0.0
    %3190 = vmatprep.subr.mxu0 0.0
    %3191 = vmatpush1.msra.mxu0 0.0
    %3192 = vmatprep.subr.mxu0 0.0
    %3193 = vmatpush1.msra.mxu0 0.0
    %3194 = vmatprep.subr.mxu0 %v3083
    %3195 = vmatpush1.msra.mxu0 %v3082
    %3196 = vmatprep.subr.mxu0 0.0
    %3197 = vmatpush2.msra.mxu0 0.0
    %3198 = vmatprep.subr.mxu0 0.0
    %3199 = vmatpush2.msra.mxu0 0.0
    %3200 = vmatprep.subr.mxu0 0.0
    %3201 = vmatpush2.msra.mxu0 0.0
    %3202 = vmatprep.subr.mxu0 0.0
    %3203 = vmatpush2.msra.mxu0 0.0
    %3204 = vmatprep.subr.mxu0 0.0
    %3205 = vmatpush2.msra.mxu0 0.0
    %3206 = vmatprep.subr.mxu0 0.0
    %3207 = vmatpush2.msra.mxu0 0.0
    %3208 = vmatprep.subr.mxu0 0.0
    %3209 = vmatpush2.msra.mxu0 0.0
    %3210 = vmatprep.subr.mxu0 0.0
    %3211 = vmatpush2.msra.mxu0 0.0
    %3212 = vmatprep.subr.mxu0 0.0
    %3213 = vmatpush2.msra.mxu0 0.0
    %3214 = vmatprep.subr.mxu0 0.0
    %3215 = vmatpush2.msra.mxu0 0.0
    %3216 = vmatprep.subr.mxu0 0.0
    %3217 = vmatpush2.msra.mxu0 0.0
    %3218 = vmatprep.subr.mxu0 0.0
    %3219 = vmatpush2.msra.mxu0 0.0
    %3220 = vmatprep.subr.mxu0 0.0
    %3221 = vmatpush2.msra.mxu0 0.0
    %3222 = vmatprep.subr.mxu0 0.0
    %3223 = vmatpush2.msra.mxu0 0.0
    %3224 = vmatprep.subr.mxu0 0.0
    %3225 = vmatpush2.msra.mxu0 0.0
    %3226 = vmatprep.subr.mxu0 0.0
    %3227 = vmatpush2.msra.mxu0 0.0
    %3228 = vmatprep.mubr.f32.mxu0 0.0
    %3229 = vmatmul.mubr.f32.gmra.mxu0 %v3091
    %v3230 = vpop.f32.mrf.mxu0
    %v3231 = vadd.f32 0.0, %v3230
    %v3232 = vpop.f32.mrf.mxu0
    %v3233 = vadd.f32 0.0, %v3232
    %3234 = vdwg.mxu0
    %3235 = vmatprep.subr.mxu0 0.0
    %3236 = vmatpush1.msra.mxu0 0.0
    %3237 = vmatprep.subr.mxu0 0.0
    %3238 = vmatpush1.msra.mxu0 0.0
    %3239 = vmatprep.subr.mxu0 0.0
    %3240 = vmatpush1.msra.mxu0 0.0
    %3241 = vmatprep.subr.mxu0 0.0
    %3242 = vmatpush1.msra.mxu0 0.0
    %3243 = vmatprep.subr.mxu0 0.0
    %3244 = vmatpush1.msra.mxu0 0.0
    %3245 = vmatprep.subr.mxu0 0.0
    %3246 = vmatpush1.msra.mxu0 0.0
    %3247 = vmatprep.subr.mxu0 0.0
    %3248 = vmatpush1.msra.mxu0 0.0
    %3249 = vmatprep.subr.mxu0 0.0
    %3250 = vmatpush1.msra.mxu0 0.0
    %3251 = vmatprep.subr.mxu0 0.0
    %3252 = vmatpush1.msra.mxu0 0.0
    %3253 = vmatprep.subr.mxu0 0.0
    %3254 = vmatpush1.msra.mxu0 0.0
    %3255 = vmatprep.subr.mxu0 0.0
    %3256 = vmatpush1.msra.mxu0 0.0
    %3257 = vmatprep.subr.mxu0 0.0
    %3258 = vmatpush1.msra.mxu0 0.0
    %3259 = vmatprep.subr.mxu0 0.0
    %3260 = vmatpush1.msra.mxu0 0.0
    %3261 = vmatprep.subr.mxu0 0.0
    %3262 = vmatpush1.msra.mxu0 0.0
    %3263 = vmatprep.subr.mxu0 0.0
    %3264 = vmatpush1.msra.mxu0 0.0
    %3265 = vmatprep.subr.mxu0 0.0
    %3266 = vmatpush1.msra.mxu0 %v3084
    %3267 = vmatprep.subr.mxu0 0.0
    %3268 = vmatpush2.msra.mxu0 0.0
    %3269 = vmatprep.subr.mxu0 0.0
    %3270 = vmatpush2.msra.mxu0 0.0
    %3271 = vmatprep.subr.mxu0 0.0
    %3272 = vmatpush2.msra.mxu0 0.0
    %3273 = vmatprep.subr.mxu0 0.0
    %3274 = vmatpush2.msra.mxu0 0.0
    %3275 = vmatprep.subr.mxu0 0.0
    %3276 = vmatpush2.msra.mxu0 0.0
    %3277 = vmatprep.subr.mxu0 0.0
    %3278 = vmatpush2.msra.mxu0 0.0
    %3279 = vmatprep.subr.mxu0 0.0
    %3280 = vmatpush2.msra.mxu0 0.0
    %3281 = vmatprep.subr.mxu0 0.0
    %3282 = vmatpush2.msra.mxu0 0.0
    %3283 = vmatprep.subr.mxu0 0.0
    %3284 = vmatpush2.msra.mxu0 0.0
    %3285 = vmatprep.subr.mxu0 0.0
    %3286 = vmatpush2.msra.mxu0 0.0
    %3287 = vmatprep.subr.mxu0 0.0
    %3288 = vmatpush2.msra.mxu0 0.0
    %3289 = vmatprep.subr.mxu0 0.0
    %3290 = vmatpush2.msra.mxu0 0.0
    %3291 = vmatprep.subr.mxu0 0.0
    %3292 = vmatpush2.msra.mxu0 0.0
    %3293 = vmatprep.subr.mxu0 0.0
    %3294 = vmatpush2.msra.mxu0 0.0
    %3295 = vmatprep.subr.mxu0 0.0
    %3296 = vmatpush2.msra.mxu0 0.0
    %3297 = vmatprep.subr.mxu0 0.0
    %3298 = vmatpush2.msra.mxu0 0.0
    %3299 = vmatprep.mubr.f32.mxu0 0.0
    %3300 = vmatmul.mubr.f32.gmra.mxu0 %v3091
    %v3301 = vpop.f32.mrf.mxu0
    %v3302 = vadd.f32 0.0, %v3301
    %v3303 = vpop.f32.mrf.mxu0
    %3304 = vdwg.mxu0
    %v3305 = vadd.f32 %v2921, %v3160
    %v3306 = vadd.f32 %v2923, %v3162
    %v3307 = vadd.f32 %v2992, %v3231
    %v3308 = vadd.f32 %v2994, %v3233
    %v3309 = vadd.f32 %v3063, %v3302
    %s3310 = scalar_lea.vmem %s1, 96
    %v3311 = vld [vmem:[%s3310] sm:$0xff]
    %3312 = vrot.lane.b32.xlu0 %v2602, 110
    %v3313 = vpop.permute.xlu0 %3312
    %3314 = vrot.lane.b32.xlu0 %v2603, 110
    %v3315 = vpop.permute.xlu0 %3314
    %3316 = vrot.lane.b32.xlu0 %v2604, 110
    %v3317 = vpop.permute.xlu0 %3316
    %3318 = vrot.lane.b32.xlu0 %v2605, 110
    %v3319 = vpop.permute.xlu0 %3318
    %3320 = vrot.lane.b32.xlu0 %v2606, 110
    %v3321 = vpop.permute.xlu0 %3320
    %3322 = vrot.lane.b32.xlu0 %v2607, 110
    %v3323 = vpop.permute.xlu0 %3322
    %v3324 = vsel %vm1018, %v3313, %v3315
    %v3325 = vsel %vm1018, %v3315, %v3317
    %v3326 = vsel %vm1018, %v3317, %v3319
    %v3327 = vsel %vm1018, %v3319, %v3321
    %v3328 = vsel %vm1018, %v3321, %v3323
    %v3335 = vsel %vm318, %v3311, 0
    %3337 = vmatprep.subr.mxu0 0.0
    %3338 = vmatpush1.msra.mxu0 0.0
    %3339 = vmatprep.subr.mxu0 0.0
    %3340 = vmatpush1.msra.mxu0 0.0
    %3341 = vmatprep.subr.mxu0 0.0
    %3342 = vmatpush1.msra.mxu0 0.0
    %3343 = vmatprep.subr.mxu0 0.0
    %3344 = vmatpush1.msra.mxu0 0.0
    %3345 = vmatprep.subr.mxu0 0.0
    %3346 = vmatpush1.msra.mxu0 0.0
    %3347 = vmatprep.subr.mxu0 0.0
    %3348 = vmatpush1.msra.mxu0 0.0
    %3349 = vmatprep.subr.mxu0 0.0
    %3350 = vmatpush1.msra.mxu0 0.0
    %3351 = vmatprep.subr.mxu0 0.0
    %3352 = vmatpush1.msra.mxu0 0.0
    %3353 = vmatprep.subr.mxu0 0.0
    %3354 = vmatpush1.msra.mxu0 0.0
    %3355 = vmatprep.subr.mxu0 0.0
    %3356 = vmatpush1.msra.mxu0 0.0
    %3357 = vmatprep.subr.mxu0 0.0
    %3358 = vmatpush1.msra.mxu0 0.0
    %3359 = vmatprep.subr.mxu0 0.0
    %3360 = vmatpush1.msra.mxu0 0.0
    %3361 = vmatprep.subr.mxu0 0.0
    %3362 = vmatpush1.msra.mxu0 0.0
    %3363 = vmatprep.subr.mxu0 0.0
    %3364 = vmatpush1.msra.mxu0 0.0
    %3365 = vmatprep.subr.mxu0 0.0
    %3366 = vmatpush1.msra.mxu0 0.0
    %3367 = vmatprep.subr.mxu0 %v3325
    %3368 = vmatpush1.msra.mxu0 %v3324
    %3369 = vmatprep.subr.mxu0 0.0
    %3370 = vmatpush2.msra.mxu0 0.0
    %3371 = vmatprep.subr.mxu0 0.0
    %3372 = vmatpush2.msra.mxu0 0.0
    %3373 = vmatprep.subr.mxu0 0.0
    %3374 = vmatpush2.msra.mxu0 0.0
    %3375 = vmatprep.subr.mxu0 0.0
    %3376 = vmatpush2.msra.mxu0 0.0
    %3377 = vmatprep.subr.mxu0 0.0
    %3378 = vmatpush2.msra.mxu0 0.0
    %3379 = vmatprep.subr.mxu0 0.0
    %3380 = vmatpush2.msra.mxu0 0.0
    %3381 = vmatprep.subr.mxu0 0.0
    %3382 = vmatpush2.msra.mxu0 0.0
    %3383 = vmatprep.subr.mxu0 0.0
    %3384 = vmatpush2.msra.mxu0 0.0
    %3385 = vmatprep.subr.mxu0 0.0
    %3386 = vmatpush2.msra.mxu0 0.0
    %3387 = vmatprep.subr.mxu0 0.0
    %3388 = vmatpush2.msra.mxu0 0.0
    %3389 = vmatprep.subr.mxu0 0.0
    %3390 = vmatpush2.msra.mxu0 0.0
    %3391 = vmatprep.subr.mxu0 0.0
    %3392 = vmatpush2.msra.mxu0 0.0
    %3393 = vmatprep.subr.mxu0 0.0
    %3394 = vmatpush2.msra.mxu0 0.0
    %3395 = vmatprep.subr.mxu0 0.0
    %3396 = vmatpush2.msra.mxu0 0.0
    %3397 = vmatprep.subr.mxu0 0.0
    %3398 = vmatpush2.msra.mxu0 0.0
    %3399 = vmatprep.subr.mxu0 0.0
    %3400 = vmatpush2.msra.mxu0 0.0
    %3401 = vmatprep.mubr.f32.mxu0 0.0
    %3402 = vmatmul.mubr.f32.gmra.mxu0 %v3335
    %v3403 = vpop.f32.mrf.mxu0
    %v3404 = vadd.f32 0.0, %v3403
    %v3405 = vpop.f32.mrf.mxu0
    %v3406 = vadd.f32 0.0, %v3405
    %3407 = vdwg.mxu0
    %3408 = vmatprep.subr.mxu0 0.0
    %3409 = vmatpush1.msra.mxu0 0.0
    %3410 = vmatprep.subr.mxu0 0.0
    %3411 = vmatpush1.msra.mxu0 0.0
    %3412 = vmatprep.subr.mxu0 0.0
    %3413 = vmatpush1.msra.mxu0 0.0
    %3414 = vmatprep.subr.mxu0 0.0
    %3415 = vmatpush1.msra.mxu0 0.0
    %3416 = vmatprep.subr.mxu0 0.0
    %3417 = vmatpush1.msra.mxu0 0.0
    %3418 = vmatprep.subr.mxu0 0.0
    %3419 = vmatpush1.msra.mxu0 0.0
    %3420 = vmatprep.subr.mxu0 0.0
    %3421 = vmatpush1.msra.mxu0 0.0
    %3422 = vmatprep.subr.mxu0 0.0
    %3423 = vmatpush1.msra.mxu0 0.0
    %3424 = vmatprep.subr.mxu0 0.0
    %3425 = vmatpush1.msra.mxu0 0.0
    %3426 = vmatprep.subr.mxu0 0.0
    %3427 = vmatpush1.msra.mxu0 0.0
    %3428 = vmatprep.subr.mxu0 0.0
    %3429 = vmatpush1.msra.mxu0 0.0
    %3430 = vmatprep.subr.mxu0 0.0
    %3431 = vmatpush1.msra.mxu0 0.0
    %3432 = vmatprep.subr.mxu0 0.0
    %3433 = vmatpush1.msra.mxu0 0.0
    %3434 = vmatprep.subr.mxu0 0.0
    %3435 = vmatpush1.msra.mxu0 0.0
    %3436 = vmatprep.subr.mxu0 0.0
    %3437 = vmatpush1.msra.mxu0 0.0
    %3438 = vmatprep.subr.mxu0 %v3327
    %3439 = vmatpush1.msra.mxu0 %v3326
    %3440 = vmatprep.subr.mxu0 0.0
    %3441 = vmatpush2.msra.mxu0 0.0
    %3442 = vmatprep.subr.mxu0 0.0
    %3443 = vmatpush2.msra.mxu0 0.0
    %3444 = vmatprep.subr.mxu0 0.0
    %3445 = vmatpush2.msra.mxu0 0.0
    %3446 = vmatprep.subr.mxu0 0.0
    %3447 = vmatpush2.msra.mxu0 0.0
    %3448 = vmatprep.subr.mxu0 0.0
    %3449 = vmatpush2.msra.mxu0 0.0
    %3450 = vmatprep.subr.mxu0 0.0
    %3451 = vmatpush2.msra.mxu0 0.0
    %3452 = vmatprep.subr.mxu0 0.0
    %3453 = vmatpush2.msra.mxu0 0.0
    %3454 = vmatprep.subr.mxu0 0.0
    %3455 = vmatpush2.msra.mxu0 0.0
    %3456 = vmatprep.subr.mxu0 0.0
    %3457 = vmatpush2.msra.mxu0 0.0
    %3458 = vmatprep.subr.mxu0 0.0
    %3459 = vmatpush2.msra.mxu0 0.0
    %3460 = vmatprep.subr.mxu0 0.0
    %3461 = vmatpush2.msra.mxu0 0.0
    %3462 = vmatprep.subr.mxu0 0.0
    %3463 = vmatpush2.msra.mxu0 0.0
    %3464 = vmatprep.subr.mxu0 0.0
    %3465 = vmatpush2.msra.mxu0 0.0
    %3466 = vmatprep.subr.mxu0 0.0
    %3467 = vmatpush2.msra.mxu0 0.0
    %3468 = vmatprep.subr.mxu0 0.0
    %3469 = vmatpush2.msra.mxu0 0.0
    %3470 = vmatprep.subr.mxu0 0.0
    %3471 = vmatpush2.msra.mxu0 0.0
    %3472 = vmatprep.mubr.f32.mxu0 0.0
    %3473 = vmatmul.mubr.f32.gmra.mxu0 %v3335
    %v3474 = vpop.f32.mrf.mxu0
    %v3475 = vadd.f32 0.0, %v3474
    %v3476 = vpop.f32.mrf.mxu0
    %v3477 = vadd.f32 0.0, %v3476
    %3478 = vdwg.mxu0
    %3479 = vmatprep.subr.mxu0 0.0
    %3480 = vmatpush1.msra.mxu0 0.0
    %3481 = vmatprep.subr.mxu0 0.0
    %3482 = vmatpush1.msra.mxu0 0.0
    %3483 = vmatprep.subr.mxu0 0.0
    %3484 = vmatpush1.msra.mxu0 0.0
    %3485 = vmatprep.subr.mxu0 0.0
    %3486 = vmatpush1.msra.mxu0 0.0
    %3487 = vmatprep.subr.mxu0 0.0
    %3488 = vmatpush1.msra.mxu0 0.0
    %3489 = vmatprep.subr.mxu0 0.0
    %3490 = vmatpush1.msra.mxu0 0.0
    %3491 = vmatprep.subr.mxu0 0.0
    %3492 = vmatpush1.msra.mxu0 0.0
    %3493 = vmatprep.subr.mxu0 0.0
    %3494 = vmatpush1.msra.mxu0 0.0
    %3495 = vmatprep.subr.mxu0 0.0
    %3496 = vmatpush1.msra.mxu0 0.0
    %3497 = vmatprep.subr.mxu0 0.0
    %3498 = vmatpush1.msra.mxu0 0.0
    %3499 = vmatprep.subr.mxu0 0.0
    %3500 = vmatpush1.msra.mxu0 0.0
    %3501 = vmatprep.subr.mxu0 0.0
    %3502 = vmatpush1.msra.mxu0 0.0
    %3503 = vmatprep.subr.mxu0 0.0
    %3504 = vmatpush1.msra.mxu0 0.0
    %3505 = vmatprep.subr.mxu0 0.0
    %3506 = vmatpush1.msra.mxu0 0.0
    %3507 = vmatprep.subr.mxu0 0.0
    %3508 = vmatpush1.msra.mxu0 0.0
    %3509 = vmatprep.subr.mxu0 0.0
    %3510 = vmatpush1.msra.mxu0 %v3328
    %3511 = vmatprep.subr.mxu0 0.0
    %3512 = vmatpush2.msra.mxu0 0.0
    %3513 = vmatprep.subr.mxu0 0.0
    %3514 = vmatpush2.msra.mxu0 0.0
    %3515 = vmatprep.subr.mxu0 0.0
    %3516 = vmatpush2.msra.mxu0 0.0
    %3517 = vmatprep.subr.mxu0 0.0
    %3518 = vmatpush2.msra.mxu0 0.0
    %3519 = vmatprep.subr.mxu0 0.0
    %3520 = vmatpush2.msra.mxu0 0.0
    %3521 = vmatprep.subr.mxu0 0.0
    %3522 = vmatpush2.msra.mxu0 0.0
    %3523 = vmatprep.subr.mxu0 0.0
    %3524 = vmatpush2.msra.mxu0 0.0
    %3525 = vmatprep.subr.mxu0 0.0
    %3526 = vmatpush2.msra.mxu0 0.0
    %3527 = vmatprep.subr.mxu0 0.0
    %3528 = vmatpush2.msra.mxu0 0.0
    %3529 = vmatprep.subr.mxu0 0.0
    %3530 = vmatpush2.msra.mxu0 0.0
    %3531 = vmatprep.subr.mxu0 0.0
    %3532 = vmatpush2.msra.mxu0 0.0
    %3533 = vmatprep.subr.mxu0 0.0
    %3534 = vmatpush2.msra.mxu0 0.0
    %3535 = vmatprep.subr.mxu0 0.0
    %3536 = vmatpush2.msra.mxu0 0.0
    %3537 = vmatprep.subr.mxu0 0.0
    %3538 = vmatpush2.msra.mxu0 0.0
    %3539 = vmatprep.subr.mxu0 0.0
    %3540 = vmatpush2.msra.mxu0 0.0
    %3541 = vmatprep.subr.mxu0 0.0
    %3542 = vmatpush2.msra.mxu0 0.0
    %3543 = vmatprep.mubr.f32.mxu0 0.0
    %3544 = vmatmul.mubr.f32.gmra.mxu0 %v3335
    %v3545 = vpop.f32.mrf.mxu0
    %v3546 = vadd.f32 0.0, %v3545
    %v3547 = vpop.f32.mrf.mxu0
    %3548 = vdwg.mxu0
    %v3549 = vadd.f32 %v3305, %v3404
    %v3550 = vadd.f32 %v3306, %v3406
    %v3551 = vadd.f32 %v3307, %v3475
    %v3552 = vadd.f32 %v3308, %v3477
    %v3553 = vadd.f32 %v3309, %v3546
    %s3554 = scalar_lea.vmem %s1, 104
    %v3555 = vld [vmem:[%s3554] sm:$0xff]
    %3556 = vrot.lane.b32.xlu0 %v2602, 109
    %v3557 = vpop.permute.xlu0 %3556
    %3558 = vrot.lane.b32.xlu0 %v2603, 109
    %v3559 = vpop.permute.xlu0 %3558
    %3560 = vrot.lane.b32.xlu0 %v2604, 109
    %v3561 = vpop.permute.xlu0 %3560
    %3562 = vrot.lane.b32.xlu0 %v2605, 109
    %v3563 = vpop.permute.xlu0 %3562
    %3564 = vrot.lane.b32.xlu0 %v2606, 109
    %v3565 = vpop.permute.xlu0 %3564
    %3566 = vrot.lane.b32.xlu0 %v2607, 109
    %v3567 = vpop.permute.xlu0 %3566
    %v3568 = vsel %vm1269, %v3557, %v3559
    %v3569 = vsel %vm1269, %v3559, %v3561
    %v3570 = vsel %vm1269, %v3561, %v3563
    %v3571 = vsel %vm1269, %v3563, %v3565
    %v3572 = vsel %vm1269, %v3565, %v3567
    %v3579 = vsel %vm318, %v3555, 0
    %3581 = vmatprep.subr.mxu0 0.0
    %3582 = vmatpush1.msra.mxu0 0.0
    %3583 = vmatprep.subr.mxu0 0.0
    %3584 = vmatpush1.msra.mxu0 0.0
    %3585 = vmatprep.subr.mxu0 0.0
    %3586 = vmatpush1.msra.mxu0 0.0
    %3587 = vmatprep.subr.mxu0 0.0
    %3588 = vmatpush1.msra.mxu0 0.0
    %3589 = vmatprep.subr.mxu0 0.0
    %3590 = vmatpush1.msra.mxu0 0.0
    %3591 = vmatprep.subr.mxu0 0.0
    %3592 = vmatpush1.msra.mxu0 0.0
    %3593 = vmatprep.subr.mxu0 0.0
    %3594 = vmatpush1.msra.mxu0 0.0
    %3595 = vmatprep.subr.mxu0 0.0
    %3596 = vmatpush1.msra.mxu0 0.0
    %3597 = vmatprep.subr.mxu0 0.0
    %3598 = vmatpush1.msra.mxu0 0.0
    %3599 = vmatprep.subr.mxu0 0.0
    %3600 = vmatpush1.msra.mxu0 0.0
    %3601 = vmatprep.subr.mxu0 0.0
    %3602 = vmatpush1.msra.mxu0 0.0
    %3603 = vmatprep.subr.mxu0 0.0
    %3604 = vmatpush1.msra.mxu0 0.0
    %3605 = vmatprep.subr.mxu0 0.0
    %3606 = vmatpush1.msra.mxu0 0.0
    %3607 = vmatprep.subr.mxu0 0.0
    %3608 = vmatpush1.msra.mxu0 0.0
    %3609 = vmatprep.subr.mxu0 0.0
    %3610 = vmatpush1.msra.mxu0 0.0
    %3611 = vmatprep.subr.mxu0 %v3569
    %3612 = vmatpush1.msra.mxu0 %v3568
    %3613 = vmatprep.subr.mxu0 0.0
    %3614 = vmatpush2.msra.mxu0 0.0
    %3615 = vmatprep.subr.mxu0 0.0
    %3616 = vmatpush2.msra.mxu0 0.0
    %3617 = vmatprep.subr.mxu0 0.0
    %3618 = vmatpush2.msra.mxu0 0.0
    %3619 = vmatprep.subr.mxu0 0.0
    %3620 = vmatpush2.msra.mxu0 0.0
    %3621 = vmatprep.subr.mxu0 0.0
    %3622 = vmatpush2.msra.mxu0 0.0
    %3623 = vmatprep.subr.mxu0 0.0
    %3624 = vmatpush2.msra.mxu0 0.0
    %3625 = vmatprep.subr.mxu0 0.0
    %3626 = vmatpush2.msra.mxu0 0.0
    %3627 = vmatprep.subr.mxu0 0.0
    %3628 = vmatpush2.msra.mxu0 0.0
    %3629 = vmatprep.subr.mxu0 0.0
    %3630 = vmatpush2.msra.mxu0 0.0
    %3631 = vmatprep.subr.mxu0 0.0
    %3632 = vmatpush2.msra.mxu0 0.0
    %3633 = vmatprep.subr.mxu0 0.0
    %3634 = vmatpush2.msra.mxu0 0.0
    %3635 = vmatprep.subr.mxu0 0.0
    %3636 = vmatpush2.msra.mxu0 0.0
    %3637 = vmatprep.subr.mxu0 0.0
    %3638 = vmatpush2.msra.mxu0 0.0
    %3639 = vmatprep.subr.mxu0 0.0
    %3640 = vmatpush2.msra.mxu0 0.0
    %3641 = vmatprep.subr.mxu0 0.0
    %3642 = vmatpush2.msra.mxu0 0.0
    %3643 = vmatprep.subr.mxu0 0.0
    %3644 = vmatpush2.msra.mxu0 0.0
    %3645 = vmatprep.mubr.f32.mxu0 0.0
    %3646 = vmatmul.mubr.f32.gmra.mxu0 %v3579
    %v3647 = vpop.f32.mrf.mxu0
    %v3648 = vadd.f32 0.0, %v3647
    %v3649 = vpop.f32.mrf.mxu0
    %v3650 = vadd.f32 0.0, %v3649
    %3651 = vdwg.mxu0
    %3652 = vmatprep.subr.mxu0 0.0
    %3653 = vmatpush1.msra.mxu0 0.0
    %3654 = vmatprep.subr.mxu0 0.0
    %3655 = vmatpush1.msra.mxu0 0.0
    %3656 = vmatprep.subr.mxu0 0.0
    %3657 = vmatpush1.msra.mxu0 0.0
    %3658 = vmatprep.subr.mxu0 0.0
    %3659 = vmatpush1.msra.mxu0 0.0
    %3660 = vmatprep.subr.mxu0 0.0
    %3661 = vmatpush1.msra.mxu0 0.0
    %3662 = vmatprep.subr.mxu0 0.0
    %3663 = vmatpush1.msra.mxu0 0.0
    %3664 = vmatprep.subr.mxu0 0.0
    %3665 = vmatpush1.msra.mxu0 0.0
    %3666 = vmatprep.subr.mxu0 0.0
    %3667 = vmatpush1.msra.mxu0 0.0
    %3668 = vmatprep.subr.mxu0 0.0
    %3669 = vmatpush1.msra.mxu0 0.0
    %3670 = vmatprep.subr.mxu0 0.0
    %3671 = vmatpush1.msra.mxu0 0.0
    %3672 = vmatprep.subr.mxu0 0.0
    %3673 = vmatpush1.msra.mxu0 0.0
    %3674 = vmatprep.subr.mxu0 0.0
    %3675 = vmatpush1.msra.mxu0 0.0
    %3676 = vmatprep.subr.mxu0 0.0
    %3677 = vmatpush1.msra.mxu0 0.0
    %3678 = vmatprep.subr.mxu0 0.0
    %3679 = vmatpush1.msra.mxu0 0.0
    %3680 = vmatprep.subr.mxu0 0.0
    %3681 = vmatpush1.msra.mxu0 0.0
    %3682 = vmatprep.subr.mxu0 %v3571
    %3683 = vmatpush1.msra.mxu0 %v3570
    %3684 = vmatprep.subr.mxu0 0.0
    %3685 = vmatpush2.msra.mxu0 0.0
    %3686 = vmatprep.subr.mxu0 0.0
    %3687 = vmatpush2.msra.mxu0 0.0
    %3688 = vmatprep.subr.mxu0 0.0
    %3689 = vmatpush2.msra.mxu0 0.0
    %3690 = vmatprep.subr.mxu0 0.0
    %3691 = vmatpush2.msra.mxu0 0.0
    %3692 = vmatprep.subr.mxu0 0.0
    %3693 = vmatpush2.msra.mxu0 0.0
    %3694 = vmatprep.subr.mxu0 0.0
    %3695 = vmatpush2.msra.mxu0 0.0
    %3696 = vmatprep.subr.mxu0 0.0
    %3697 = vmatpush2.msra.mxu0 0.0
    %3698 = vmatprep.subr.mxu0 0.0
    %3699 = vmatpush2.msra.mxu0 0.0
    %3700 = vmatprep.subr.mxu0 0.0
    %3701 = vmatpush2.msra.mxu0 0.0
    %3702 = vmatprep.subr.mxu0 0.0
    %3703 = vmatpush2.msra.mxu0 0.0
    %3704 = vmatprep.subr.mxu0 0.0
    %3705 = vmatpush2.msra.mxu0 0.0
    %3706 = vmatprep.subr.mxu0 0.0
    %3707 = vmatpush2.msra.mxu0 0.0
    %3708 = vmatprep.subr.mxu0 0.0
    %3709 = vmatpush2.msra.mxu0 0.0
    %3710 = vmatprep.subr.mxu0 0.0
    %3711 = vmatpush2.msra.mxu0 0.0
    %3712 = vmatprep.subr.mxu0 0.0
    %3713 = vmatpush2.msra.mxu0 0.0
    %3714 = vmatprep.subr.mxu0 0.0
    %3715 = vmatpush2.msra.mxu0 0.0
    %3716 = vmatprep.mubr.f32.mxu0 0.0
    %3717 = vmatmul.mubr.f32.gmra.mxu0 %v3579
    %v3718 = vpop.f32.mrf.mxu0
    %v3719 = vadd.f32 0.0, %v3718
    %v3720 = vpop.f32.mrf.mxu0
    %v3721 = vadd.f32 0.0, %v3720
    %3722 = vdwg.mxu0
    %3723 = vmatprep.subr.mxu0 0.0
    %3724 = vmatpush1.msra.mxu0 0.0
    %3725 = vmatprep.subr.mxu0 0.0
    %3726 = vmatpush1.msra.mxu0 0.0
    %3727 = vmatprep.subr.mxu0 0.0
    %3728 = vmatpush1.msra.mxu0 0.0
    %3729 = vmatprep.subr.mxu0 0.0
    %3730 = vmatpush1.msra.mxu0 0.0
    %3731 = vmatprep.subr.mxu0 0.0
    %3732 = vmatpush1.msra.mxu0 0.0
    %3733 = vmatprep.subr.mxu0 0.0
    %3734 = vmatpush1.msra.mxu0 0.0
    %3735 = vmatprep.subr.mxu0 0.0
    %3736 = vmatpush1.msra.mxu0 0.0
    %3737 = vmatprep.subr.mxu0 0.0
    %3738 = vmatpush1.msra.mxu0 0.0
    %3739 = vmatprep.subr.mxu0 0.0
    %3740 = vmatpush1.msra.mxu0 0.0
    %3741 = vmatprep.subr.mxu0 0.0
    %3742 = vmatpush1.msra.mxu0 0.0
    %3743 = vmatprep.subr.mxu0 0.0
    %3744 = vmatpush1.msra.mxu0 0.0
    %3745 = vmatprep.subr.mxu0 0.0
    %3746 = vmatpush1.msra.mxu0 0.0
    %3747 = vmatprep.subr.mxu0 0.0
    %3748 = vmatpush1.msra.mxu0 0.0
    %3749 = vmatprep.subr.mxu0 0.0
    %3750 = vmatpush1.msra.mxu0 0.0
    %3751 = vmatprep.subr.mxu0 0.0
    %3752 = vmatpush1.msra.mxu0 0.0
    %3753 = vmatprep.subr.mxu0 0.0
    %3754 = vmatpush1.msra.mxu0 %v3572
    %3755 = vmatprep.subr.mxu0 0.0
    %3756 = vmatpush2.msra.mxu0 0.0
    %3757 = vmatprep.subr.mxu0 0.0
    %3758 = vmatpush2.msra.mxu0 0.0
    %3759 = vmatprep.subr.mxu0 0.0
    %3760 = vmatpush2.msra.mxu0 0.0
    %3761 = vmatprep.subr.mxu0 0.0
    %3762 = vmatpush2.msra.mxu0 0.0
    %3763 = vmatprep.subr.mxu0 0.0
    %3764 = vmatpush2.msra.mxu0 0.0
    %3765 = vmatprep.subr.mxu0 0.0
    %3766 = vmatpush2.msra.mxu0 0.0
    %3767 = vmatprep.subr.mxu0 0.0
    %3768 = vmatpush2.msra.mxu0 0.0
    %3769 = vmatprep.subr.mxu0 0.0
    %3770 = vmatpush2.msra.mxu0 0.0
    %3771 = vmatprep.subr.mxu0 0.0
    %3772 = vmatpush2.msra.mxu0 0.0
    %3773 = vmatprep.subr.mxu0 0.0
    %3774 = vmatpush2.msra.mxu0 0.0
    %3775 = vmatprep.subr.mxu0 0.0
    %3776 = vmatpush2.msra.mxu0 0.0
    %3777 = vmatprep.subr.mxu0 0.0
    %3778 = vmatpush2.msra.mxu0 0.0
    %3779 = vmatprep.subr.mxu0 0.0
    %3780 = vmatpush2.msra.mxu0 0.0
    %3781 = vmatprep.subr.mxu0 0.0
    %3782 = vmatpush2.msra.mxu0 0.0
    %3783 = vmatprep.subr.mxu0 0.0
    %3784 = vmatpush2.msra.mxu0 0.0
    %3785 = vmatprep.subr.mxu0 0.0
    %3786 = vmatpush2.msra.mxu0 0.0
    %3787 = vmatprep.mubr.f32.mxu0 0.0
    %3788 = vmatmul.mubr.f32.gmra.mxu0 %v3579
    %v3789 = vpop.f32.mrf.mxu0
    %v3790 = vadd.f32 0.0, %v3789
    %v3791 = vpop.f32.mrf.mxu0
    %3792 = vdwg.mxu0
    %v3793 = vadd.f32 %v3549, %v3648
    %v3794 = vadd.f32 %v3550, %v3650
    %v3795 = vadd.f32 %v3551, %v3719
    %v3796 = vadd.f32 %v3552, %v3721
    %v3797 = vadd.f32 %v3553, %v3790
    %s3798 = scalar_lea.vmem %s1, 112
    %v3799 = vld [vmem:[%s3798] sm:$0xff]
    %3800 = vrot.lane.b32.xlu0 %v2602, 108
    %v3801 = vpop.permute.xlu0 %3800
    %3802 = vrot.lane.b32.xlu0 %v2603, 108
    %v3803 = vpop.permute.xlu0 %3802
    %3804 = vrot.lane.b32.xlu0 %v2604, 108
    %v3805 = vpop.permute.xlu0 %3804
    %3806 = vrot.lane.b32.xlu0 %v2605, 108
    %v3807 = vpop.permute.xlu0 %3806
    %3808 = vrot.lane.b32.xlu0 %v2606, 108
    %v3809 = vpop.permute.xlu0 %3808
    %3810 = vrot.lane.b32.xlu0 %v2607, 108
    %v3811 = vpop.permute.xlu0 %3810
    %v3812 = vsel %vm1520, %v3801, %v3803
    %v3813 = vsel %vm1520, %v3803, %v3805
    %v3814 = vsel %vm1520, %v3805, %v3807
    %v3815 = vsel %vm1520, %v3807, %v3809
    %v3816 = vsel %vm1520, %v3809, %v3811
    %v3823 = vsel %vm318, %v3799, 0
    %3825 = vmatprep.subr.mxu0 0.0
    %3826 = vmatpush1.msra.mxu0 0.0
    %3827 = vmatprep.subr.mxu0 0.0
    %3828 = vmatpush1.msra.mxu0 0.0
    %3829 = vmatprep.subr.mxu0 0.0
    %3830 = vmatpush1.msra.mxu0 0.0
    %3831 = vmatprep.subr.mxu0 0.0
    %3832 = vmatpush1.msra.mxu0 0.0
    %3833 = vmatprep.subr.mxu0 0.0
    %3834 = vmatpush1.msra.mxu0 0.0
    %3835 = vmatprep.subr.mxu0 0.0
    %3836 = vmatpush1.msra.mxu0 0.0
    %3837 = vmatprep.subr.mxu0 0.0
    %3838 = vmatpush1.msra.mxu0 0.0
    %3839 = vmatprep.subr.mxu0 0.0
    %3840 = vmatpush1.msra.mxu0 0.0
    %3841 = vmatprep.subr.mxu0 0.0
    %3842 = vmatpush1.msra.mxu0 0.0
    %3843 = vmatprep.subr.mxu0 0.0
    %3844 = vmatpush1.msra.mxu0 0.0
    %3845 = vmatprep.subr.mxu0 0.0
    %3846 = vmatpush1.msra.mxu0 0.0
    %3847 = vmatprep.subr.mxu0 0.0
    %3848 = vmatpush1.msra.mxu0 0.0
    %3849 = vmatprep.subr.mxu0 0.0
    %3850 = vmatpush1.msra.mxu0 0.0
    %3851 = vmatprep.subr.mxu0 0.0
    %3852 = vmatpush1.msra.mxu0 0.0
    %3853 = vmatprep.subr.mxu0 0.0
    %3854 = vmatpush1.msra.mxu0 0.0
    %3855 = vmatprep.subr.mxu0 %v3813
    %3856 = vmatpush1.msra.mxu0 %v3812
    %3857 = vmatprep.subr.mxu0 0.0
    %3858 = vmatpush2.msra.mxu0 0.0
    %3859 = vmatprep.subr.mxu0 0.0
    %3860 = vmatpush2.msra.mxu0 0.0
    %3861 = vmatprep.subr.mxu0 0.0
    %3862 = vmatpush2.msra.mxu0 0.0
    %3863 = vmatprep.subr.mxu0 0.0
    %3864 = vmatpush2.msra.mxu0 0.0
    %3865 = vmatprep.subr.mxu0 0.0
    %3866 = vmatpush2.msra.mxu0 0.0
    %3867 = vmatprep.subr.mxu0 0.0
    %3868 = vmatpush2.msra.mxu0 0.0
    %3869 = vmatprep.subr.mxu0 0.0
    %3870 = vmatpush2.msra.mxu0 0.0
    %3871 = vmatprep.subr.mxu0 0.0
    %3872 = vmatpush2.msra.mxu0 0.0
    %3873 = vmatprep.subr.mxu0 0.0
    %3874 = vmatpush2.msra.mxu0 0.0
    %3875 = vmatprep.subr.mxu0 0.0
    %3876 = vmatpush2.msra.mxu0 0.0
    %3877 = vmatprep.subr.mxu0 0.0
    %3878 = vmatpush2.msra.mxu0 0.0
    %3879 = vmatprep.subr.mxu0 0.0
    %3880 = vmatpush2.msra.mxu0 0.0
    %3881 = vmatprep.subr.mxu0 0.0
    %3882 = vmatpush2.msra.mxu0 0.0
    %3883 = vmatprep.subr.mxu0 0.0
    %3884 = vmatpush2.msra.mxu0 0.0
    %3885 = vmatprep.subr.mxu0 0.0
    %3886 = vmatpush2.msra.mxu0 0.0
    %3887 = vmatprep.subr.mxu0 0.0
    %3888 = vmatpush2.msra.mxu0 0.0
    %3889 = vmatprep.mubr.f32.mxu0 0.0
    %3890 = vmatmul.mubr.f32.gmra.mxu0 %v3823
    %v3891 = vpop.f32.mrf.mxu0
    %v3892 = vadd.f32 0.0, %v3891
    %v3893 = vpop.f32.mrf.mxu0
    %v3894 = vadd.f32 0.0, %v3893
    %3895 = vdwg.mxu0
    %3896 = vmatprep.subr.mxu0 0.0
    %3897 = vmatpush1.msra.mxu0 0.0
    %3898 = vmatprep.subr.mxu0 0.0
    %3899 = vmatpush1.msra.mxu0 0.0
    %3900 = vmatprep.subr.mxu0 0.0
    %3901 = vmatpush1.msra.mxu0 0.0
    %3902 = vmatprep.subr.mxu0 0.0
    %3903 = vmatpush1.msra.mxu0 0.0
    %3904 = vmatprep.subr.mxu0 0.0
    %3905 = vmatpush1.msra.mxu0 0.0
    %3906 = vmatprep.subr.mxu0 0.0
    %3907 = vmatpush1.msra.mxu0 0.0
    %3908 = vmatprep.subr.mxu0 0.0
    %3909 = vmatpush1.msra.mxu0 0.0
    %3910 = vmatprep.subr.mxu0 0.0
    %3911 = vmatpush1.msra.mxu0 0.0
    %3912 = vmatprep.subr.mxu0 0.0
    %3913 = vmatpush1.msra.mxu0 0.0
    %3914 = vmatprep.subr.mxu0 0.0
    %3915 = vmatpush1.msra.mxu0 0.0
    %3916 = vmatprep.subr.mxu0 0.0
    %3917 = vmatpush1.msra.mxu0 0.0
    %3918 = vmatprep.subr.mxu0 0.0
    %3919 = vmatpush1.msra.mxu0 0.0
    %3920 = vmatprep.subr.mxu0 0.0
    %3921 = vmatpush1.msra.mxu0 0.0
    %3922 = vmatprep.subr.mxu0 0.0
    %3923 = vmatpush1.msra.mxu0 0.0
    %3924 = vmatprep.subr.mxu0 0.0
    %3925 = vmatpush1.msra.mxu0 0.0
    %3926 = vmatprep.subr.mxu0 %v3815
    %3927 = vmatpush1.msra.mxu0 %v3814
    %3928 = vmatprep.subr.mxu0 0.0
    %3929 = vmatpush2.msra.mxu0 0.0
    %3930 = vmatprep.subr.mxu0 0.0
    %3931 = vmatpush2.msra.mxu0 0.0
    %3932 = vmatprep.subr.mxu0 0.0
    %3933 = vmatpush2.msra.mxu0 0.0
    %3934 = vmatprep.subr.mxu0 0.0
    %3935 = vmatpush2.msra.mxu0 0.0
    %3936 = vmatprep.subr.mxu0 0.0
    %3937 = vmatpush2.msra.mxu0 0.0
    %3938 = vmatprep.subr.mxu0 0.0
    %3939 = vmatpush2.msra.mxu0 0.0
    %3940 = vmatprep.subr.mxu0 0.0
    %3941 = vmatpush2.msra.mxu0 0.0
    %3942 = vmatprep.subr.mxu0 0.0
    %3943 = vmatpush2.msra.mxu0 0.0
    %3944 = vmatprep.subr.mxu0 0.0
    %3945 = vmatpush2.msra.mxu0 0.0
    %3946 = vmatprep.subr.mxu0 0.0
    %3947 = vmatpush2.msra.mxu0 0.0
    %3948 = vmatprep.subr.mxu0 0.0
    %3949 = vmatpush2.msra.mxu0 0.0
    %3950 = vmatprep.subr.mxu0 0.0
    %3951 = vmatpush2.msra.mxu0 0.0
    %3952 = vmatprep.subr.mxu0 0.0
    %3953 = vmatpush2.msra.mxu0 0.0
    %3954 = vmatprep.subr.mxu0 0.0
    %3955 = vmatpush2.msra.mxu0 0.0
    %3956 = vmatprep.subr.mxu0 0.0
    %3957 = vmatpush2.msra.mxu0 0.0
    %3958 = vmatprep.subr.mxu0 0.0
    %3959 = vmatpush2.msra.mxu0 0.0
    %3960 = vmatprep.mubr.f32.mxu0 0.0
    %3961 = vmatmul.mubr.f32.gmra.mxu0 %v3823
    %v3962 = vpop.f32.mrf.mxu0
    %v3963 = vadd.f32 0.0, %v3962
    %v3964 = vpop.f32.mrf.mxu0
    %v3965 = vadd.f32 0.0, %v3964
    %3966 = vdwg.mxu0
    %3967 = vmatprep.subr.mxu0 0.0
    %3968 = vmatpush1.msra.mxu0 0.0
    %3969 = vmatprep.subr.mxu0 0.0
    %3970 = vmatpush1.msra.mxu0 0.0
    %3971 = vmatprep.subr.mxu0 0.0
    %3972 = vmatpush1.msra.mxu0 0.0
    %3973 = vmatprep.subr.mxu0 0.0
    %3974 = vmatpush1.msra.mxu0 0.0
    %3975 = vmatprep.subr.mxu0 0.0
    %3976 = vmatpush1.msra.mxu0 0.0
    %3977 = vmatprep.subr.mxu0 0.0
    %3978 = vmatpush1.msra.mxu0 0.0
    %3979 = vmatprep.subr.mxu0 0.0
    %3980 = vmatpush1.msra.mxu0 0.0
    %3981 = vmatprep.subr.mxu0 0.0
    %3982 = vmatpush1.msra.mxu0 0.0
    %3983 = vmatprep.subr.mxu0 0.0
    %3984 = vmatpush1.msra.mxu0 0.0
    %3985 = vmatprep.subr.mxu0 0.0
    %3986 = vmatpush1.msra.mxu0 0.0
    %3987 = vmatprep.subr.mxu0 0.0
    %3988 = vmatpush1.msra.mxu0 0.0
    %3989 = vmatprep.subr.mxu0 0.0
    %3990 = vmatpush1.msra.mxu0 0.0
    %3991 = vmatprep.subr.mxu0 0.0
    %3992 = vmatpush1.msra.mxu0 0.0
    %3993 = vmatprep.subr.mxu0 0.0
    %3994 = vmatpush1.msra.mxu0 0.0
    %3995 = vmatprep.subr.mxu0 0.0
    %3996 = vmatpush1.msra.mxu0 0.0
    %3997 = vmatprep.subr.mxu0 0.0
    %3998 = vmatpush1.msra.mxu0 %v3816
    %3999 = vmatprep.subr.mxu0 0.0
    %4000 = vmatpush2.msra.mxu0 0.0
    %4001 = vmatprep.subr.mxu0 0.0
    %4002 = vmatpush2.msra.mxu0 0.0
    %4003 = vmatprep.subr.mxu0 0.0
    %4004 = vmatpush2.msra.mxu0 0.0
    %4005 = vmatprep.subr.mxu0 0.0
    %4006 = vmatpush2.msra.mxu0 0.0
    %4007 = vmatprep.subr.mxu0 0.0
    %4008 = vmatpush2.msra.mxu0 0.0
    %4009 = vmatprep.subr.mxu0 0.0
    %4010 = vmatpush2.msra.mxu0 0.0
    %4011 = vmatprep.subr.mxu0 0.0
    %4012 = vmatpush2.msra.mxu0 0.0
    %4013 = vmatprep.subr.mxu0 0.0
    %4014 = vmatpush2.msra.mxu0 0.0
    %4015 = vmatprep.subr.mxu0 0.0
    %4016 = vmatpush2.msra.mxu0 0.0
    %4017 = vmatprep.subr.mxu0 0.0
    %4018 = vmatpush2.msra.mxu0 0.0
    %4019 = vmatprep.subr.mxu0 0.0
    %4020 = vmatpush2.msra.mxu0 0.0
    %4021 = vmatprep.subr.mxu0 0.0
    %4022 = vmatpush2.msra.mxu0 0.0
    %4023 = vmatprep.subr.mxu0 0.0
    %4024 = vmatpush2.msra.mxu0 0.0
    %4025 = vmatprep.subr.mxu0 0.0
    %4026 = vmatpush2.msra.mxu0 0.0
    %4027 = vmatprep.subr.mxu0 0.0
    %4028 = vmatpush2.msra.mxu0 0.0
    %4029 = vmatprep.subr.mxu0 0.0
    %4030 = vmatpush2.msra.mxu0 0.0
    %4031 = vmatprep.mubr.f32.mxu0 0.0
    %4032 = vmatmul.mubr.f32.gmra.mxu0 %v3823
    %v4033 = vpop.f32.mrf.mxu0
    %v4034 = vadd.f32 0.0, %v4033
    %v4035 = vpop.f32.mrf.mxu0
    %4036 = vdwg.mxu0
    %v4037 = vadd.f32 %v3793, %v3892
    %v4038 = vadd.f32 %v3794, %v3894
    %v4039 = vadd.f32 %v3795, %v3963
    %v4040 = vadd.f32 %v3796, %v3965
    %v4041 = vadd.f32 %v3797, %v4034
    %s4042 = scalar_lea.vmem %s1, 120
    %v4043 = vld [vmem:[%s4042] sm:$0xff]
    %4044 = vrot.lane.b32.xlu0 %v2602, 92
    %v4045 = vpop.permute.xlu0 %4044
    %4046 = vrot.lane.b32.xlu0 %v2603, 92
    %v4047 = vpop.permute.xlu0 %4046
    %4048 = vrot.lane.b32.xlu0 %v2604, 92
    %v4049 = vpop.permute.xlu0 %4048
    %4050 = vrot.lane.b32.xlu0 %v2605, 92
    %v4051 = vpop.permute.xlu0 %4050
    %4052 = vrot.lane.b32.xlu0 %v2606, 92
    %v4053 = vpop.permute.xlu0 %4052
    %4054 = vrot.lane.b32.xlu0 %v2607, 92
    %v4055 = vpop.permute.xlu0 %4054
    %v4056 = vsel %vm1771, %v4045, %v4047
    %v4057 = vsel %vm1771, %v4047, %v4049
    %v4058 = vsel %vm1771, %v4049, %v4051
    %v4059 = vsel %vm1771, %v4051, %v4053
    %v4060 = vsel %vm1771, %v4053, %v4055
    %v4067 = vsel %vm318, %v4043, 0
    %4069 = vmatprep.subr.mxu0 0.0
    %4070 = vmatpush1.msra.mxu0 0.0
    %4071 = vmatprep.subr.mxu0 0.0
    %4072 = vmatpush1.msra.mxu0 0.0
    %4073 = vmatprep.subr.mxu0 0.0
    %4074 = vmatpush1.msra.mxu0 0.0
    %4075 = vmatprep.subr.mxu0 0.0
    %4076 = vmatpush1.msra.mxu0 0.0
    %4077 = vmatprep.subr.mxu0 0.0
    %4078 = vmatpush1.msra.mxu0 0.0
    %4079 = vmatprep.subr.mxu0 0.0
    %4080 = vmatpush1.msra.mxu0 0.0
    %4081 = vmatprep.subr.mxu0 0.0
    %4082 = vmatpush1.msra.mxu0 0.0
    %4083 = vmatprep.subr.mxu0 0.0
    %4084 = vmatpush1.msra.mxu0 0.0
    %4085 = vmatprep.subr.mxu0 0.0
    %4086 = vmatpush1.msra.mxu0 0.0
    %4087 = vmatprep.subr.mxu0 0.0
    %4088 = vmatpush1.msra.mxu0 0.0
    %4089 = vmatprep.subr.mxu0 0.0
    %4090 = vmatpush1.msra.mxu0 0.0
    %4091 = vmatprep.subr.mxu0 0.0
    %4092 = vmatpush1.msra.mxu0 0.0
    %4093 = vmatprep.subr.mxu0 0.0
    %4094 = vmatpush1.msra.mxu0 0.0
    %4095 = vmatprep.subr.mxu0 0.0
    %4096 = vmatpush1.msra.mxu0 0.0
    %4097 = vmatprep.subr.mxu0 0.0
    %4098 = vmatpush1.msra.mxu0 0.0
    %4099 = vmatprep.subr.mxu0 %v4057
    %4100 = vmatpush1.msra.mxu0 %v4056
    %4101 = vmatprep.subr.mxu0 0.0
    %4102 = vmatpush2.msra.mxu0 0.0
    %4103 = vmatprep.subr.mxu0 0.0
    %4104 = vmatpush2.msra.mxu0 0.0
    %4105 = vmatprep.subr.mxu0 0.0
    %4106 = vmatpush2.msra.mxu0 0.0
    %4107 = vmatprep.subr.mxu0 0.0
    %4108 = vmatpush2.msra.mxu0 0.0
    %4109 = vmatprep.subr.mxu0 0.0
    %4110 = vmatpush2.msra.mxu0 0.0
    %4111 = vmatprep.subr.mxu0 0.0
    %4112 = vmatpush2.msra.mxu0 0.0
    %4113 = vmatprep.subr.mxu0 0.0
    %4114 = vmatpush2.msra.mxu0 0.0
    %4115 = vmatprep.subr.mxu0 0.0
    %4116 = vmatpush2.msra.mxu0 0.0
    %4117 = vmatprep.subr.mxu0 0.0
    %4118 = vmatpush2.msra.mxu0 0.0
    %4119 = vmatprep.subr.mxu0 0.0
    %4120 = vmatpush2.msra.mxu0 0.0
    %4121 = vmatprep.subr.mxu0 0.0
    %4122 = vmatpush2.msra.mxu0 0.0
    %4123 = vmatprep.subr.mxu0 0.0
    %4124 = vmatpush2.msra.mxu0 0.0
    %4125 = vmatprep.subr.mxu0 0.0
    %4126 = vmatpush2.msra.mxu0 0.0
    %4127 = vmatprep.subr.mxu0 0.0
    %4128 = vmatpush2.msra.mxu0 0.0
    %4129 = vmatprep.subr.mxu0 0.0
    %4130 = vmatpush2.msra.mxu0 0.0
    %4131 = vmatprep.subr.mxu0 0.0
    %4132 = vmatpush2.msra.mxu0 0.0
    %4133 = vmatprep.mubr.f32.mxu0 0.0
    %4134 = vmatmul.mubr.f32.gmra.mxu0 %v4067
    %v4135 = vpop.f32.mrf.mxu0
    %v4136 = vadd.f32 0.0, %v4135
    %v4137 = vpop.f32.mrf.mxu0
    %v4138 = vadd.f32 0.0, %v4137
    %4139 = vdwg.mxu0
    %4140 = vmatprep.subr.mxu0 0.0
    %4141 = vmatpush1.msra.mxu0 0.0
    %4142 = vmatprep.subr.mxu0 0.0
    %4143 = vmatpush1.msra.mxu0 0.0
    %4144 = vmatprep.subr.mxu0 0.0
    %4145 = vmatpush1.msra.mxu0 0.0
    %4146 = vmatprep.subr.mxu0 0.0
    %4147 = vmatpush1.msra.mxu0 0.0
    %4148 = vmatprep.subr.mxu0 0.0
    %4149 = vmatpush1.msra.mxu0 0.0
    %4150 = vmatprep.subr.mxu0 0.0
    %4151 = vmatpush1.msra.mxu0 0.0
    %4152 = vmatprep.subr.mxu0 0.0
    %4153 = vmatpush1.msra.mxu0 0.0
    %4154 = vmatprep.subr.mxu0 0.0
    %4155 = vmatpush1.msra.mxu0 0.0
    %4156 = vmatprep.subr.mxu0 0.0
    %4157 = vmatpush1.msra.mxu0 0.0
    %4158 = vmatprep.subr.mxu0 0.0
    %4159 = vmatpush1.msra.mxu0 0.0
    %4160 = vmatprep.subr.mxu0 0.0
    %4161 = vmatpush1.msra.mxu0 0.0
    %4162 = vmatprep.subr.mxu0 0.0
    %4163 = vmatpush1.msra.mxu0 0.0
    %4164 = vmatprep.subr.mxu0 0.0
    %4165 = vmatpush1.msra.mxu0 0.0
    %4166 = vmatprep.subr.mxu0 0.0
    %4167 = vmatpush1.msra.mxu0 0.0
    %4168 = vmatprep.subr.mxu0 0.0
    %4169 = vmatpush1.msra.mxu0 0.0
    %4170 = vmatprep.subr.mxu0 %v4059
    %4171 = vmatpush1.msra.mxu0 %v4058
    %4172 = vmatprep.subr.mxu0 0.0
    %4173 = vmatpush2.msra.mxu0 0.0
    %4174 = vmatprep.subr.mxu0 0.0
    %4175 = vmatpush2.msra.mxu0 0.0
    %4176 = vmatprep.subr.mxu0 0.0
    %4177 = vmatpush2.msra.mxu0 0.0
    %4178 = vmatprep.subr.mxu0 0.0
    %4179 = vmatpush2.msra.mxu0 0.0
    %4180 = vmatprep.subr.mxu0 0.0
    %4181 = vmatpush2.msra.mxu0 0.0
    %4182 = vmatprep.subr.mxu0 0.0
    %4183 = vmatpush2.msra.mxu0 0.0
    %4184 = vmatprep.subr.mxu0 0.0
    %4185 = vmatpush2.msra.mxu0 0.0
    %4186 = vmatprep.subr.mxu0 0.0
    %4187 = vmatpush2.msra.mxu0 0.0
    %4188 = vmatprep.subr.mxu0 0.0
    %4189 = vmatpush2.msra.mxu0 0.0
    %4190 = vmatprep.subr.mxu0 0.0
    %4191 = vmatpush2.msra.mxu0 0.0
    %4192 = vmatprep.subr.mxu0 0.0
    %4193 = vmatpush2.msra.mxu0 0.0
    %4194 = vmatprep.subr.mxu0 0.0
    %4195 = vmatpush2.msra.mxu0 0.0
    %4196 = vmatprep.subr.mxu0 0.0
    %4197 = vmatpush2.msra.mxu0 0.0
    %4198 = vmatprep.subr.mxu0 0.0
    %4199 = vmatpush2.msra.mxu0 0.0
    %4200 = vmatprep.subr.mxu0 0.0
    %4201 = vmatpush2.msra.mxu0 0.0
    %4202 = vmatprep.subr.mxu0 0.0
    %4203 = vmatpush2.msra.mxu0 0.0
    %4204 = vmatprep.mubr.f32.mxu0 0.0
    %4205 = vmatmul.mubr.f32.gmra.mxu0 %v4067
    %v4206 = vpop.f32.mrf.mxu0
    %v4207 = vadd.f32 0.0, %v4206
    %v4208 = vpop.f32.mrf.mxu0
    %v4209 = vadd.f32 0.0, %v4208
    %4210 = vdwg.mxu0
    %4211 = vmatprep.subr.mxu0 0.0
    %4212 = vmatpush1.msra.mxu0 0.0
    %4213 = vmatprep.subr.mxu0 0.0
    %4214 = vmatpush1.msra.mxu0 0.0
    %4215 = vmatprep.subr.mxu0 0.0
    %4216 = vmatpush1.msra.mxu0 0.0
    %4217 = vmatprep.subr.mxu0 0.0
    %4218 = vmatpush1.msra.mxu0 0.0
    %4219 = vmatprep.subr.mxu0 0.0
    %4220 = vmatpush1.msra.mxu0 0.0
    %4221 = vmatprep.subr.mxu0 0.0
    %4222 = vmatpush1.msra.mxu0 0.0
    %4223 = vmatprep.subr.mxu0 0.0
    %4224 = vmatpush1.msra.mxu0 0.0
    %4225 = vmatprep.subr.mxu0 0.0
    %4226 = vmatpush1.msra.mxu0 0.0
    %4227 = vmatprep.subr.mxu0 0.0
    %4228 = vmatpush1.msra.mxu0 0.0
    %4229 = vmatprep.subr.mxu0 0.0
    %4230 = vmatpush1.msra.mxu0 0.0
    %4231 = vmatprep.subr.mxu0 0.0
    %4232 = vmatpush1.msra.mxu0 0.0
    %4233 = vmatprep.subr.mxu0 0.0
    %4234 = vmatpush1.msra.mxu0 0.0
    %4235 = vmatprep.subr.mxu0 0.0
    %4236 = vmatpush1.msra.mxu0 0.0
    %4237 = vmatprep.subr.mxu0 0.0
    %4238 = vmatpush1.msra.mxu0 0.0
    %4239 = vmatprep.subr.mxu0 0.0
    %4240 = vmatpush1.msra.mxu0 0.0
    %4241 = vmatprep.subr.mxu0 0.0
    %4242 = vmatpush1.msra.mxu0 %v4060
    %4243 = vmatprep.subr.mxu0 0.0
    %4244 = vmatpush2.msra.mxu0 0.0
    %4245 = vmatprep.subr.mxu0 0.0
    %4246 = vmatpush2.msra.mxu0 0.0
    %4247 = vmatprep.subr.mxu0 0.0
    %4248 = vmatpush2.msra.mxu0 0.0
    %4249 = vmatprep.subr.mxu0 0.0
    %4250 = vmatpush2.msra.mxu0 0.0
    %4251 = vmatprep.subr.mxu0 0.0
    %4252 = vmatpush2.msra.mxu0 0.0
    %4253 = vmatprep.subr.mxu0 0.0
    %4254 = vmatpush2.msra.mxu0 0.0
    %4255 = vmatprep.subr.mxu0 0.0
    %4256 = vmatpush2.msra.mxu0 0.0
    %4257 = vmatprep.subr.mxu0 0.0
    %4258 = vmatpush2.msra.mxu0 0.0
    %4259 = vmatprep.subr.mxu0 0.0
    %4260 = vmatpush2.msra.mxu0 0.0
    %4261 = vmatprep.subr.mxu0 0.0
    %4262 = vmatpush2.msra.mxu0 0.0
    %4263 = vmatprep.subr.mxu0 0.0
    %4264 = vmatpush2.msra.mxu0 0.0
    %4265 = vmatprep.subr.mxu0 0.0
    %4266 = vmatpush2.msra.mxu0 0.0
    %4267 = vmatprep.subr.mxu0 0.0
    %4268 = vmatpush2.msra.mxu0 0.0
    %4269 = vmatprep.subr.mxu0 0.0
    %4270 = vmatpush2.msra.mxu0 0.0
    %4271 = vmatprep.subr.mxu0 0.0
    %4272 = vmatpush2.msra.mxu0 0.0
    %4273 = vmatprep.subr.mxu0 0.0
    %4274 = vmatpush2.msra.mxu0 0.0
    %4275 = vmatprep.mubr.f32.mxu0 0.0
    %4276 = vmatmul.mubr.f32.gmra.mxu0 %v4067
    %v4277 = vpop.f32.mrf.mxu0
    %v4278 = vadd.f32 0.0, %v4277
    %v4279 = vpop.f32.mrf.mxu0
    %4280 = vdwg.mxu0
    %v4281 = vadd.f32 %v4037, %v4136
    %v4282 = vadd.f32 %v4038, %v4138
    %v4283 = vadd.f32 %v4039, %v4207
    %v4284 = vadd.f32 %v4040, %v4209
    %v4285 = vadd.f32 %v4041, %v4278
    %s4286 = scalar_lea.vmem %s1, 128
    %v4287 = vld [vmem:[%s4286] sm:$0xff]
    %4288 = vrot.lane.b32.xlu0 %v2602, 91
    %v4289 = vpop.permute.xlu0 %4288
    %4290 = vrot.lane.b32.xlu0 %v2603, 91
    %v4291 = vpop.permute.xlu0 %4290
    %4292 = vrot.lane.b32.xlu0 %v2604, 91
    %v4293 = vpop.permute.xlu0 %4292
    %4294 = vrot.lane.b32.xlu0 %v2605, 91
    %v4295 = vpop.permute.xlu0 %4294
    %4296 = vrot.lane.b32.xlu0 %v2606, 91
    %v4297 = vpop.permute.xlu0 %4296
    %4298 = vrot.lane.b32.xlu0 %v2607, 91
    %v4299 = vpop.permute.xlu0 %4298
    %v4300 = vsel %vm2022, %v4289, %v4291
    %v4301 = vsel %vm2022, %v4291, %v4293
    %v4302 = vsel %vm2022, %v4293, %v4295
    %v4303 = vsel %vm2022, %v4295, %v4297
    %v4304 = vsel %vm2022, %v4297, %v4299
    %v4311 = vsel %vm318, %v4287, 0
    %4313 = vmatprep.subr.mxu0 0.0
    %4314 = vmatpush1.msra.mxu0 0.0
    %4315 = vmatprep.subr.mxu0 0.0
    %4316 = vmatpush1.msra.mxu0 0.0
    %4317 = vmatprep.subr.mxu0 0.0
    %4318 = vmatpush1.msra.mxu0 0.0
    %4319 = vmatprep.subr.mxu0 0.0
    %4320 = vmatpush1.msra.mxu0 0.0
    %4321 = vmatprep.subr.mxu0 0.0
    %4322 = vmatpush1.msra.mxu0 0.0
    %4323 = vmatprep.subr.mxu0 0.0
    %4324 = vmatpush1.msra.mxu0 0.0
    %4325 = vmatprep.subr.mxu0 0.0
    %4326 = vmatpush1.msra.mxu0 0.0
    %4327 = vmatprep.subr.mxu0 0.0
    %4328 = vmatpush1.msra.mxu0 0.0
    %4329 = vmatprep.subr.mxu0 0.0
    %4330 = vmatpush1.msra.mxu0 0.0
    %4331 = vmatprep.subr.mxu0 0.0
    %4332 = vmatpush1.msra.mxu0 0.0
    %4333 = vmatprep.subr.mxu0 0.0
    %4334 = vmatpush1.msra.mxu0 0.0
    %4335 = vmatprep.subr.mxu0 0.0
    %4336 = vmatpush1.msra.mxu0 0.0
    %4337 = vmatprep.subr.mxu0 0.0
    %4338 = vmatpush1.msra.mxu0 0.0
    %4339 = vmatprep.subr.mxu0 0.0
    %4340 = vmatpush1.msra.mxu0 0.0
    %4341 = vmatprep.subr.mxu0 0.0
    %4342 = vmatpush1.msra.mxu0 0.0
    %4343 = vmatprep.subr.mxu0 %v4301
    %4344 = vmatpush1.msra.mxu0 %v4300
    %4345 = vmatprep.subr.mxu0 0.0
    %4346 = vmatpush2.msra.mxu0 0.0
    %4347 = vmatprep.subr.mxu0 0.0
    %4348 = vmatpush2.msra.mxu0 0.0
    %4349 = vmatprep.subr.mxu0 0.0
    %4350 = vmatpush2.msra.mxu0 0.0
    %4351 = vmatprep.subr.mxu0 0.0
    %4352 = vmatpush2.msra.mxu0 0.0
    %4353 = vmatprep.subr.mxu0 0.0
    %4354 = vmatpush2.msra.mxu0 0.0
    %4355 = vmatprep.subr.mxu0 0.0
    %4356 = vmatpush2.msra.mxu0 0.0
    %4357 = vmatprep.subr.mxu0 0.0
    %4358 = vmatpush2.msra.mxu0 0.0
    %4359 = vmatprep.subr.mxu0 0.0
    %4360 = vmatpush2.msra.mxu0 0.0
    %4361 = vmatprep.subr.mxu0 0.0
    %4362 = vmatpush2.msra.mxu0 0.0
    %4363 = vmatprep.subr.mxu0 0.0
    %4364 = vmatpush2.msra.mxu0 0.0
    %4365 = vmatprep.subr.mxu0 0.0
    %4366 = vmatpush2.msra.mxu0 0.0
    %4367 = vmatprep.subr.mxu0 0.0
    %4368 = vmatpush2.msra.mxu0 0.0
    %4369 = vmatprep.subr.mxu0 0.0
    %4370 = vmatpush2.msra.mxu0 0.0
    %4371 = vmatprep.subr.mxu0 0.0
    %4372 = vmatpush2.msra.mxu0 0.0
    %4373 = vmatprep.subr.mxu0 0.0
    %4374 = vmatpush2.msra.mxu0 0.0
    %4375 = vmatprep.subr.mxu0 0.0
    %4376 = vmatpush2.msra.mxu0 0.0
    %4377 = vmatprep.mubr.f32.mxu0 0.0
    %4378 = vmatmul.mubr.f32.gmra.mxu0 %v4311
    %v4379 = vpop.f32.mrf.mxu0
    %v4380 = vadd.f32 0.0, %v4379
    %v4381 = vpop.f32.mrf.mxu0
    %v4382 = vadd.f32 0.0, %v4381
    %4383 = vdwg.mxu0
    %4384 = vmatprep.subr.mxu0 0.0
    %4385 = vmatpush1.msra.mxu0 0.0
    %4386 = vmatprep.subr.mxu0 0.0
    %4387 = vmatpush1.msra.mxu0 0.0
    %4388 = vmatprep.subr.mxu0 0.0
    %4389 = vmatpush1.msra.mxu0 0.0
    %4390 = vmatprep.subr.mxu0 0.0
    %4391 = vmatpush1.msra.mxu0 0.0
    %4392 = vmatprep.subr.mxu0 0.0
    %4393 = vmatpush1.msra.mxu0 0.0
    %4394 = vmatprep.subr.mxu0 0.0
    %4395 = vmatpush1.msra.mxu0 0.0
    %4396 = vmatprep.subr.mxu0 0.0
    %4397 = vmatpush1.msra.mxu0 0.0
    %4398 = vmatprep.subr.mxu0 0.0
    %4399 = vmatpush1.msra.mxu0 0.0
    %4400 = vmatprep.subr.mxu0 0.0
    %4401 = vmatpush1.msra.mxu0 0.0
    %4402 = vmatprep.subr.mxu0 0.0
    %4403 = vmatpush1.msra.mxu0 0.0
    %4404 = vmatprep.subr.mxu0 0.0
    %4405 = vmatpush1.msra.mxu0 0.0
    %4406 = vmatprep.subr.mxu0 0.0
    %4407 = vmatpush1.msra.mxu0 0.0
    %4408 = vmatprep.subr.mxu0 0.0
    %4409 = vmatpush1.msra.mxu0 0.0
    %4410 = vmatprep.subr.mxu0 0.0
    %4411 = vmatpush1.msra.mxu0 0.0
    %4412 = vmatprep.subr.mxu0 0.0
    %4413 = vmatpush1.msra.mxu0 0.0
    %4414 = vmatprep.subr.mxu0 %v4303
    %4415 = vmatpush1.msra.mxu0 %v4302
    %4416 = vmatprep.subr.mxu0 0.0
    %4417 = vmatpush2.msra.mxu0 0.0
    %4418 = vmatprep.subr.mxu0 0.0
    %4419 = vmatpush2.msra.mxu0 0.0
    %4420 = vmatprep.subr.mxu0 0.0
    %4421 = vmatpush2.msra.mxu0 0.0
    %4422 = vmatprep.subr.mxu0 0.0
    %4423 = vmatpush2.msra.mxu0 0.0
    %4424 = vmatprep.subr.mxu0 0.0
    %4425 = vmatpush2.msra.mxu0 0.0
    %4426 = vmatprep.subr.mxu0 0.0
    %4427 = vmatpush2.msra.mxu0 0.0
    %4428 = vmatprep.subr.mxu0 0.0
    %4429 = vmatpush2.msra.mxu0 0.0
    %4430 = vmatprep.subr.mxu0 0.0
    %4431 = vmatpush2.msra.mxu0 0.0
    %4432 = vmatprep.subr.mxu0 0.0
    %4433 = vmatpush2.msra.mxu0 0.0
    %4434 = vmatprep.subr.mxu0 0.0
    %4435 = vmatpush2.msra.mxu0 0.0
    %4436 = vmatprep.subr.mxu0 0.0
    %4437 = vmatpush2.msra.mxu0 0.0
    %4438 = vmatprep.subr.mxu0 0.0
    %4439 = vmatpush2.msra.mxu0 0.0
    %4440 = vmatprep.subr.mxu0 0.0
    %4441 = vmatpush2.msra.mxu0 0.0
    %4442 = vmatprep.subr.mxu0 0.0
    %4443 = vmatpush2.msra.mxu0 0.0
    %4444 = vmatprep.subr.mxu0 0.0
    %4445 = vmatpush2.msra.mxu0 0.0
    %4446 = vmatprep.subr.mxu0 0.0
    %4447 = vmatpush2.msra.mxu0 0.0
    %4448 = vmatprep.mubr.f32.mxu0 0.0
    %4449 = vmatmul.mubr.f32.gmra.mxu0 %v4311
    %v4450 = vpop.f32.mrf.mxu0
    %v4451 = vadd.f32 0.0, %v4450
    %v4452 = vpop.f32.mrf.mxu0
    %v4453 = vadd.f32 0.0, %v4452
    %4454 = vdwg.mxu0
    %4455 = vmatprep.subr.mxu0 0.0
    %4456 = vmatpush1.msra.mxu0 0.0
    %4457 = vmatprep.subr.mxu0 0.0
    %4458 = vmatpush1.msra.mxu0 0.0
    %4459 = vmatprep.subr.mxu0 0.0
    %4460 = vmatpush1.msra.mxu0 0.0
    %4461 = vmatprep.subr.mxu0 0.0
    %4462 = vmatpush1.msra.mxu0 0.0
    %4463 = vmatprep.subr.mxu0 0.0
    %4464 = vmatpush1.msra.mxu0 0.0
    %4465 = vmatprep.subr.mxu0 0.0
    %4466 = vmatpush1.msra.mxu0 0.0
    %4467 = vmatprep.subr.mxu0 0.0
    %4468 = vmatpush1.msra.mxu0 0.0
    %4469 = vmatprep.subr.mxu0 0.0
    %4470 = vmatpush1.msra.mxu0 0.0
    %4471 = vmatprep.subr.mxu0 0.0
    %4472 = vmatpush1.msra.mxu0 0.0
    %4473 = vmatprep.subr.mxu0 0.0
    %4474 = vmatpush1.msra.mxu0 0.0
    %4475 = vmatprep.subr.mxu0 0.0
    %4476 = vmatpush1.msra.mxu0 0.0
    %4477 = vmatprep.subr.mxu0 0.0
    %4478 = vmatpush1.msra.mxu0 0.0
    %4479 = vmatprep.subr.mxu0 0.0
    %4480 = vmatpush1.msra.mxu0 0.0
    %4481 = vmatprep.subr.mxu0 0.0
    %4482 = vmatpush1.msra.mxu0 0.0
    %4483 = vmatprep.subr.mxu0 0.0
    %4484 = vmatpush1.msra.mxu0 0.0
    %4485 = vmatprep.subr.mxu0 0.0
    %4486 = vmatpush1.msra.mxu0 %v4304
    %4487 = vmatprep.subr.mxu0 0.0
    %4488 = vmatpush2.msra.mxu0 0.0
    %4489 = vmatprep.subr.mxu0 0.0
    %4490 = vmatpush2.msra.mxu0 0.0
    %4491 = vmatprep.subr.mxu0 0.0
    %4492 = vmatpush2.msra.mxu0 0.0
    %4493 = vmatprep.subr.mxu0 0.0
    %4494 = vmatpush2.msra.mxu0 0.0
    %4495 = vmatprep.subr.mxu0 0.0
    %4496 = vmatpush2.msra.mxu0 0.0
    %4497 = vmatprep.subr.mxu0 0.0
    %4498 = vmatpush2.msra.mxu0 0.0
    %4499 = vmatprep.subr.mxu0 0.0
    %4500 = vmatpush2.msra.mxu0 0.0
    %4501 = vmatprep.subr.mxu0 0.0
    %4502 = vmatpush2.msra.mxu0 0.0
    %4503 = vmatprep.subr.mxu0 0.0
    %4504 = vmatpush2.msra.mxu0 0.0
    %4505 = vmatprep.subr.mxu0 0.0
    %4506 = vmatpush2.msra.mxu0 0.0
    %4507 = vmatprep.subr.mxu0 0.0
    %4508 = vmatpush2.msra.mxu0 0.0
    %4509 = vmatprep.subr.mxu0 0.0
    %4510 = vmatpush2.msra.mxu0 0.0
    %4511 = vmatprep.subr.mxu0 0.0
    %4512 = vmatpush2.msra.mxu0 0.0
    %4513 = vmatprep.subr.mxu0 0.0
    %4514 = vmatpush2.msra.mxu0 0.0
    %4515 = vmatprep.subr.mxu0 0.0
    %4516 = vmatpush2.msra.mxu0 0.0
    %4517 = vmatprep.subr.mxu0 0.0
    %4518 = vmatpush2.msra.mxu0 0.0
    %4519 = vmatprep.mubr.f32.mxu0 0.0
    %4520 = vmatmul.mubr.f32.gmra.mxu0 %v4311
    %v4521 = vpop.f32.mrf.mxu0
    %v4522 = vadd.f32 0.0, %v4521
    %v4523 = vpop.f32.mrf.mxu0
    %4524 = vdwg.mxu0
    %v4525 = vadd.f32 %v4281, %v4380
    %v4526 = vadd.f32 %v4282, %v4382
    %v4527 = vadd.f32 %v4283, %v4451
    %v4528 = vadd.f32 %v4284, %v4453
    %v4529 = vadd.f32 %v4285, %v4522
    %s4530 = scalar_lea.vmem %s1, 136
    %v4531 = vld [vmem:[%s4530] sm:$0xff]
    %4532 = vrot.lane.b32.xlu0 %v2602, 90
    %v4533 = vpop.permute.xlu0 %4532
    %4534 = vrot.lane.b32.xlu0 %v2603, 90
    %v4535 = vpop.permute.xlu0 %4534
    %4536 = vrot.lane.b32.xlu0 %v2604, 90
    %v4537 = vpop.permute.xlu0 %4536
    %4538 = vrot.lane.b32.xlu0 %v2605, 90
    %v4539 = vpop.permute.xlu0 %4538
    %4540 = vrot.lane.b32.xlu0 %v2606, 90
    %v4541 = vpop.permute.xlu0 %4540
    %4542 = vrot.lane.b32.xlu0 %v2607, 90
    %v4543 = vpop.permute.xlu0 %4542
    %v4544 = vsel %vm2273, %v4533, %v4535
    %v4545 = vsel %vm2273, %v4535, %v4537
    %v4546 = vsel %vm2273, %v4537, %v4539
    %v4547 = vsel %vm2273, %v4539, %v4541
    %v4548 = vsel %vm2273, %v4541, %v4543
    %v4555 = vsel %vm318, %v4531, 0
    %4557 = vmatprep.subr.mxu0 0.0
    %4558 = vmatpush1.msra.mxu0 0.0
    %4559 = vmatprep.subr.mxu0 0.0
    %4560 = vmatpush1.msra.mxu0 0.0
    %4561 = vmatprep.subr.mxu0 0.0
    %4562 = vmatpush1.msra.mxu0 0.0
    %4563 = vmatprep.subr.mxu0 0.0
    %4564 = vmatpush1.msra.mxu0 0.0
    %4565 = vmatprep.subr.mxu0 0.0
    %4566 = vmatpush1.msra.mxu0 0.0
    %4567 = vmatprep.subr.mxu0 0.0
    %4568 = vmatpush1.msra.mxu0 0.0
    %4569 = vmatprep.subr.mxu0 0.0
    %4570 = vmatpush1.msra.mxu0 0.0
    %4571 = vmatprep.subr.mxu0 0.0
    %4572 = vmatpush1.msra.mxu0 0.0
    %4573 = vmatprep.subr.mxu0 0.0
    %4574 = vmatpush1.msra.mxu0 0.0
    %4575 = vmatprep.subr.mxu0 0.0
    %4576 = vmatpush1.msra.mxu0 0.0
    %4577 = vmatprep.subr.mxu0 0.0
    %4578 = vmatpush1.msra.mxu0 0.0
    %4579 = vmatprep.subr.mxu0 0.0
    %4580 = vmatpush1.msra.mxu0 0.0
    %4581 = vmatprep.subr.mxu0 0.0
    %4582 = vmatpush1.msra.mxu0 0.0
    %4583 = vmatprep.subr.mxu0 0.0
    %4584 = vmatpush1.msra.mxu0 0.0
    %4585 = vmatprep.subr.mxu0 0.0
    %4586 = vmatpush1.msra.mxu0 0.0
    %4587 = vmatprep.subr.mxu0 %v4545
    %4588 = vmatpush1.msra.mxu0 %v4544
    %4589 = vmatprep.subr.mxu0 0.0
    %4590 = vmatpush2.msra.mxu0 0.0
    %4591 = vmatprep.subr.mxu0 0.0
    %4592 = vmatpush2.msra.mxu0 0.0
    %4593 = vmatprep.subr.mxu0 0.0
    %4594 = vmatpush2.msra.mxu0 0.0
    %4595 = vmatprep.subr.mxu0 0.0
    %4596 = vmatpush2.msra.mxu0 0.0
    %4597 = vmatprep.subr.mxu0 0.0
    %4598 = vmatpush2.msra.mxu0 0.0
    %4599 = vmatprep.subr.mxu0 0.0
    %4600 = vmatpush2.msra.mxu0 0.0
    %4601 = vmatprep.subr.mxu0 0.0
    %4602 = vmatpush2.msra.mxu0 0.0
    %4603 = vmatprep.subr.mxu0 0.0
    %4604 = vmatpush2.msra.mxu0 0.0
    %4605 = vmatprep.subr.mxu0 0.0
    %4606 = vmatpush2.msra.mxu0 0.0
    %4607 = vmatprep.subr.mxu0 0.0
    %4608 = vmatpush2.msra.mxu0 0.0
    %4609 = vmatprep.subr.mxu0 0.0
    %4610 = vmatpush2.msra.mxu0 0.0
    %4611 = vmatprep.subr.mxu0 0.0
    %4612 = vmatpush2.msra.mxu0 0.0
    %4613 = vmatprep.subr.mxu0 0.0
    %4614 = vmatpush2.msra.mxu0 0.0
    %4615 = vmatprep.subr.mxu0 0.0
    %4616 = vmatpush2.msra.mxu0 0.0
    %4617 = vmatprep.subr.mxu0 0.0
    %4618 = vmatpush2.msra.mxu0 0.0
    %4619 = vmatprep.subr.mxu0 0.0
    %4620 = vmatpush2.msra.mxu0 0.0
    %4621 = vmatprep.mubr.f32.mxu0 0.0
    %4622 = vmatmul.mubr.f32.gmra.mxu0 %v4555
    %v4623 = vpop.f32.mrf.mxu0
    %v4624 = vadd.f32 0.0, %v4623
    %v4625 = vpop.f32.mrf.mxu0
    %v4626 = vadd.f32 0.0, %v4625
    %4627 = vdwg.mxu0
    %4628 = vmatprep.subr.mxu0 0.0
    %4629 = vmatpush1.msra.mxu0 0.0
    %4630 = vmatprep.subr.mxu0 0.0
    %4631 = vmatpush1.msra.mxu0 0.0
    %4632 = vmatprep.subr.mxu0 0.0
    %4633 = vmatpush1.msra.mxu0 0.0
    %4634 = vmatprep.subr.mxu0 0.0
    %4635 = vmatpush1.msra.mxu0 0.0
    %4636 = vmatprep.subr.mxu0 0.0
    %4637 = vmatpush1.msra.mxu0 0.0
    %4638 = vmatprep.subr.mxu0 0.0
    %4639 = vmatpush1.msra.mxu0 0.0
    %4640 = vmatprep.subr.mxu0 0.0
    %4641 = vmatpush1.msra.mxu0 0.0
    %4642 = vmatprep.subr.mxu0 0.0
    %4643 = vmatpush1.msra.mxu0 0.0
    %4644 = vmatprep.subr.mxu0 0.0
    %4645 = vmatpush1.msra.mxu0 0.0
    %4646 = vmatprep.subr.mxu0 0.0
    %4647 = vmatpush1.msra.mxu0 0.0
    %4648 = vmatprep.subr.mxu0 0.0
    %4649 = vmatpush1.msra.mxu0 0.0
    %4650 = vmatprep.subr.mxu0 0.0
    %4651 = vmatpush1.msra.mxu0 0.0
    %4652 = vmatprep.subr.mxu0 0.0
    %4653 = vmatpush1.msra.mxu0 0.0
    %4654 = vmatprep.subr.mxu0 0.0
    %4655 = vmatpush1.msra.mxu0 0.0
    %4656 = vmatprep.subr.mxu0 0.0
    %4657 = vmatpush1.msra.mxu0 0.0
    %4658 = vmatprep.subr.mxu0 %v4547
    %4659 = vmatpush1.msra.mxu0 %v4546
    %4660 = vmatprep.subr.mxu0 0.0
    %4661 = vmatpush2.msra.mxu0 0.0
    %4662 = vmatprep.subr.mxu0 0.0
    %4663 = vmatpush2.msra.mxu0 0.0
    %4664 = vmatprep.subr.mxu0 0.0
    %4665 = vmatpush2.msra.mxu0 0.0
    %4666 = vmatprep.subr.mxu0 0.0
    %4667 = vmatpush2.msra.mxu0 0.0
    %4668 = vmatprep.subr.mxu0 0.0
    %4669 = vmatpush2.msra.mxu0 0.0
    %4670 = vmatprep.subr.mxu0 0.0
    %4671 = vmatpush2.msra.mxu0 0.0
    %4672 = vmatprep.subr.mxu0 0.0
    %4673 = vmatpush2.msra.mxu0 0.0
    %4674 = vmatprep.subr.mxu0 0.0
    %4675 = vmatpush2.msra.mxu0 0.0
    %4676 = vmatprep.subr.mxu0 0.0
    %4677 = vmatpush2.msra.mxu0 0.0
    %4678 = vmatprep.subr.mxu0 0.0
    %4679 = vmatpush2.msra.mxu0 0.0
    %4680 = vmatprep.subr.mxu0 0.0
    %4681 = vmatpush2.msra.mxu0 0.0
    %4682 = vmatprep.subr.mxu0 0.0
    %4683 = vmatpush2.msra.mxu0 0.0
    %4684 = vmatprep.subr.mxu0 0.0
    %4685 = vmatpush2.msra.mxu0 0.0
    %4686 = vmatprep.subr.mxu0 0.0
    %4687 = vmatpush2.msra.mxu0 0.0
    %4688 = vmatprep.subr.mxu0 0.0
    %4689 = vmatpush2.msra.mxu0 0.0
    %4690 = vmatprep.subr.mxu0 0.0
    %4691 = vmatpush2.msra.mxu0 0.0
    %4692 = vmatprep.mubr.f32.mxu0 0.0
    %4693 = vmatmul.mubr.f32.gmra.mxu0 %v4555
    %v4694 = vpop.f32.mrf.mxu0
    %v4695 = vadd.f32 0.0, %v4694
    %v4696 = vpop.f32.mrf.mxu0
    %v4697 = vadd.f32 0.0, %v4696
    %4698 = vdwg.mxu0
    %4699 = vmatprep.subr.mxu0 0.0
    %4700 = vmatpush1.msra.mxu0 0.0
    %4701 = vmatprep.subr.mxu0 0.0
    %4702 = vmatpush1.msra.mxu0 0.0
    %4703 = vmatprep.subr.mxu0 0.0
    %4704 = vmatpush1.msra.mxu0 0.0
    %4705 = vmatprep.subr.mxu0 0.0
    %4706 = vmatpush1.msra.mxu0 0.0
    %4707 = vmatprep.subr.mxu0 0.0
    %4708 = vmatpush1.msra.mxu0 0.0
    %4709 = vmatprep.subr.mxu0 0.0
    %4710 = vmatpush1.msra.mxu0 0.0
    %4711 = vmatprep.subr.mxu0 0.0
    %4712 = vmatpush1.msra.mxu0 0.0
    %4713 = vmatprep.subr.mxu0 0.0
    %4714 = vmatpush1.msra.mxu0 0.0
    %4715 = vmatprep.subr.mxu0 0.0
    %4716 = vmatpush1.msra.mxu0 0.0
    %4717 = vmatprep.subr.mxu0 0.0
    %4718 = vmatpush1.msra.mxu0 0.0
    %4719 = vmatprep.subr.mxu0 0.0
    %4720 = vmatpush1.msra.mxu0 0.0
    %4721 = vmatprep.subr.mxu0 0.0
    %4722 = vmatpush1.msra.mxu0 0.0
    %4723 = vmatprep.subr.mxu0 0.0
    %4724 = vmatpush1.msra.mxu0 0.0
    %4725 = vmatprep.subr.mxu0 0.0
    %4726 = vmatpush1.msra.mxu0 0.0
    %4727 = vmatprep.subr.mxu0 0.0
    %4728 = vmatpush1.msra.mxu0 0.0
    %4729 = vmatprep.subr.mxu0 0.0
    %4730 = vmatpush1.msra.mxu0 %v4548
    %4731 = vmatprep.subr.mxu0 0.0
    %4732 = vmatpush2.msra.mxu0 0.0
    %4733 = vmatprep.subr.mxu0 0.0
    %4734 = vmatpush2.msra.mxu0 0.0
    %4735 = vmatprep.subr.mxu0 0.0
    %4736 = vmatpush2.msra.mxu0 0.0
    %4737 = vmatprep.subr.mxu0 0.0
    %4738 = vmatpush2.msra.mxu0 0.0
    %4739 = vmatprep.subr.mxu0 0.0
    %4740 = vmatpush2.msra.mxu0 0.0
    %4741 = vmatprep.subr.mxu0 0.0
    %4742 = vmatpush2.msra.mxu0 0.0
    %4743 = vmatprep.subr.mxu0 0.0
    %4744 = vmatpush2.msra.mxu0 0.0
    %4745 = vmatprep.subr.mxu0 0.0
    %4746 = vmatpush2.msra.mxu0 0.0
    %4747 = vmatprep.subr.mxu0 0.0
    %4748 = vmatpush2.msra.mxu0 0.0
    %4749 = vmatprep.subr.mxu0 0.0
    %4750 = vmatpush2.msra.mxu0 0.0
    %4751 = vmatprep.subr.mxu0 0.0
    %4752 = vmatpush2.msra.mxu0 0.0
    %4753 = vmatprep.subr.mxu0 0.0
    %4754 = vmatpush2.msra.mxu0 0.0
    %4755 = vmatprep.subr.mxu0 0.0
    %4756 = vmatpush2.msra.mxu0 0.0
    %4757 = vmatprep.subr.mxu0 0.0
    %4758 = vmatpush2.msra.mxu0 0.0
    %4759 = vmatprep.subr.mxu0 0.0
    %4760 = vmatpush2.msra.mxu0 0.0
    %4761 = vmatprep.subr.mxu0 0.0
    %4762 = vmatpush2.msra.mxu0 0.0
    %4763 = vmatprep.mubr.f32.mxu0 0.0
    %4764 = vmatmul.mubr.f32.gmra.mxu0 %v4555
    %v4765 = vpop.f32.mrf.mxu0
    %v4766 = vadd.f32 0.0, %v4765
    %v4767 = vpop.f32.mrf.mxu0
    %4768 = vdwg.mxu0
    %v4769 = vadd.f32 %v4525, %v4624
    %v4770 = vadd.f32 %v4526, %v4626
    %v4771 = vadd.f32 %v4527, %v4695
    %v4772 = vadd.f32 %v4528, %v4697
    %v4773 = vadd.f32 %v4529, %v4766
    %v4774 = vmul.f32 %v4769, %v256
    %v4775 = vmul.f32 %v4770, %v257
    %v4776 = vmul.f32 %v4771, %v258
    %v4777 = vmul.f32 %v4772, %v259
    %v4778 = vmul.f32 %v4773, %v260
    %v4779 = vadd.f32 %v4774, %v4775
    %v4780 = vadd.f32 %v4779, %v4776
    %v4781 = vadd.f32 %v4780, %v4777
    %v4782 = vadd.f32 %v4781, %v4778
    %4783 = vadd.xlane.f32.xlu0 %v4782
    %v4784 = vpop.xlane.xlu0 %4783
    %v4785 = vmul.f32 %v4784, 0.001953125
    %v4786 = vsub.f32 %v4769, %v4785
    %v4787 = vsub.f32 %v4770, %v4785
    %v4788 = vsub.f32 %v4771, %v4785
    %v4789 = vsub.f32 %v4772, %v4785
    %v4790 = vsub.f32 %v4773, %v4785
    %v4791 = vmul.f32 %v4786, %v256
    %v4792 = vmul.f32 %v4787, %v257
    %v4793 = vmul.f32 %v4788, %v258
    %v4794 = vmul.f32 %v4789, %v259
    %v4795 = vmul.f32 %v4790, %v260
    %v4796 = vmul.f32 %v4791, %v4791
    %v4797 = vmul.f32 %v4792, %v4792
    %v4798 = vmul.f32 %v4793, %v4793
    %v4799 = vmul.f32 %v4794, %v4794
    %v4800 = vmul.f32 %v4795, %v4795
    %v4801 = vadd.f32 %v4796, %v4797
    %v4802 = vadd.f32 %v4801, %v4798
    %v4803 = vadd.f32 %v4802, %v4799
    %v4804 = vadd.f32 %v4803, %v4800
    %4805 = vadd.xlane.f32.xlu0 %v4804
    %v4806 = vpop.xlane.xlu0 %4805
    %v4807 = vmul.f32 %v4806, 0.001953125
    %v4808 = vadd.f32 %v4807, 1e-05
    %v4809 = vrsqrt.pop %v4808
    %v4810 = vmul.f32 %v265, %v4809
    %v4811 = vmul.f32 %v4785, %v4810
    %v4812 = vsub.f32 %v267, %v4811
    %v4813 = vld [vmem:[%s0] sm:$0xff]
    %v4814 = vld [vmem:[%s0 + $0x8] sm:$0xff]
    %v4815 = vld [vmem:[%s0 + $0x10] sm:$0xff]
    %v4816 = vld [vmem:[%s0 + $0x18] sm:$0xff]
    %v4817 = vld [vmem:[%s0 + $0x20] sm:$0xff]
    %v4818 = vld [vmem:[%s0 + $0x28] sm:$0xff]
    %4820 = vset.pattern.permute.xlu0 0
    %4821 = vperm.xlu0 %4820, %v4810
    %v4822 = vpop.permute.xlu0 %4821
    %v4824 = vmul.f32 %v4769, %v4822
    %v4825 = vmul.f32 %v4770, %v4822
    %v4826 = vmul.f32 %v4771, %v4822
    %v4827 = vmul.f32 %v4772, %v4822
    %v4828 = vmul.f32 %v4773, %v4822
    %4830 = vset.pattern.permute.xlu0 0
    %4831 = vperm.xlu0 %4830, %v4812
    %v4832 = vpop.permute.xlu0 %4831
    %v4834 = vadd.f32 %v4824, %v4832
    %v4835 = vadd.f32 %v4825, %v4832
    %v4836 = vadd.f32 %v4826, %v4832
    %v4837 = vadd.f32 %v4827, %v4832
    %v4838 = vadd.f32 %v4828, %v4832
    %4845 = vrot.lane.b32.xlu0 %v4813, 90
    %v4846 = vpop.permute.xlu0 %4845
    %4847 = vrot.lane.b32.xlu0 %v4814, 90
    %v4848 = vpop.permute.xlu0 %4847
    %4849 = vrot.lane.b32.xlu0 %v4815, 90
    %v4850 = vpop.permute.xlu0 %4849
    %4851 = vrot.lane.b32.xlu0 %v4816, 90
    %v4852 = vpop.permute.xlu0 %4851
    %4853 = vrot.lane.b32.xlu0 %v4817, 90
    %v4854 = vpop.permute.xlu0 %4853
    %4855 = vrot.lane.b32.xlu0 %v4818, 90
    %v4856 = vpop.permute.xlu0 %4855
    %v4857 = vsel %vm2273, %v4846, %v4848
    %v4858 = vsel %vm2273, %v4848, %v4850
    %v4859 = vsel %vm2273, %v4850, %v4852
    %v4860 = vsel %vm2273, %v4852, %v4854
    %v4861 = vsel %vm2273, %v4854, %v4856
    %v4867 = vadd.f32 %v4834, %v4857
    %v4868 = vadd.f32 %v4835, %v4858
    %v4869 = vadd.f32 %v4836, %v4859
    %v4870 = vadd.f32 %v4837, %v4860
    %v4871 = vadd.f32 %v4838, %v4861
    %v4872 = vmax.f32 %v4867, 0.0
    %v4873 = vmax.f32 %v4868, 0.0
    %v4874 = vmax.f32 %v4869, 0.0
    %v4875 = vmax.f32 %v4870, 0.0
    %v4876 = vmax.f32 %v4871, 0.0
    %4877 = vst [vmem:[#allocation3] sm:$0xff] %v4872
    %4878 = vst [vmem:[#allocation3 + $0x8] sm:$0xff] %v4873
    %4879 = vst [vmem:[#allocation3 + $0x10] sm:$0xff] %v4874
    %4880 = vst [vmem:[#allocation3 + $0x18] sm:$0xff] %v4875
    %4881 = vst [vmem:[#allocation3 + $0x20] sm:$0xff] %v4876
    // Predicated region
    $region14: #{tpu_custom_call.1} parent=1 // pred_check
      _
    $region15: #{tpu_custom_call.1} parent=1 // pred_check_branch
      %4883 = sbr.rel (0) target = $region17
    $region16: #{tpu_custom_call.1} parent=1 // pred_region
      %s4885 = ssub.s32 640, 640
      %4886 = vsyncadd [#allocation4], %s4885
      %s4888 = sshll.u32 [#allocation3], 4
      %s4889 = int_to_ptr.vmem [resolvable:$true] %s4888
      %4891 = dma.vmem_to_hbm [thread:$0]  %s4889, 640, %s3, [#allocation4]
    $region17: #{tpu_custom_call.1} parent=1 // pred_fallthru
      _
    // Predicated region
    $region18: #{tpu_custom_call.1} parent=1 // pred_check
      _
    $region19: #{tpu_custom_call.1} parent=1 // pred_check_branch
      %4893 = sbr.rel (0) target = $region21
    $region20: #{tpu_custom_call.1} parent=1 // pred_region
      %4894 = dma.done [#allocation4], 640
    $region21: #{tpu_custom_call.1} parent=1 // pred_fallthru
      _
    %4895 = vsyncpa [#allocation4], 1

</llo_original>
